<compile_context>
chip_gen: v7x
topology: tpu7x:2x2x1
jax: 0.10.0
libtpu: 0.0.40
codegen_flags: <defaults>
</compile_context>

<pallas_src>
import numpy as np
import jax
import jax.numpy as jnp
from jax.experimental import pallas as pl
from jax.experimental.pallas import tpu as pltpu


def circular_1d_conv3d(x, weight, bias, *, stride=(1, 1, 1), padding=(0, 0, 0)):
    """Forward pass of Circular_1d_Conv3d.

    x:      (B, Cin, T, H, W)        NCDHW, float32
    weight: (Cout, Cin, kt, kh, kw)  PyTorch Conv3d layout
    bias:   (Cout,)
    Semantics: circular pad W by padding[2], zero pad T by padding[0] and H by
    padding[1], then a valid Conv3d with `stride`.
    """
    B, Cin, T, H, W = x.shape
    Cout, Cin2, kt, kh, kw = weight.shape
    assert Cin2 == Cin
    st, sh, sw = stride
    pt, ph, pw = padding
    assert pw < W, "circular padding must be smaller than W"

    Tp, Hp, Wp = T + 2 * pt, H + 2 * ph, W + 2 * pw
    To = (Tp - kt) // st + 1
    Ho = (Hp - kh) // sh + 1
    Wo = (Wp - kw) // sw + 1

    # ---- host-side glue: activation layout (single pad + transpose pass) ----
    # Channels-last, zero-pad T and H only; the circular W wrap is folded into
    # the banded weight below, so W is left untouched (saves an HBM pass).
    xt = jnp.transpose(x, (0, 2, 3, 4, 1))                       # (B, T, H, W, Cin)
    xt = jnp.pad(xt, ((0, 0), (pt, pt), (ph, ph), (0, 0), (0, 0)))
    y = xt.reshape(B, Tp, Hp, W * Cin)                           # lane axis = W*Cin

    # ---- host-side glue: banded weight + tiled bias -------------------------
    # wmat[r, i, p*Cin+ci, w*Cout+co] =
    #     sum_j weight[co, ci, r, i, j] * [p == (w*sw + j - pw) mod W]
    # (W-taps, Cin contraction and circular wrap become one dense matrix).
    p_idx = jnp.arange(W)[None, :, None]
    w_idx = jnp.arange(Wo)[None, None, :]
    j_idx = jnp.arange(kw)[:, None, None]
    sel = ((w_idx * sw + j_idx - pw) % W == p_idx).astype(weight.dtype)  # (kw, W, Wo)
    wmat = jnp.einsum("dcrij,jpw->ripcwd", weight, sel)
    wmat = wmat.reshape(kt, kh, W * Cin, Wo * Cout)
    b_row = jnp.tile(bias, Wo).reshape(1, Wo * Cout)             # bias[co] at w*Cout+co

    def kernel(x_ref, w_ref, b_ref, o_ref):
        # x_ref: (1, Tp, Hp, W*Cin)   w_ref: (kt, kh, W*Cin, Wo*Cout)
        # b_ref: (1, Wo*Cout)         o_ref: (1, To, Ho, Wo*Cout)
        brow = b_ref[...]                                        # hoisted bias row
        for to in range(To):
            acc = None
            for r in range(kt):
                t_in = to * st + r
                for i in range(kh):
                    if sh == 1:
                        lhs = x_ref[0, t_in, i:i + Ho, :]        # (Ho, W*Cin)
                    else:
                        fr = x_ref[0, t_in]                      # (Hp, W*Cin)
                        lhs = fr[i:i + (Ho - 1) * sh + 1:sh, :]
                    contrib = jnp.dot(lhs, w_ref[r, i],
                                      preferred_element_type=jnp.float32)
                    acc = contrib if acc is None else acc + contrib
            o_ref[0, to] = (acc + brow).astype(o_ref.dtype)      # lane-dense store

    out = pl.pallas_call(
        kernel,
        out_shape=jax.ShapeDtypeStruct((B, To, Ho, Wo * Cout), jnp.float32),
        grid_spec=pltpu.PrefetchScalarGridSpec(
            num_scalar_prefetch=0,
            grid=(B,),
            in_specs=[
                pl.BlockSpec((1, Tp, Hp, W * Cin), lambda b: (b, 0, 0, 0)),
                pl.BlockSpec((kt, kh, W * Cin, Wo * Cout), lambda b: (0, 0, 0, 0)),
                pl.BlockSpec((1, Wo * Cout), lambda b: (0, 0)),
            ],
            out_specs=pl.BlockSpec((1, To, Ho, Wo * Cout),
                                   lambda b: (b, 0, 0, 0)),
        ),
        compiler_params=pltpu.CompilerParams(
            dimension_semantics=("parallel",)),
    )(y, wmat, b_row)

    # un-interleave (w, co) and return NCDHW
    out = out.reshape(B, To, Ho, Wo, Cout)
    return jnp.transpose(out, (0, 4, 1, 2, 3))                   # (B, Cout, To, Ho, Wo)


def reference_numpy(x, weight, bias, stride, padding):
    """Direct-definition reference of the PyTorch module (float64 numpy)."""
    x = np.asarray(x, np.float64)
    weight = np.asarray(weight, np.float64)
    bias = np.asarray(bias, np.float64)
    B, Cin, T, H, W = x.shape
    Cout, _, kt, kh, kw = weight.shape
    st, sh, sw = stride
    pt, ph, pw = padding
    if pw > 0:                                                   # circular on W
        x = np.concatenate([x[..., W - pw:], x, x[..., :pw]], axis=-1)
    x = np.pad(x, ((0, 0), (0, 0), (pt, pt), (ph, ph), (0, 0)))  # zeros on T, H
    Tp, Hp, Wp = T + 2 * pt, H + 2 * ph, W + 2 * pw
    To = (Tp - kt) // st + 1
    Ho = (Hp - kh) // sh + 1
    Wo = (Wp - kw) // sw + 1
    out = np.zeros((B, Cout, To, Ho, Wo), np.float64)
    for r in range(kt):
        for i in range(kh):
            for j in range(kw):
                patch = x[:, :, r:r + st * To:st, i:i + sh * Ho:sh, j:j + sw * Wo:sw]
                out += np.einsum("bcthw,dc->bdthw", patch, weight[:, :, r, i, j])
    return out + bias[None, :, None, None, None]


if __name__ == "__main__":
    key = jax.random.PRNGKey(0)
    k1, k2, k3 = jax.random.split(key, 3)

    # Small shapes consistent with the module: B=2, Cin=8, Cout=16, T=4,
    # H=W=16; kernel (3,3,3), stride 1, padding (1,1,1) -> circular on W,
    # zero-padded on T and H.
    B, Cin, Cout, T, H, W = 2, 8, 16, 4, 16, 16
    kernel_size = (3, 3, 3)
    stride = (1, 1, 1)
    padding = (1, 1, 1)

    x = jax.random.normal(k1, (B, Cin, T, H, W), dtype=jnp.float32)
    weight = jax.random.normal(k2, (Cout, Cin) + kernel_size, dtype=jnp.float32) * 0.1
    bias = jax.random.normal(k3, (Cout,), dtype=jnp.float32) * 0.1

    fwd = jax.jit(lambda a, w, b: circular_1d_conv3d(a, w, b,
                                                     stride=stride, padding=padding))
    out = jax.block_until_ready(fwd(x, weight, bias))

    assert out.shape == (B, Cout, T, H, W), out.shape
    ref = reference_numpy(x, weight, bias, stride, padding)
    np.testing.assert_allclose(np.asarray(out), ref, atol=2e-3, rtol=2e-3)
    print("KERNEL_OK")
</pallas_src>

<mosaic_0001>
module attributes {stable_mosaic.version = 11 : i64} {
  func.func @kernel(%arg0: i32, %arg1: memref<1x6x18x128xf32, #tpu.memory_space<vmem>>, %arg2: memref<3x3x128x256xf32, #tpu.memory_space<vmem>>, %arg3: memref<1x256xf32, #tpu.memory_space<vmem>>, %arg4: memref<1x4x16x256xf32, #tpu.memory_space<vmem>>) attributes {dimension_semantics = [#tpu.dimension_semantics<parallel>], iteration_bounds = array<i64: 2>, scalar_prefetch = 0 : i64, scratch_operands = 0 : i64, tpu.core_type = #tpu.core_type<tc>, window_params = [{transform_indices = @transform_0, window_bounds = array<i64: 1, 6, 18, 128>}, {pipeline_mode = #tpu.pipeline_mode<synchronous>, transform_indices = @transform_1, window_bounds = array<i64: 3, 3, 128, 256>}, {pipeline_mode = #tpu.pipeline_mode<synchronous>, transform_indices = @transform_2, window_bounds = array<i64: 1, 256>}, {transform_indices = @transform_3, window_bounds = array<i64: 1, 4, 16, 256>}]} {
    %c0 = arith.constant 0 : index
    %c0_0 = arith.constant 0 : index
    %0 = vector.load %arg3[%c0, %c0_0] : memref<1x256xf32, #tpu.memory_space<vmem>>, vector<1x256xf32>
    %c0_1 = arith.constant 0 : index
    %c0_2 = arith.constant 0 : index
    %c0_3 = arith.constant 0 : index
    %c0_4 = arith.constant 0 : index
    %1 = vector.load %arg1[%c0_1, %c0_2, %c0_3, %c0_4] : memref<1x6x18x128xf32, #tpu.memory_space<vmem>>, vector<1x1x16x128xf32>
    %2 = vector.shape_cast %1 : vector<1x1x16x128xf32> to vector<16x128xf32>
    %c0_5 = arith.constant 0 : index
    %c0_6 = arith.constant 0 : index
    %c0_7 = arith.constant 0 : index
    %c0_8 = arith.constant 0 : index
    %3 = vector.load %arg2[%c0_5, %c0_6, %c0_7, %c0_8] : memref<3x3x128x256xf32, #tpu.memory_space<vmem>>, vector<1x1x128x256xf32>
    %4 = vector.shape_cast %3 : vector<1x1x128x256xf32> to vector<128x256xf32>
    %cst = arith.constant dense<0.000000e+00> : vector<16x256xf32>
    %5 = tpu.matmul %2, %4, %cst {dimension_numbers = #tpu.dot_dimension_numbers<[1], [0], [0], [1], [0, 0, 1, 1], [], []>} : vector<16x128xf32>, vector<128x256xf32>, vector<16x256xf32> -> vector<16x256xf32>
    %c0_9 = arith.constant 0 : index
    %c0_10 = arith.constant 0 : index
    %c1 = arith.constant 1 : index
    %c0_11 = arith.constant 0 : index
    %6 = vector.load %arg1[%c0_9, %c0_10, %c1, %c0_11] : memref<1x6x18x128xf32, #tpu.memory_space<vmem>>, vector<1x1x16x128xf32>
    %7 = vector.shape_cast %6 : vector<1x1x16x128xf32> to vector<16x128xf32>
    %c0_12 = arith.constant 0 : index
    %c1_13 = arith.constant 1 : index
    %c0_14 = arith.constant 0 : index
    %c0_15 = arith.constant 0 : index
    %8 = vector.load %arg2[%c0_12, %c1_13, %c0_14, %c0_15] : memref<3x3x128x256xf32, #tpu.memory_space<vmem>>, vector<1x1x128x256xf32>
    %9 = vector.shape_cast %8 : vector<1x1x128x256xf32> to vector<128x256xf32>
    %cst_16 = arith.constant dense<0.000000e+00> : vector<16x256xf32>
    %10 = tpu.matmul %7, %9, %cst_16 {dimension_numbers = #tpu.dot_dimension_numbers<[1], [0], [0], [1], [0, 0, 1, 1], [], []>} : vector<16x128xf32>, vector<128x256xf32>, vector<16x256xf32> -> vector<16x256xf32>
    %11 = arith.addf %5, %10 : vector<16x256xf32>
    %c0_17 = arith.constant 0 : index
    %c0_18 = arith.constant 0 : index
    %c2 = arith.constant 2 : index
    %c0_19 = arith.constant 0 : index
    %12 = vector.load %arg1[%c0_17, %c0_18, %c2, %c0_19] : memref<1x6x18x128xf32, #tpu.memory_space<vmem>>, vector<1x1x16x128xf32>
    %13 = vector.shape_cast %12 : vector<1x1x16x128xf32> to vector<16x128xf32>
    %c0_20 = arith.constant 0 : index
    %c2_21 = arith.constant 2 : index
    %c0_22 = arith.constant 0 : index
    %c0_23 = arith.constant 0 : index
    %14 = vector.load %arg2[%c0_20, %c2_21, %c0_22, %c0_23] : memref<3x3x128x256xf32, #tpu.memory_space<vmem>>, vector<1x1x128x256xf32>
    %15 = vector.shape_cast %14 : vector<1x1x128x256xf32> to vector<128x256xf32>
    %cst_24 = arith.constant dense<0.000000e+00> : vector<16x256xf32>
    %16 = tpu.matmul %13, %15, %cst_24 {dimension_numbers = #tpu.dot_dimension_numbers<[1], [0], [0], [1], [0, 0, 1, 1], [], []>} : vector<16x128xf32>, vector<128x256xf32>, vector<16x256xf32> -> vector<16x256xf32>
    %17 = arith.addf %11, %16 : vector<16x256xf32>
    %c0_25 = arith.constant 0 : index
    %c1_26 = arith.constant 1 : index
    %c0_27 = arith.constant 0 : index
    %c0_28 = arith.constant 0 : index
    %18 = vector.load %arg1[%c0_25, %c1_26, %c0_27, %c0_28] : memref<1x6x18x128xf32, #tpu.memory_space<vmem>>, vector<1x1x16x128xf32>
    %19 = vector.shape_cast %18 : vector<1x1x16x128xf32> to vector<16x128xf32>
    %c1_29 = arith.constant 1 : index
    %c0_30 = arith.constant 0 : index
    %c0_31 = arith.constant 0 : index
    %c0_32 = arith.constant 0 : index
    %20 = vector.load %arg2[%c1_29, %c0_30, %c0_31, %c0_32] : memref<3x3x128x256xf32, #tpu.memory_space<vmem>>, vector<1x1x128x256xf32>
    %21 = vector.shape_cast %20 : vector<1x1x128x256xf32> to vector<128x256xf32>
    %cst_33 = arith.constant dense<0.000000e+00> : vector<16x256xf32>
    %22 = tpu.matmul %19, %21, %cst_33 {dimension_numbers = #tpu.dot_dimension_numbers<[1], [0], [0], [1], [0, 0, 1, 1], [], []>} : vector<16x128xf32>, vector<128x256xf32>, vector<16x256xf32> -> vector<16x256xf32>
    %23 = arith.addf %17, %22 : vector<16x256xf32>
    %c0_34 = arith.constant 0 : index
    %c1_35 = arith.constant 1 : index
    %c1_36 = arith.constant 1 : index
    %c0_37 = arith.constant 0 : index
    %24 = vector.load %arg1[%c0_34, %c1_35, %c1_36, %c0_37] : memref<1x6x18x128xf32, #tpu.memory_space<vmem>>, vector<1x1x16x128xf32>
    %25 = vector.shape_cast %24 : vector<1x1x16x128xf32> to vector<16x128xf32>
    %c1_38 = arith.constant 1 : index
    %c1_39 = arith.constant 1 : index
    %c0_40 = arith.constant 0 : index
    %c0_41 = arith.constant 0 : index
    %26 = vector.load %arg2[%c1_38, %c1_39, %c0_40, %c0_41] : memref<3x3x128x256xf32, #tpu.memory_space<vmem>>, vector<1x1x128x256xf32>
    %27 = vector.shape_cast %26 : vector<1x1x128x256xf32> to vector<128x256xf32>
    %cst_42 = arith.constant dense<0.000000e+00> : vector<16x256xf32>
    %28 = tpu.matmul %25, %27, %cst_42 {dimension_numbers = #tpu.dot_dimension_numbers<[1], [0], [0], [1], [0, 0, 1, 1], [], []>} : vector<16x128xf32>, vector<128x256xf32>, vector<16x256xf32> -> vector<16x256xf32>
    %29 = arith.addf %23, %28 : vector<16x256xf32>
    %c0_43 = arith.constant 0 : index
    %c1_44 = arith.constant 1 : index
    %c2_45 = arith.constant 2 : index
    %c0_46 = arith.constant 0 : index
    %30 = vector.load %arg1[%c0_43, %c1_44, %c2_45, %c0_46] : memref<1x6x18x128xf32, #tpu.memory_space<vmem>>, vector<1x1x16x128xf32>
    %31 = vector.shape_cast %30 : vector<1x1x16x128xf32> to vector<16x128xf32>
    %c1_47 = arith.constant 1 : index
    %c2_48 = arith.constant 2 : index
    %c0_49 = arith.constant 0 : index
    %c0_50 = arith.constant 0 : index
    %32 = vector.load %arg2[%c1_47, %c2_48, %c0_49, %c0_50] : memref<3x3x128x256xf32, #tpu.memory_space<vmem>>, vector<1x1x128x256xf32>
    %33 = vector.shape_cast %32 : vector<1x1x128x256xf32> to vector<128x256xf32>
    %cst_51 = arith.constant dense<0.000000e+00> : vector<16x256xf32>
    %34 = tpu.matmul %31, %33, %cst_51 {dimension_numbers = #tpu.dot_dimension_numbers<[1], [0], [0], [1], [0, 0, 1, 1], [], []>} : vector<16x128xf32>, vector<128x256xf32>, vector<16x256xf32> -> vector<16x256xf32>
    %35 = arith.addf %29, %34 : vector<16x256xf32>
    %c0_52 = arith.constant 0 : index
    %c2_53 = arith.constant 2 : index
    %c0_54 = arith.constant 0 : index
    %c0_55 = arith.constant 0 : index
    %36 = vector.load %arg1[%c0_52, %c2_53, %c0_54, %c0_55] : memref<1x6x18x128xf32, #tpu.memory_space<vmem>>, vector<1x1x16x128xf32>
    %37 = vector.shape_cast %36 : vector<1x1x16x128xf32> to vector<16x128xf32>
    %c2_56 = arith.constant 2 : index
    %c0_57 = arith.constant 0 : index
    %c0_58 = arith.constant 0 : index
    %c0_59 = arith.constant 0 : index
    %38 = vector.load %arg2[%c2_56, %c0_57, %c0_58, %c0_59] : memref<3x3x128x256xf32, #tpu.memory_space<vmem>>, vector<1x1x128x256xf32>
    %39 = vector.shape_cast %38 : vector<1x1x128x256xf32> to vector<128x256xf32>
    %cst_60 = arith.constant dense<0.000000e+00> : vector<16x256xf32>
    %40 = tpu.matmul %37, %39, %cst_60 {dimension_numbers = #tpu.dot_dimension_numbers<[1], [0], [0], [1], [0, 0, 1, 1], [], []>} : vector<16x128xf32>, vector<128x256xf32>, vector<16x256xf32> -> vector<16x256xf32>
    %41 = arith.addf %35, %40 : vector<16x256xf32>
    %c0_61 = arith.constant 0 : index
    %c2_62 = arith.constant 2 : index
    %c1_63 = arith.constant 1 : index
    %c0_64 = arith.constant 0 : index
    %42 = vector.load %arg1[%c0_61, %c2_62, %c1_63, %c0_64] : memref<1x6x18x128xf32, #tpu.memory_space<vmem>>, vector<1x1x16x128xf32>
    %43 = vector.shape_cast %42 : vector<1x1x16x128xf32> to vector<16x128xf32>
    %c2_65 = arith.constant 2 : index
    %c1_66 = arith.constant 1 : index
    %c0_67 = arith.constant 0 : index
    %c0_68 = arith.constant 0 : index
    %44 = vector.load %arg2[%c2_65, %c1_66, %c0_67, %c0_68] : memref<3x3x128x256xf32, #tpu.memory_space<vmem>>, vector<1x1x128x256xf32>
    %45 = vector.shape_cast %44 : vector<1x1x128x256xf32> to vector<128x256xf32>
    %cst_69 = arith.constant dense<0.000000e+00> : vector<16x256xf32>
    %46 = tpu.matmul %43, %45, %cst_69 {dimension_numbers = #tpu.dot_dimension_numbers<[1], [0], [0], [1], [0, 0, 1, 1], [], []>} : vector<16x128xf32>, vector<128x256xf32>, vector<16x256xf32> -> vector<16x256xf32>
    %47 = arith.addf %41, %46 : vector<16x256xf32>
    %c0_70 = arith.constant 0 : index
    %c2_71 = arith.constant 2 : index
    %c2_72 = arith.constant 2 : index
    %c0_73 = arith.constant 0 : index
    %48 = vector.load %arg1[%c0_70, %c2_71, %c2_72, %c0_73] : memref<1x6x18x128xf32, #tpu.memory_space<vmem>>, vector<1x1x16x128xf32>
    %49 = vector.shape_cast %48 : vector<1x1x16x128xf32> to vector<16x128xf32>
    %c2_74 = arith.constant 2 : index
    %c2_75 = arith.constant 2 : index
    %c0_76 = arith.constant 0 : index
    %c0_77 = arith.constant 0 : index
    %50 = vector.load %arg2[%c2_74, %c2_75, %c0_76, %c0_77] : memref<3x3x128x256xf32, #tpu.memory_space<vmem>>, vector<1x1x128x256xf32>
    %51 = vector.shape_cast %50 : vector<1x1x128x256xf32> to vector<128x256xf32>
    %cst_78 = arith.constant dense<0.000000e+00> : vector<16x256xf32>
    %52 = tpu.matmul %49, %51, %cst_78 {dimension_numbers = #tpu.dot_dimension_numbers<[1], [0], [0], [1], [0, 0, 1, 1], [], []>} : vector<16x128xf32>, vector<128x256xf32>, vector<16x256xf32> -> vector<16x256xf32>
    %53 = arith.addf %47, %52 : vector<16x256xf32>
    %54 = vector.broadcast %0 : vector<1x256xf32> to vector<16x256xf32>
    %55 = arith.addf %53, %54 : vector<16x256xf32>
    %c0_79 = arith.constant 0 : index
    %c0_80 = arith.constant 0 : index
    %c0_81 = arith.constant 0 : index
    %c0_82 = arith.constant 0 : index
    %56 = vector.load %arg4[%c0_79, %c0_80, %c0_81, %c0_82] : memref<1x4x16x256xf32, #tpu.memory_space<vmem>>, vector<1x1x16x256xf32>
    %57 = vector.shape_cast %56 : vector<1x1x16x256xf32> to vector<16x256xf32>
    %58 = vector.shape_cast %55 : vector<16x256xf32> to vector<1x1x16x256xf32>
    tpu.vector_store %arg4[%c0_79, %c0_80, %c0_81, %c0_82], %58 {strides = array<i32>} : memref<1x4x16x256xf32, #tpu.memory_space<vmem>>, vector<1x1x16x256xf32>,
    %c0_83 = arith.constant 0 : index
    %c1_84 = arith.constant 1 : index
    %c0_85 = arith.constant 0 : index
    %c0_86 = arith.constant 0 : index
    %59 = vector.load %arg1[%c0_83, %c1_84, %c0_85, %c0_86] : memref<1x6x18x128xf32, #tpu.memory_space<vmem>>, vector<1x1x16x128xf32>
    %60 = vector.shape_cast %59 : vector<1x1x16x128xf32> to vector<16x128xf32>
    %c0_87 = arith.constant 0 : index
    %c0_88 = arith.constant 0 : index
    %c0_89 = arith.constant 0 : index
    %c0_90 = arith.constant 0 : index
    %61 = vector.load %arg2[%c0_87, %c0_88, %c0_89, %c0_90] : memref<3x3x128x256xf32, #tpu.memory_space<vmem>>, vector<1x1x128x256xf32>
    %62 = vector.shape_cast %61 : vector<1x1x128x256xf32> to vector<128x256xf32>
    %cst_91 = arith.constant dense<0.000000e+00> : vector<16x256xf32>
    %63 = tpu.matmul %60, %62, %cst_91 {dimension_numbers = #tpu.dot_dimension_numbers<[1], [0], [0], [1], [0, 0, 1, 1], [], []>} : vector<16x128xf32>, vector<128x256xf32>, vector<16x256xf32> -> vector<16x256xf32>
    %c0_92 = arith.constant 0 : index
    %c1_93 = arith.constant 1 : index
    %c1_94 = arith.constant 1 : index
    %c0_95 = arith.constant 0 : index
    %64 = vector.load %arg1[%c0_92, %c1_93, %c1_94, %c0_95] : memref<1x6x18x128xf32, #tpu.memory_space<vmem>>, vector<1x1x16x128xf32>
    %65 = vector.shape_cast %64 : vector<1x1x16x128xf32> to vector<16x128xf32>
    %c0_96 = arith.constant 0 : index
    %c1_97 = arith.constant 1 : index
    %c0_98 = arith.constant 0 : index
    %c0_99 = arith.constant 0 : index
    %66 = vector.load %arg2[%c0_96, %c1_97, %c0_98, %c0_99] : memref<3x3x128x256xf32, #tpu.memory_space<vmem>>, vector<1x1x128x256xf32>
    %67 = vector.shape_cast %66 : vector<1x1x128x256xf32> to vector<128x256xf32>
    %cst_100 = arith.constant dense<0.000000e+00> : vector<16x256xf32>
    %68 = tpu.matmul %65, %67, %cst_100 {dimension_numbers = #tpu.dot_dimension_numbers<[1], [0], [0], [1], [0, 0, 1, 1], [], []>} : vector<16x128xf32>, vector<128x256xf32>, vector<16x256xf32> -> vector<16x256xf32>
    %69 = arith.addf %63, %68 : vector<16x256xf32>
    %c0_101 = arith.constant 0 : index
    %c1_102 = arith.constant 1 : index
    %c2_103 = arith.constant 2 : index
    %c0_104 = arith.constant 0 : index
    %70 = vector.load %arg1[%c0_101, %c1_102, %c2_103, %c0_104] : memref<1x6x18x128xf32, #tpu.memory_space<vmem>>, vector<1x1x16x128xf32>
    %71 = vector.shape_cast %70 : vector<1x1x16x128xf32> to vector<16x128xf32>
    %c0_105 = arith.constant 0 : index
    %c2_106 = arith.constant 2 : index
    %c0_107 = arith.constant 0 : index
    %c0_108 = arith.constant 0 : index
    %72 = vector.load %arg2[%c0_105, %c2_106, %c0_107, %c0_108] : memref<3x3x128x256xf32, #tpu.memory_space<vmem>>, vector<1x1x128x256xf32>
    %73 = vector.shape_cast %72 : vector<1x1x128x256xf32> to vector<128x256xf32>
    %cst_109 = arith.constant dense<0.000000e+00> : vector<16x256xf32>
    %74 = tpu.matmul %71, %73, %cst_109 {dimension_numbers = #tpu.dot_dimension_numbers<[1], [0], [0], [1], [0, 0, 1, 1], [], []>} : vector<16x128xf32>, vector<128x256xf32>, vector<16x256xf32> -> vector<16x256xf32>
    %75 = arith.addf %69, %74 : vector<16x256xf32>
    %c0_110 = arith.constant 0 : index
    %c2_111 = arith.constant 2 : index
    %c0_112 = arith.constant 0 : index
    %c0_113 = arith.constant 0 : index
    %76 = vector.load %arg1[%c0_110, %c2_111, %c0_112, %c0_113] : memref<1x6x18x128xf32, #tpu.memory_space<vmem>>, vector<1x1x16x128xf32>
    %77 = vector.shape_cast %76 : vector<1x1x16x128xf32> to vector<16x128xf32>
    %c1_114 = arith.constant 1 : index
    %c0_115 = arith.constant 0 : index
    %c0_116 = arith.constant 0 : index
    %c0_117 = arith.constant 0 : index
    %78 = vector.load %arg2[%c1_114, %c0_115, %c0_116, %c0_117] : memref<3x3x128x256xf32, #tpu.memory_space<vmem>>, vector<1x1x128x256xf32>
    %79 = vector.shape_cast %78 : vector<1x1x128x256xf32> to vector<128x256xf32>
    %cst_118 = arith.constant dense<0.000000e+00> : vector<16x256xf32>
    %80 = tpu.matmul %77, %79, %cst_118 {dimension_numbers = #tpu.dot_dimension_numbers<[1], [0], [0], [1], [0, 0, 1, 1], [], []>} : vector<16x128xf32>, vector<128x256xf32>, vector<16x256xf32> -> vector<16x256xf32>
    %81 = arith.addf %75, %80 : vector<16x256xf32>
    %c0_119 = arith.constant 0 : index
    %c2_120 = arith.constant 2 : index
    %c1_121 = arith.constant 1 : index
    %c0_122 = arith.constant 0 : index
    %82 = vector.load %arg1[%c0_119, %c2_120, %c1_121, %c0_122] : memref<1x6x18x128xf32, #tpu.memory_space<vmem>>, vector<1x1x16x128xf32>
    %83 = vector.shape_cast %82 : vector<1x1x16x128xf32> to vector<16x128xf32>
    %c1_123 = arith.constant 1 : index
    %c1_124 = arith.constant 1 : index
    %c0_125 = arith.constant 0 : index
    %c0_126 = arith.constant 0 : index
    %84 = vector.load %arg2[%c1_123, %c1_124, %c0_125, %c0_126] : memref<3x3x128x256xf32, #tpu.memory_space<vmem>>, vector<1x1x128x256xf32>
    %85 = vector.shape_cast %84 : vector<1x1x128x256xf32> to vector<128x256xf32>
    %cst_127 = arith.constant dense<0.000000e+00> : vector<16x256xf32>
    %86 = tpu.matmul %83, %85, %cst_127 {dimension_numbers = #tpu.dot_dimension_numbers<[1], [0], [0], [1], [0, 0, 1, 1], [], []>} : vector<16x128xf32>, vector<128x256xf32>, vector<16x256xf32> -> vector<16x256xf32>
    %87 = arith.addf %81, %86 : vector<16x256xf32>
    %c0_128 = arith.constant 0 : index
    %c2_129 = arith.constant 2 : index
    %c2_130 = arith.constant 2 : index
    %c0_131 = arith.constant 0 : index
    %88 = vector.load %arg1[%c0_128, %c2_129, %c2_130, %c0_131] : memref<1x6x18x128xf32, #tpu.memory_space<vmem>>, vector<1x1x16x128xf32>
    %89 = vector.shape_cast %88 : vector<1x1x16x128xf32> to vector<16x128xf32>
    %c1_132 = arith.constant 1 : index
    %c2_133 = arith.constant 2 : index
    %c0_134 = arith.constant 0 : index
    %c0_135 = arith.constant 0 : index
    %90 = vector.load %arg2[%c1_132, %c2_133, %c0_134, %c0_135] : memref<3x3x128x256xf32, #tpu.memory_space<vmem>>, vector<1x1x128x256xf32>
    %91 = vector.shape_cast %90 : vector<1x1x128x256xf32> to vector<128x256xf32>
    %cst_136 = arith.constant dense<0.000000e+00> : vector<16x256xf32>
    %92 = tpu.matmul %89, %91, %cst_136 {dimension_numbers = #tpu.dot_dimension_numbers<[1], [0], [0], [1], [0, 0, 1, 1], [], []>} : vector<16x128xf32>, vector<128x256xf32>, vector<16x256xf32> -> vector<16x256xf32>
    %93 = arith.addf %87, %92 : vector<16x256xf32>
    %c0_137 = arith.constant 0 : index
    %c3 = arith.constant 3 : index
    %c0_138 = arith.constant 0 : index
    %c0_139 = arith.constant 0 : index
    %94 = vector.load %arg1[%c0_137, %c3, %c0_138, %c0_139] : memref<1x6x18x128xf32, #tpu.memory_space<vmem>>, vector<1x1x16x128xf32>
    %95 = vector.shape_cast %94 : vector<1x1x16x128xf32> to vector<16x128xf32>
    %c2_140 = arith.constant 2 : index
    %c0_141 = arith.constant 0 : index
    %c0_142 = arith.constant 0 : index
    %c0_143 = arith.constant 0 : index
    %96 = vector.load %arg2[%c2_140, %c0_141, %c0_142, %c0_143] : memref<3x3x128x256xf32, #tpu.memory_space<vmem>>, vector<1x1x128x256xf32>
    %97 = vector.shape_cast %96 : vector<1x1x128x256xf32> to vector<128x256xf32>
    %cst_144 = arith.constant dense<0.000000e+00> : vector<16x256xf32>
    %98 = tpu.matmul %95, %97, %cst_144 {dimension_numbers = #tpu.dot_dimension_numbers<[1], [0], [0], [1], [0, 0, 1, 1], [], []>} : vector<16x128xf32>, vector<128x256xf32>, vector<16x256xf32> -> vector<16x256xf32>
    %99 = arith.addf %93, %98 : vector<16x256xf32>
    %c0_145 = arith.constant 0 : index
    %c3_146 = arith.constant 3 : index
    %c1_147 = arith.constant 1 : index
    %c0_148 = arith.constant 0 : index
    %100 = vector.load %arg1[%c0_145, %c3_146, %c1_147, %c0_148] : memref<1x6x18x128xf32, #tpu.memory_space<vmem>>, vector<1x1x16x128xf32>
    %101 = vector.shape_cast %100 : vector<1x1x16x128xf32> to vector<16x128xf32>
    %c2_149 = arith.constant 2 : index
    %c1_150 = arith.constant 1 : index
    %c0_151 = arith.constant 0 : index
    %c0_152 = arith.constant 0 : index
    %102 = vector.load %arg2[%c2_149, %c1_150, %c0_151, %c0_152] : memref<3x3x128x256xf32, #tpu.memory_space<vmem>>, vector<1x1x128x256xf32>
    %103 = vector.shape_cast %102 : vector<1x1x128x256xf32> to vector<128x256xf32>
    %cst_153 = arith.constant dense<0.000000e+00> : vector<16x256xf32>
    %104 = tpu.matmul %101, %103, %cst_153 {dimension_numbers = #tpu.dot_dimension_numbers<[1], [0], [0], [1], [0, 0, 1, 1], [], []>} : vector<16x128xf32>, vector<128x256xf32>, vector<16x256xf32> -> vector<16x256xf32>
    %105 = arith.addf %99, %104 : vector<16x256xf32>
    %c0_154 = arith.constant 0 : index
    %c3_155 = arith.constant 3 : index
    %c2_156 = arith.constant 2 : index
    %c0_157 = arith.constant 0 : index
    %106 = vector.load %arg1[%c0_154, %c3_155, %c2_156, %c0_157] : memref<1x6x18x128xf32, #tpu.memory_space<vmem>>, vector<1x1x16x128xf32>
    %107 = vector.shape_cast %106 : vector<1x1x16x128xf32> to vector<16x128xf32>
    %c2_158 = arith.constant 2 : index
    %c2_159 = arith.constant 2 : index
    %c0_160 = arith.constant 0 : index
    %c0_161 = arith.constant 0 : index
    %108 = vector.load %arg2[%c2_158, %c2_159, %c0_160, %c0_161] : memref<3x3x128x256xf32, #tpu.memory_space<vmem>>, vector<1x1x128x256xf32>
    %109 = vector.shape_cast %108 : vector<1x1x128x256xf32> to vector<128x256xf32>
    %cst_162 = arith.constant dense<0.000000e+00> : vector<16x256xf32>
    %110 = tpu.matmul %107, %109, %cst_162 {dimension_numbers = #tpu.dot_dimension_numbers<[1], [0], [0], [1], [0, 0, 1, 1], [], []>} : vector<16x128xf32>, vector<128x256xf32>, vector<16x256xf32> -> vector<16x256xf32>
    %111 = arith.addf %105, %110 : vector<16x256xf32>
    %112 = vector.broadcast %0 : vector<1x256xf32> to vector<16x256xf32>
    %113 = arith.addf %111, %112 : vector<16x256xf32>
    %c0_163 = arith.constant 0 : index
    %c1_164 = arith.constant 1 : index
    %c0_165 = arith.constant 0 : index
    %c0_166 = arith.constant 0 : index
    %114 = vector.load %arg4[%c0_163, %c1_164, %c0_165, %c0_166] : memref<1x4x16x256xf32, #tpu.memory_space<vmem>>, vector<1x1x16x256xf32>
    %115 = vector.shape_cast %114 : vector<1x1x16x256xf32> to vector<16x256xf32>
    %116 = vector.shape_cast %113 : vector<16x256xf32> to vector<1x1x16x256xf32>
    tpu.vector_store %arg4[%c0_163, %c1_164, %c0_165, %c0_166], %116 {strides = array<i32>} : memref<1x4x16x256xf32, #tpu.memory_space<vmem>>, vector<1x1x16x256xf32>,
    %c0_167 = arith.constant 0 : index
    %c2_168 = arith.constant 2 : index
    %c0_169 = arith.constant 0 : index
    %c0_170 = arith.constant 0 : index
    %117 = vector.load %arg1[%c0_167, %c2_168, %c0_169, %c0_170] : memref<1x6x18x128xf32, #tpu.memory_space<vmem>>, vector<1x1x16x128xf32>
    %118 = vector.shape_cast %117 : vector<1x1x16x128xf32> to vector<16x128xf32>
    %c0_171 = arith.constant 0 : index
    %c0_172 = arith.constant 0 : index
    %c0_173 = arith.constant 0 : index
    %c0_174 = arith.constant 0 : index
    %119 = vector.load %arg2[%c0_171, %c0_172, %c0_173, %c0_174] : memref<3x3x128x256xf32, #tpu.memory_space<vmem>>, vector<1x1x128x256xf32>
    %120 = vector.shape_cast %119 : vector<1x1x128x256xf32> to vector<128x256xf32>
    %cst_175 = arith.constant dense<0.000000e+00> : vector<16x256xf32>
    %121 = tpu.matmul %118, %120, %cst_175 {dimension_numbers = #tpu.dot_dimension_numbers<[1], [0], [0], [1], [0, 0, 1, 1], [], []>} : vector<16x128xf32>, vector<128x256xf32>, vector<16x256xf32> -> vector<16x256xf32>
    %c0_176 = arith.constant 0 : index
    %c2_177 = arith.constant 2 : index
    %c1_178 = arith.constant 1 : index
    %c0_179 = arith.constant 0 : index
    %122 = vector.load %arg1[%c0_176, %c2_177, %c1_178, %c0_179] : memref<1x6x18x128xf32, #tpu.memory_space<vmem>>, vector<1x1x16x128xf32>
    %123 = vector.shape_cast %122 : vector<1x1x16x128xf32> to vector<16x128xf32>
    %c0_180 = arith.constant 0 : index
    %c1_181 = arith.constant 1 : index
    %c0_182 = arith.constant 0 : index
    %c0_183 = arith.constant 0 : index
    %124 = vector.load %arg2[%c0_180, %c1_181, %c0_182, %c0_183] : memref<3x3x128x256xf32, #tpu.memory_space<vmem>>, vector<1x1x128x256xf32>
    %125 = vector.shape_cast %124 : vector<1x1x128x256xf32> to vector<128x256xf32>
    %cst_184 = arith.constant dense<0.000000e+00> : vector<16x256xf32>
    %126 = tpu.matmul %123, %125, %cst_184 {dimension_numbers = #tpu.dot_dimension_numbers<[1], [0], [0], [1], [0, 0, 1, 1], [], []>} : vector<16x128xf32>, vector<128x256xf32>, vector<16x256xf32> -> vector<16x256xf32>
    %127 = arith.addf %121, %126 : vector<16x256xf32>
    %c0_185 = arith.constant 0 : index
    %c2_186 = arith.constant 2 : index
    %c2_187 = arith.constant 2 : index
    %c0_188 = arith.constant 0 : index
    %128 = vector.load %arg1[%c0_185, %c2_186, %c2_187, %c0_188] : memref<1x6x18x128xf32, #tpu.memory_space<vmem>>, vector<1x1x16x128xf32>
    %129 = vector.shape_cast %128 : vector<1x1x16x128xf32> to vector<16x128xf32>
    %c0_189 = arith.constant 0 : index
    %c2_190 = arith.constant 2 : index
    %c0_191 = arith.constant 0 : index
    %c0_192 = arith.constant 0 : index
    %130 = vector.load %arg2[%c0_189, %c2_190, %c0_191, %c0_192] : memref<3x3x128x256xf32, #tpu.memory_space<vmem>>, vector<1x1x128x256xf32>
    %131 = vector.shape_cast %130 : vector<1x1x128x256xf32> to vector<128x256xf32>
    %cst_193 = arith.constant dense<0.000000e+00> : vector<16x256xf32>
    %132 = tpu.matmul %129, %131, %cst_193 {dimension_numbers = #tpu.dot_dimension_numbers<[1], [0], [0], [1], [0, 0, 1, 1], [], []>} : vector<16x128xf32>, vector<128x256xf32>, vector<16x256xf32> -> vector<16x256xf32>
    %133 = arith.addf %127, %132 : vector<16x256xf32>
    %c0_194 = arith.constant 0 : index
    %c3_195 = arith.constant 3 : index
    %c0_196 = arith.constant 0 : index
    %c0_197 = arith.constant 0 : index
    %134 = vector.load %arg1[%c0_194, %c3_195, %c0_196, %c0_197] : memref<1x6x18x128xf32, #tpu.memory_space<vmem>>, vector<1x1x16x128xf32>
    %135 = vector.shape_cast %134 : vector<1x1x16x128xf32> to vector<16x128xf32>
    %c1_198 = arith.constant 1 : index
    %c0_199 = arith.constant 0 : index
    %c0_200 = arith.constant 0 : index
    %c0_201 = arith.constant 0 : index
    %136 = vector.load %arg2[%c1_198, %c0_199, %c0_200, %c0_201] : memref<3x3x128x256xf32, #tpu.memory_space<vmem>>, vector<1x1x128x256xf32>
    %137 = vector.shape_cast %136 : vector<1x1x128x256xf32> to vector<128x256xf32>
    %cst_202 = arith.constant dense<0.000000e+00> : vector<16x256xf32>
    %138 = tpu.matmul %135, %137, %cst_202 {dimension_numbers = #tpu.dot_dimension_numbers<[1], [0], [0], [1], [0, 0, 1, 1], [], []>} : vector<16x128xf32>, vector<128x256xf32>, vector<16x256xf32> -> vector<16x256xf32>
    %139 = arith.addf %133, %138 : vector<16x256xf32>
    %c0_203 = arith.constant 0 : index
    %c3_204 = arith.constant 3 : index
    %c1_205 = arith.constant 1 : index
    %c0_206 = arith.constant 0 : index
    %140 = vector.load %arg1[%c0_203, %c3_204, %c1_205, %c0_206] : memref<1x6x18x128xf32, #tpu.memory_space<vmem>>, vector<1x1x16x128xf32>
    %141 = vector.shape_cast %140 : vector<1x1x16x128xf32> to vector<16x128xf32>
    %c1_207 = arith.constant 1 : index
    %c1_208 = arith.constant 1 : index
    %c0_209 = arith.constant 0 : index
    %c0_210 = arith.constant 0 : index
    %142 = vector.load %arg2[%c1_207, %c1_208, %c0_209, %c0_210] : memref<3x3x128x256xf32, #tpu.memory_space<vmem>>, vector<1x1x128x256xf32>
    %143 = vector.shape_cast %142 : vector<1x1x128x256xf32> to vector<128x256xf32>
    %cst_211 = arith.constant dense<0.000000e+00> : vector<16x256xf32>
    %144 = tpu.matmul %141, %143, %cst_211 {dimension_numbers = #tpu.dot_dimension_numbers<[1], [0], [0], [1], [0, 0, 1, 1], [], []>} : vector<16x128xf32>, vector<128x256xf32>, vector<16x256xf32> -> vector<16x256xf32>
    %145 = arith.addf %139, %144 : vector<16x256xf32>
    %c0_212 = arith.constant 0 : index
    %c3_213 = arith.constant 3 : index
    %c2_214 = arith.constant 2 : index
    %c0_215 = arith.constant 0 : index
    %146 = vector.load %arg1[%c0_212, %c3_213, %c2_214, %c0_215] : memref<1x6x18x128xf32, #tpu.memory_space<vmem>>, vector<1x1x16x128xf32>
    %147 = vector.shape_cast %146 : vector<1x1x16x128xf32> to vector<16x128xf32>
    %c1_216 = arith.constant 1 : index
    %c2_217 = arith.constant 2 : index
    %c0_218 = arith.constant 0 : index
    %c0_219 = arith.constant 0 : index
    %148 = vector.load %arg2[%c1_216, %c2_217, %c0_218, %c0_219] : memref<3x3x128x256xf32, #tpu.memory_space<vmem>>, vector<1x1x128x256xf32>
    %149 = vector.shape_cast %148 : vector<1x1x128x256xf32> to vector<128x256xf32>
    %cst_220 = arith.constant dense<0.000000e+00> : vector<16x256xf32>
    %150 = tpu.matmul %147, %149, %cst_220 {dimension_numbers = #tpu.dot_dimension_numbers<[1], [0], [0], [1], [0, 0, 1, 1], [], []>} : vector<16x128xf32>, vector<128x256xf32>, vector<16x256xf32> -> vector<16x256xf32>
    %151 = arith.addf %145, %150 : vector<16x256xf32>
    %c0_221 = arith.constant 0 : index
    %c4 = arith.constant 4 : index
    %c0_222 = arith.constant 0 : index
    %c0_223 = arith.constant 0 : index
    %152 = vector.load %arg1[%c0_221, %c4, %c0_222, %c0_223] : memref<1x6x18x128xf32, #tpu.memory_space<vmem>>, vector<1x1x16x128xf32>
    %153 = vector.shape_cast %152 : vector<1x1x16x128xf32> to vector<16x128xf32>
    %c2_224 = arith.constant 2 : index
    %c0_225 = arith.constant 0 : index
    %c0_226 = arith.constant 0 : index
    %c0_227 = arith.constant 0 : index
    %154 = vector.load %arg2[%c2_224, %c0_225, %c0_226, %c0_227] : memref<3x3x128x256xf32, #tpu.memory_space<vmem>>, vector<1x1x128x256xf32>
    %155 = vector.shape_cast %154 : vector<1x1x128x256xf32> to vector<128x256xf32>
    %cst_228 = arith.constant dense<0.000000e+00> : vector<16x256xf32>
    %156 = tpu.matmul %153, %155, %cst_228 {dimension_numbers = #tpu.dot_dimension_numbers<[1], [0], [0], [1], [0, 0, 1, 1], [], []>} : vector<16x128xf32>, vector<128x256xf32>, vector<16x256xf32> -> vector<16x256xf32>
    %157 = arith.addf %151, %156 : vector<16x256xf32>
    %c0_229 = arith.constant 0 : index
    %c4_230 = arith.constant 4 : index
    %c1_231 = arith.constant 1 : index
    %c0_232 = arith.constant 0 : index
    %158 = vector.load %arg1[%c0_229, %c4_230, %c1_231, %c0_232] : memref<1x6x18x128xf32, #tpu.memory_space<vmem>>, vector<1x1x16x128xf32>
    %159 = vector.shape_cast %158 : vector<1x1x16x128xf32> to vector<16x128xf32>
    %c2_233 = arith.constant 2 : index
    %c1_234 = arith.constant 1 : index
    %c0_235 = arith.constant 0 : index
    %c0_236 = arith.constant 0 : index
    %160 = vector.load %arg2[%c2_233, %c1_234, %c0_235, %c0_236] : memref<3x3x128x256xf32, #tpu.memory_space<vmem>>, vector<1x1x128x256xf32>
    %161 = vector.shape_cast %160 : vector<1x1x128x256xf32> to vector<128x256xf32>
    %cst_237 = arith.constant dense<0.000000e+00> : vector<16x256xf32>
    %162 = tpu.matmul %159, %161, %cst_237 {dimension_numbers = #tpu.dot_dimension_numbers<[1], [0], [0], [1], [0, 0, 1, 1], [], []>} : vector<16x128xf32>, vector<128x256xf32>, vector<16x256xf32> -> vector<16x256xf32>
    %163 = arith.addf %157, %162 : vector<16x256xf32>
    %c0_238 = arith.constant 0 : index
    %c4_239 = arith.constant 4 : index
    %c2_240 = arith.constant 2 : index
    %c0_241 = arith.constant 0 : index
    %164 = vector.load %arg1[%c0_238, %c4_239, %c2_240, %c0_241] : memref<1x6x18x128xf32, #tpu.memory_space<vmem>>, vector<1x1x16x128xf32>
    %165 = vector.shape_cast %164 : vector<1x1x16x128xf32> to vector<16x128xf32>
    %c2_242 = arith.constant 2 : index
    %c2_243 = arith.constant 2 : index
    %c0_244 = arith.constant 0 : index
    %c0_245 = arith.constant 0 : index
    %166 = vector.load %arg2[%c2_242, %c2_243, %c0_244, %c0_245] : memref<3x3x128x256xf32, #tpu.memory_space<vmem>>, vector<1x1x128x256xf32>
    %167 = vector.shape_cast %166 : vector<1x1x128x256xf32> to vector<128x256xf32>
    %cst_246 = arith.constant dense<0.000000e+00> : vector<16x256xf32>
    %168 = tpu.matmul %165, %167, %cst_246 {dimension_numbers = #tpu.dot_dimension_numbers<[1], [0], [0], [1], [0, 0, 1, 1], [], []>} : vector<16x128xf32>, vector<128x256xf32>, vector<16x256xf32> -> vector<16x256xf32>
    %169 = arith.addf %163, %168 : vector<16x256xf32>
    %170 = vector.broadcast %0 : vector<1x256xf32> to vector<16x256xf32>
    %171 = arith.addf %169, %170 : vector<16x256xf32>
    %c0_247 = arith.constant 0 : index
    %c2_248 = arith.constant 2 : index
    %c0_249 = arith.constant 0 : index
    %c0_250 = arith.constant 0 : index
    %172 = vector.load %arg4[%c0_247, %c2_248, %c0_249, %c0_250] : memref<1x4x16x256xf32, #tpu.memory_space<vmem>>, vector<1x1x16x256xf32>
    %173 = vector.shape_cast %172 : vector<1x1x16x256xf32> to vector<16x256xf32>
    %174 = vector.shape_cast %171 : vector<16x256xf32> to vector<1x1x16x256xf32>
    tpu.vector_store %arg4[%c0_247, %c2_248, %c0_249, %c0_250], %174 {strides = array<i32>} : memref<1x4x16x256xf32, #tpu.memory_space<vmem>>, vector<1x1x16x256xf32>,
    %c0_251 = arith.constant 0 : index
    %c3_252 = arith.constant 3 : index
    %c0_253 = arith.constant 0 : index
    %c0_254 = arith.constant 0 : index
    %175 = vector.load %arg1[%c0_251, %c3_252, %c0_253, %c0_254] : memref<1x6x18x128xf32, #tpu.memory_space<vmem>>, vector<1x1x16x128xf32>
    %176 = vector.shape_cast %175 : vector<1x1x16x128xf32> to vector<16x128xf32>
    %c0_255 = arith.constant 0 : index
    %c0_256 = arith.constant 0 : index
    %c0_257 = arith.constant 0 : index
    %c0_258 = arith.constant 0 : index
    %177 = vector.load %arg2[%c0_255, %c0_256, %c0_257, %c0_258] : memref<3x3x128x256xf32, #tpu.memory_space<vmem>>, vector<1x1x128x256xf32>
    %178 = vector.shape_cast %177 : vector<1x1x128x256xf32> to vector<128x256xf32>
    %cst_259 = arith.constant dense<0.000000e+00> : vector<16x256xf32>
    %179 = tpu.matmul %176, %178, %cst_259 {dimension_numbers = #tpu.dot_dimension_numbers<[1], [0], [0], [1], [0, 0, 1, 1], [], []>} : vector<16x128xf32>, vector<128x256xf32>, vector<16x256xf32> -> vector<16x256xf32>
    %c0_260 = arith.constant 0 : index
    %c3_261 = arith.constant 3 : index
    %c1_262 = arith.constant 1 : index
    %c0_263 = arith.constant 0 : index
    %180 = vector.load %arg1[%c0_260, %c3_261, %c1_262, %c0_263] : memref<1x6x18x128xf32, #tpu.memory_space<vmem>>, vector<1x1x16x128xf32>
    %181 = vector.shape_cast %180 : vector<1x1x16x128xf32> to vector<16x128xf32>
    %c0_264 = arith.constant 0 : index
    %c1_265 = arith.constant 1 : index
    %c0_266 = arith.constant 0 : index
    %c0_267 = arith.constant 0 : index
    %182 = vector.load %arg2[%c0_264, %c1_265, %c0_266, %c0_267] : memref<3x3x128x256xf32, #tpu.memory_space<vmem>>, vector<1x1x128x256xf32>
    %183 = vector.shape_cast %182 : vector<1x1x128x256xf32> to vector<128x256xf32>
    %cst_268 = arith.constant dense<0.000000e+00> : vector<16x256xf32>
    %184 = tpu.matmul %181, %183, %cst_268 {dimension_numbers = #tpu.dot_dimension_numbers<[1], [0], [0], [1], [0, 0, 1, 1], [], []>} : vector<16x128xf32>, vector<128x256xf32>, vector<16x256xf32> -> vector<16x256xf32>
    %185 = arith.addf %179, %184 : vector<16x256xf32>
    %c0_269 = arith.constant 0 : index
    %c3_270 = arith.constant 3 : index
    %c2_271 = arith.constant 2 : index
    %c0_272 = arith.constant 0 : index
    %186 = vector.load %arg1[%c0_269, %c3_270, %c2_271, %c0_272] : memref<1x6x18x128xf32, #tpu.memory_space<vmem>>, vector<1x1x16x128xf32>
    %187 = vector.shape_cast %186 : vector<1x1x16x128xf32> to vector<16x128xf32>
    %c0_273 = arith.constant 0 : index
    %c2_274 = arith.constant 2 : index
    %c0_275 = arith.constant 0 : index
    %c0_276 = arith.constant 0 : index
    %188 = vector.load %arg2[%c0_273, %c2_274, %c0_275, %c0_276] : memref<3x3x128x256xf32, #tpu.memory_space<vmem>>, vector<1x1x128x256xf32>
    %189 = vector.shape_cast %188 : vector<1x1x128x256xf32> to vector<128x256xf32>
    %cst_277 = arith.constant dense<0.000000e+00> : vector<16x256xf32>
    %190 = tpu.matmul %187, %189, %cst_277 {dimension_numbers = #tpu.dot_dimension_numbers<[1], [0], [0], [1], [0, 0, 1, 1], [], []>} : vector<16x128xf32>, vector<128x256xf32>, vector<16x256xf32> -> vector<16x256xf32>
    %191 = arith.addf %185, %190 : vector<16x256xf32>
    %c0_278 = arith.constant 0 : index
    %c4_279 = arith.constant 4 : index
    %c0_280 = arith.constant 0 : index
    %c0_281 = arith.constant 0 : index
    %192 = vector.load %arg1[%c0_278, %c4_279, %c0_280, %c0_281] : memref<1x6x18x128xf32, #tpu.memory_space<vmem>>, vector<1x1x16x128xf32>
    %193 = vector.shape_cast %192 : vector<1x1x16x128xf32> to vector<16x128xf32>
    %c1_282 = arith.constant 1 : index
    %c0_283 = arith.constant 0 : index
    %c0_284 = arith.constant 0 : index
    %c0_285 = arith.constant 0 : index
    %194 = vector.load %arg2[%c1_282, %c0_283, %c0_284, %c0_285] : memref<3x3x128x256xf32, #tpu.memory_space<vmem>>, vector<1x1x128x256xf32>
    %195 = vector.shape_cast %194 : vector<1x1x128x256xf32> to vector<128x256xf32>
    %cst_286 = arith.constant dense<0.000000e+00> : vector<16x256xf32>
    %196 = tpu.matmul %193, %195, %cst_286 {dimension_numbers = #tpu.dot_dimension_numbers<[1], [0], [0], [1], [0, 0, 1, 1], [], []>} : vector<16x128xf32>, vector<128x256xf32>, vector<16x256xf32> -> vector<16x256xf32>
    %197 = arith.addf %191, %196 : vector<16x256xf32>
    %c0_287 = arith.constant 0 : index
    %c4_288 = arith.constant 4 : index
    %c1_289 = arith.constant 1 : index
    %c0_290 = arith.constant 0 : index
    %198 = vector.load %arg1[%c0_287, %c4_288, %c1_289, %c0_290] : memref<1x6x18x128xf32, #tpu.memory_space<vmem>>, vector<1x1x16x128xf32>
    %199 = vector.shape_cast %198 : vector<1x1x16x128xf32> to vector<16x128xf32>
    %c1_291 = arith.constant 1 : index
    %c1_292 = arith.constant 1 : index
    %c0_293 = arith.constant 0 : index
    %c0_294 = arith.constant 0 : index
    %200 = vector.load %arg2[%c1_291, %c1_292, %c0_293, %c0_294] : memref<3x3x128x256xf32, #tpu.memory_space<vmem>>, vector<1x1x128x256xf32>
    %201 = vector.shape_cast %200 : vector<1x1x128x256xf32> to vector<128x256xf32>
    %cst_295 = arith.constant dense<0.000000e+00> : vector<16x256xf32>
    %202 = tpu.matmul %199, %201, %cst_295 {dimension_numbers = #tpu.dot_dimension_numbers<[1], [0], [0], [1], [0, 0, 1, 1], [], []>} : vector<16x128xf32>, vector<128x256xf32>, vector<16x256xf32> -> vector<16x256xf32>
    %203 = arith.addf %197, %202 : vector<16x256xf32>
    %c0_296 = arith.constant 0 : index
    %c4_297 = arith.constant 4 : index
    %c2_298 = arith.constant 2 : index
    %c0_299 = arith.constant 0 : index
    %204 = vector.load %arg1[%c0_296, %c4_297, %c2_298, %c0_299] : memref<1x6x18x128xf32, #tpu.memory_space<vmem>>, vector<1x1x16x128xf32>
    %205 = vector.shape_cast %204 : vector<1x1x16x128xf32> to vector<16x128xf32>
    %c1_300 = arith.constant 1 : index
    %c2_301 = arith.constant 2 : index
    %c0_302 = arith.constant 0 : index
    %c0_303 = arith.constant 0 : index
    %206 = vector.load %arg2[%c1_300, %c2_301, %c0_302, %c0_303] : memref<3x3x128x256xf32, #tpu.memory_space<vmem>>, vector<1x1x128x256xf32>
    %207 = vector.shape_cast %206 : vector<1x1x128x256xf32> to vector<128x256xf32>
    %cst_304 = arith.constant dense<0.000000e+00> : vector<16x256xf32>
    %208 = tpu.matmul %205, %207, %cst_304 {dimension_numbers = #tpu.dot_dimension_numbers<[1], [0], [0], [1], [0, 0, 1, 1], [], []>} : vector<16x128xf32>, vector<128x256xf32>, vector<16x256xf32> -> vector<16x256xf32>
    %209 = arith.addf %203, %208 : vector<16x256xf32>
    %c0_305 = arith.constant 0 : index
    %c5 = arith.constant 5 : index
    %c0_306 = arith.constant 0 : index
    %c0_307 = arith.constant 0 : index
    %210 = vector.load %arg1[%c0_305, %c5, %c0_306, %c0_307] : memref<1x6x18x128xf32, #tpu.memory_space<vmem>>, vector<1x1x16x128xf32>
    %211 = vector.shape_cast %210 : vector<1x1x16x128xf32> to vector<16x128xf32>
    %c2_308 = arith.constant 2 : index
    %c0_309 = arith.constant 0 : index
    %c0_310 = arith.constant 0 : index
    %c0_311 = arith.constant 0 : index
    %212 = vector.load %arg2[%c2_308, %c0_309, %c0_310, %c0_311] : memref<3x3x128x256xf32, #tpu.memory_space<vmem>>, vector<1x1x128x256xf32>
    %213 = vector.shape_cast %212 : vector<1x1x128x256xf32> to vector<128x256xf32>
    %cst_312 = arith.constant dense<0.000000e+00> : vector<16x256xf32>
    %214 = tpu.matmul %211, %213, %cst_312 {dimension_numbers = #tpu.dot_dimension_numbers<[1], [0], [0], [1], [0, 0, 1, 1], [], []>} : vector<16x128xf32>, vector<128x256xf32>, vector<16x256xf32> -> vector<16x256xf32>
    %215 = arith.addf %209, %214 : vector<16x256xf32>
    %c0_313 = arith.constant 0 : index
    %c5_314 = arith.constant 5 : index
    %c1_315 = arith.constant 1 : index
    %c0_316 = arith.constant 0 : index
    %216 = vector.load %arg1[%c0_313, %c5_314, %c1_315, %c0_316] : memref<1x6x18x128xf32, #tpu.memory_space<vmem>>, vector<1x1x16x128xf32>
    %217 = vector.shape_cast %216 : vector<1x1x16x128xf32> to vector<16x128xf32>
    %c2_317 = arith.constant 2 : index
    %c1_318 = arith.constant 1 : index
    %c0_319 = arith.constant 0 : index
    %c0_320 = arith.constant 0 : index
    %218 = vector.load %arg2[%c2_317, %c1_318, %c0_319, %c0_320] : memref<3x3x128x256xf32, #tpu.memory_space<vmem>>, vector<1x1x128x256xf32>
    %219 = vector.shape_cast %218 : vector<1x1x128x256xf32> to vector<128x256xf32>
    %cst_321 = arith.constant dense<0.000000e+00> : vector<16x256xf32>
    %220 = tpu.matmul %217, %219, %cst_321 {dimension_numbers = #tpu.dot_dimension_numbers<[1], [0], [0], [1], [0, 0, 1, 1], [], []>} : vector<16x128xf32>, vector<128x256xf32>, vector<16x256xf32> -> vector<16x256xf32>
    %221 = arith.addf %215, %220 : vector<16x256xf32>
    %c0_322 = arith.constant 0 : index
    %c5_323 = arith.constant 5 : index
    %c2_324 = arith.constant 2 : index
    %c0_325 = arith.constant 0 : index
    %222 = vector.load %arg1[%c0_322, %c5_323, %c2_324, %c0_325] : memref<1x6x18x128xf32, #tpu.memory_space<vmem>>, vector<1x1x16x128xf32>
    %223 = vector.shape_cast %222 : vector<1x1x16x128xf32> to vector<16x128xf32>
    %c2_326 = arith.constant 2 : index
    %c2_327 = arith.constant 2 : index
    %c0_328 = arith.constant 0 : index
    %c0_329 = arith.constant 0 : index
    %224 = vector.load %arg2[%c2_326, %c2_327, %c0_328, %c0_329] : memref<3x3x128x256xf32, #tpu.memory_space<vmem>>, vector<1x1x128x256xf32>
    %225 = vector.shape_cast %224 : vector<1x1x128x256xf32> to vector<128x256xf32>
    %cst_330 = arith.constant dense<0.000000e+00> : vector<16x256xf32>
    %226 = tpu.matmul %223, %225, %cst_330 {dimension_numbers = #tpu.dot_dimension_numbers<[1], [0], [0], [1], [0, 0, 1, 1], [], []>} : vector<16x128xf32>, vector<128x256xf32>, vector<16x256xf32> -> vector<16x256xf32>
    %227 = arith.addf %221, %226 : vector<16x256xf32>
    %228 = vector.broadcast %0 : vector<1x256xf32> to vector<16x256xf32>
    %229 = arith.addf %227, %228 : vector<16x256xf32>
    %c0_331 = arith.constant 0 : index
    %c3_332 = arith.constant 3 : index
    %c0_333 = arith.constant 0 : index
    %c0_334 = arith.constant 0 : index
    %230 = vector.load %arg4[%c0_331, %c3_332, %c0_333, %c0_334] : memref<1x4x16x256xf32, #tpu.memory_space<vmem>>, vector<1x1x16x256xf32>
    %231 = vector.shape_cast %230 : vector<1x1x16x256xf32> to vector<16x256xf32>
    %232 = vector.shape_cast %229 : vector<16x256xf32> to vector<1x1x16x256xf32>
    tpu.vector_store %arg4[%c0_331, %c3_332, %c0_333, %c0_334], %232 {strides = array<i32>} : memref<1x4x16x256xf32, #tpu.memory_space<vmem>>, vector<1x1x16x256xf32>,
    return
  }
  func.func @transform_0(%arg0: i32) -> (i32, i32, i32, i32) {
    %c0_i32 = arith.constant 0 : i32
    %c0_i32_0 = arith.constant 0 : i32
    %c0_i32_1 = arith.constant 0 : i32
    %c0_i32_2 = arith.constant 0 : i32
    return %arg0, %c0_i32, %c0_i32_0, %c0_i32_1 : i32, i32, i32, i32
  }
  func.func @transform_1(%arg0: i32) -> (i32, i32, i32, i32) {
    %c0_i32 = arith.constant 0 : i32
    %c0_i32_0 = arith.constant 0 : i32
    %c0_i32_1 = arith.constant 0 : i32
    %c0_i32_2 = arith.constant 0 : i32
    %c0_i32_3 = arith.constant 0 : i32
    return %c0_i32, %c0_i32_0, %c0_i32_1, %c0_i32_2 : i32, i32, i32, i32
  }
  func.func @transform_2(%arg0: i32) -> (i32, i32) {
    %c0_i32 = arith.constant 0 : i32
    %c0_i32_0 = arith.constant 0 : i32
    %c0_i32_1 = arith.constant 0 : i32
    return %c0_i32, %c0_i32_0 : i32, i32
  }
  func.func @transform_3(%arg0: i32) -> (i32, i32, i32, i32) {
    %c0_i32 = arith.constant 0 : i32
    %c0_i32_0 = arith.constant 0 : i32
    %c0_i32_1 = arith.constant 0 : i32
    %c0_i32_2 = arith.constant 0 : i32
    return %arg0, %c0_i32, %c0_i32_0, %c0_i32_1 : i32, i32, i32, i32
  }
}

</mosaic_0001>

<llo_original>
// kernel: tile.8
$region0: #{tile.8}
  #allocation0 [shape = 's32[1]{0}', space=sflag, size = 0x4, scoped, tag = 'scoped memory for tile.8']
  %s0 = inlined_call_operand.vmem [shape: f32[16], index: 0, kind: input, shape index: {}]
  %s1 = inlined_call_operand.vmem [shape: f32[16,16], index: 1, kind: output, shape index: {}]
  // Predicated region
  $region2: #{tile.8} parent=0 // pred_check
    _
  $region3: #{tile.8} parent=0 // pred_check_branch
    %3 = sbr.rel (0) target = $region5
  $region4: #{tile.8} parent=0 // pred_region
    _
  $region5: #{tile.8} parent=0 // pred_fallthru
    _
  %v4 = vld [vmem:[%s0] ss:$0 sm:$0xff]
  %5 = vst [vmem:[%s1] sm:$0xff] %v4
  %s6 = scalar_lea.vmem %s1, 8
  %7 = vst [vmem:[%s6] sm:$0xff] %v4

// kernel: tile.9
$region0: #{tile.9}
  %s0 = inlined_call_operand.vmem [shape: f32[16,16], index: 0, kind: input, shape index: {}]
  %s1 = inlined_call_operand.vmem [shape: f32[1,256], index: 1, kind: output, shape index: {}]
  $region1: #{tile.9} parent=0
    #allocation0 [shape = 'u8[8192]{0}', space=vmem, size = 0x2000, scoped, tag = 'scoped mem for output reshape']
    %s2 = smov 3
    %v3 = vld [vmem:[%s0] ss:$8 sm:%s2]
    %vm4 = vcmask 130048
    %5 = vst.msk [vmem:[#allocation0] ss:$8 sm:$0x3] %vm4, %v3
    %s6 = scalar_lea.vmem %s0, 7
    %s7 = smov 3
    %v8 = vld [vmem:[%s6] ss:$8 sm:%s7]
    %9 = vrot.lane.b32.xlu0 %v8, 112
    %v10 = vpop.permute.xlu0 %9
    %vm11 = vcmask 1048448
    %12 = vst.msk [vmem:[#allocation0] ss:$8 sm:$0x3] %vm11, %v10
    %s13 = scalar_lea.vmem %s0, 6
    %s14 = smov 3
    %v15 = vld [vmem:[%s13] ss:$8 sm:%s14]
    %16 = vrot.lane.b32.xlu0 %v15, 96
    %v17 = vpop.permute.xlu0 %16
    %vm18 = vcmask 917248
    %19 = vst.msk [vmem:[#allocation0] ss:$8 sm:$0x3] %vm18, %v17
    %s20 = scalar_lea.vmem %s0, 5
    %s21 = smov 3
    %v22 = vld [vmem:[%s20] ss:$8 sm:%s21]
    %23 = vrot.lane.b32.xlu0 %v22, 80
    %v24 = vpop.permute.xlu0 %23
    %vm25 = vcmask 786048
    %26 = vst.msk [vmem:[#allocation0] ss:$8 sm:$0x3] %vm25, %v24
    %s27 = scalar_lea.vmem %s0, 4
    %s28 = smov 3
    %v29 = vld [vmem:[%s27] ss:$8 sm:%s28]
    %30 = vrot.lane.b32.xlu0 %v29, 64
    %v31 = vpop.permute.xlu0 %30
    %vm32 = vcmask 654848
    %33 = vst.msk [vmem:[#allocation0] ss:$8 sm:$0x3] %vm32, %v31
    %s34 = scalar_lea.vmem %s0, 3
    %s35 = smov 3
    %v36 = vld [vmem:[%s34] ss:$8 sm:%s35]
    %37 = vrot.lane.b32.xlu0 %v36, 48
    %v38 = vpop.permute.xlu0 %37
    %vm39 = vcmask 523648
    %40 = vst.msk [vmem:[#allocation0] ss:$8 sm:$0x3] %vm39, %v38
    %s41 = scalar_lea.vmem %s0, 2
    %s42 = smov 3
    %v43 = vld [vmem:[%s41] ss:$8 sm:%s42]
    %44 = vrot.lane.b32.xlu0 %v43, 32
    %v45 = vpop.permute.xlu0 %44
    %vm46 = vcmask 392448
    %47 = vst.msk [vmem:[#allocation0] ss:$8 sm:$0x3] %vm46, %v45
    %s48 = scalar_lea.vmem %s0, 1
    %s49 = smov 3
    %v50 = vld [vmem:[%s48] ss:$8 sm:%s49]
    %51 = vrot.lane.b32.xlu0 %v50, 16
    %v52 = vpop.permute.xlu0 %51
    %vm53 = vcmask 261248
    %54 = vst.msk [vmem:[#allocation0] ss:$8 sm:$0x3] %vm53, %v52
    %s56 = sshllo.u32 0, 1
    %v58 = vld [vmem:[#allocation0] sm:%s56]
    %s59 = sshllo.u32 0, 1
    %60 = vst [vmem:[%s1] sm:%s59] %v58
    %s61 = scalar_lea.vmem [#allocation0], 8
    %v62 = vld [vmem:[%s61] sm:%s56]
    %s63 = sshllo.u32 0, 1
    %s64 = scalar_lea.vmem %s1, 1
    %65 = vst [vmem:[%s64] sm:%s63] %v62

// kernel: _lambda_.1
$region0: #{_lambda_.1}
  #allocation0 [shape = 'u32[]', space=smem, size = 0x4, offset = 0x4, fixed_abs, tag = 'smem constant byte address 0x4 - core index']
  #allocation1 [shape = 'u32[144,128]{1,0:T(1,128)}', space=vmem, size = 0x12000, scoped, tag = 'internal scratch']
  %s0 = inlined_call_operand.vmem [shape: f32[2,6,18,128], index: 0, kind: input, shape index: {}]
  %s1 = inlined_call_operand.vmem [shape: f32[3,3,128,256], index: 1, kind: input, shape index: {}]
  %s2 = inlined_call_operand.vmem [shape: f32[1,256], index: 2, kind: input, shape index: {}]
  %s3 = inlined_call_operand.vmem [shape: f32[2,4,16,256], index: 3, kind: output, shape index: {}]
  %s4 = sld [smem:[#allocation0]]
  $region45: #{_lambda_.1} parent=0
    _
  %s6 = ssub.s32 1, %s4
  %s7 = scalar_select 0, %s6, %s4
  loop: start=0, step=1, limit=4
  $region2: #{_lambda_.1} parent=0 // loop_pre_header
    _
  $region3: #{_lambda_.1} parent=0 // loop_header
    %s9 = sphi 0, %s13
    %p10 = scmp.ge.s32.totalorder %s9, 4
    %s19 = sphi 0, %s21
    %s22 = sphi 0, %s19
    %s23 = sphi 0, %s22
    %s39 = sphi 0, %s23
    %s43 = sphi 0, %s43
    %s45 = sphi 0, %s43
    %s46 = sphi 0, %s45
    %s60 = sphi 0, %s46
    %s64 = sphi 0, %s64
    %s66 = sphi 0, %s64
    %s67 = sphi 0, %s66
    %s81 = sphi 0, %s67
    %s87 = sphi 0, %s89
    %s90 = sphi 0, %s87
    %s91 = sphi 0, %s90
    %s107 = sphi 0, %s91
  $region4: #{_lambda_.1} parent=0 // loop_header_branch
    %12 = sbr.rel (%p10) target = $region8
  $region5: #{_lambda_.1} parent=0 // loop_body
    %s14 = ssub.s32 %s9, 1
    %s15 = ssub.s32 %s9, 2
    %s16 = sadd.s32 %s9, 1
    %s17 = ssub.s32 %s9, %s16
    %p18 = scmp.eq.s32.totalorder %s17, 0
    %s20 = sadd.s32 %s19, 1
    %s21 = scalar_select %p18, %s19, %s20
    %p24 = pneg %p18
    %p25 = scmp.eq.s32.totalorder %s9, 1
    %p26 = por %p24, %p25
    %p27 = scmp.ne.s32.totalorder %s19, %s22
    %p28 = scmp.eq.s32.totalorder %s9, 0
    %p29 = por %p27, %p28
    %p30 = scmp.ne.s32.totalorder %s19, %s22
    %p31 = scmp.eq.s32.totalorder %s14, 1
    %p32 = por %p30, %p31
    %p33 = scmp.ne.s32.totalorder %s22, %s23
    %p34 = scmp.eq.s32.totalorder %s14, 0
    %p35 = por %p33, %p34
    %p36 = scmp.ne.s32.totalorder %s22, %s23
    %p37 = scmp.eq.s32.totalorder %s15, 1
    %p38 = por %p36, %p37
    %p40 = scmp.ne.s32.totalorder %s23, %s39
    %p41 = scmp.eq.s32.totalorder %s15, 0
    %p42 = por %p40, %p41
    %s44 = sadd.s32 %s43, 1
    %p47 = scmp.eq.s32.totalorder %s9, 1
    %p48 = scmp.ne.s32.totalorder %s43, %s45
    %p49 = scmp.eq.s32.totalorder %s9, 0
    %p50 = por %p48, %p49
    %p51 = scmp.ne.s32.totalorder %s43, %s45
    %p52 = scmp.eq.s32.totalorder %s14, 1
    %p53 = por %p51, %p52
    %p54 = scmp.ne.s32.totalorder %s45, %s46
    %p55 = scmp.eq.s32.totalorder %s14, 0
    %p56 = por %p54, %p55
    %p57 = scmp.ne.s32.totalorder %s45, %s46
    %p58 = scmp.eq.s32.totalorder %s15, 1
    %p59 = por %p57, %p58
    %p61 = scmp.ne.s32.totalorder %s46, %s60
    %p62 = scmp.eq.s32.totalorder %s15, 0
    %p63 = por %p61, %p62
    %s65 = sadd.s32 %s64, 1
    %p68 = scmp.eq.s32.totalorder %s9, 1
    %p69 = scmp.ne.s32.totalorder %s64, %s66
    %p70 = scmp.eq.s32.totalorder %s9, 0
    %p71 = por %p69, %p70
    %p72 = scmp.ne.s32.totalorder %s64, %s66
    %p73 = scmp.eq.s32.totalorder %s14, 1
    %p74 = por %p72, %p73
    %p75 = scmp.ne.s32.totalorder %s66, %s67
    %p76 = scmp.eq.s32.totalorder %s14, 0
    %p77 = por %p75, %p76
    %p78 = scmp.ne.s32.totalorder %s66, %s67
    %p79 = scmp.eq.s32.totalorder %s15, 1
    %p80 = por %p78, %p79
    %p82 = scmp.ne.s32.totalorder %s67, %s81
    %p83 = scmp.eq.s32.totalorder %s15, 0
    %p84 = por %p82, %p83
    %s85 = ssub.s32 %s9, %s16
    %p86 = scmp.eq.s32.totalorder %s85, 0
    %s88 = sadd.s32 %s87, 1
    %s89 = scalar_select %p86, %s87, %s88
    %p92 = pneg %p86
    %p93 = scmp.eq.s32.totalorder %s9, 1
    %p94 = por %p92, %p93
    %p95 = scmp.ne.s32.totalorder %s87, %s90
    %p96 = scmp.eq.s32.totalorder %s9, 0
    %p97 = por %p95, %p96
    %p98 = scmp.ne.s32.totalorder %s87, %s90
    %p99 = scmp.eq.s32.totalorder %s14, 1
    %p100 = por %p98, %p99
    %p101 = scmp.ne.s32.totalorder %s90, %s91
    %p102 = scmp.eq.s32.totalorder %s14, 0
    %p103 = por %p101, %p102
    %p104 = scmp.ne.s32.totalorder %s90, %s91
    %p105 = scmp.eq.s32.totalorder %s15, 1
    %p106 = por %p104, %p105
    %p108 = scmp.ne.s32.totalorder %s91, %s107
    %p109 = scmp.eq.s32.totalorder %s15, 0
    %p110 = por %p108, %p109
    %p111 = scmp.le.s32.totalorder 1, %s9
    %p112 = scmp.lt.s32.totalorder %s9, 3
    %p113 = pnand %p111, %p112
    %p114 = pneg %p113
    // Predicated region
    $region9: #{_lambda_.1} parent=5 // pred_check
      _
    $region10: #{_lambda_.1} parent=5 // pred_check_branch
      %116 = sbr.rel (%p113) target = $region12
    $region11: #{_lambda_.1} parent=5 // pred_region
      %s117 = ssub.s32 %s9, 1
      // Predicated region
      $region13: #{_lambda_.1} parent=11 // pred_check
        %p118 = pneg %p56
      $region14: #{_lambda_.1} parent=11 // pred_check_branch
        %120 = sbr.rel (%p118) target = $region16
      $region15: #{_lambda_.1} parent=11 // pred_region
        _
      $region16: #{_lambda_.1} parent=11 // pred_fallthru
        _
      // Predicated region
      $region17: #{_lambda_.1} parent=11 // pred_check
        %p121 = pneg %p77
      $region18: #{_lambda_.1} parent=11 // pred_check_branch
        %123 = sbr.rel (%p121) target = $region20
      $region19: #{_lambda_.1} parent=11 // pred_region
        _
      $region20: #{_lambda_.1} parent=11 // pred_fallthru
        _
    $region12: #{_lambda_.1} parent=5 // pred_fallthru
      _
    %p124 = scmp.lt.s32.totalorder %s9, 2
    // Predicated region
    $region21: #{_lambda_.1} parent=5 // pred_check
      %p125 = pneg %p124
    $region22: #{_lambda_.1} parent=5 // pred_check_branch
      %127 = sbr.rel (%p125) target = $region24
    $region23: #{_lambda_.1} parent=5 // pred_region
      // Predicated region
      $region25: #{_lambda_.1} parent=23 // pred_check
        %p128 = pneg %p29
      $region26: #{_lambda_.1} parent=23 // pred_check_branch
        %130 = sbr.rel (%p128) target = $region28
      $region27: #{_lambda_.1} parent=23 // pred_region
        %p131 = scmp.lt.s32.totalorder %s9, 1
        %s132 = scalar_select %p131, %s9, 1
        %s133 = smul.addr %s132, 18
        %s134 = smul.addr %s133, 8
        %s135 = scalar_lea.vmem %s0, %s134
      $region28: #{_lambda_.1} parent=23 // pred_fallthru
        _
    $region24: #{_lambda_.1} parent=5 // pred_fallthru
      _
    %p136 = scmp.le.s32.totalorder 1, %s9
    %p137 = scmp.lt.s32.totalorder %s9, 3
    %p138 = pnand %p136, %p137
    %p139 = pneg %p138
    // Predicated region
    $region29: #{_lambda_.1} parent=5 // pred_check
      _
    $region30: #{_lambda_.1} parent=5 // pred_check_branch
      %141 = sbr.rel (%p138) target = $region32
    $region31: #{_lambda_.1} parent=5 // pred_region
      %s142 = ssub.s32 %s9, 1
      %p143 = scmp.lt.s32.totalorder %s14, 1
      %s144 = scalar_select %p143, %s14, 1
      %s145 = smul.addr %s144, 18
      %s146 = smul.addr %s145, 8
      %s147 = scalar_lea.vmem %s0, %s146
      %p148 = pneg %p35
      %p149 = pneg %p32
      %p150 = pneg %p56
      %p151 = pneg %p53
      %p152 = pneg %p77
      %p153 = pneg %p74
      %p154 = pneg %p103
      %p155 = pneg %p100
      %p156 = scmp.lt.s32.totalorder %s14, 1
      %s157 = scalar_select %p156, %s14, 1
      %s158 = smul.addr %s157, 16
      %s159 = smul.addr %s158, 8
      %s160 = scalar_lea.vmem %s3, %s159
      %p161 = scmp.lt.s32.totalorder %s14, 1
      %s162 = scalar_select %p161, %s14, 1
      %s163 = smul.addr %s162, 18
      %s164 = smul.addr %s163, 8
      %s165 = scalar_lea.vmem %s0, %s164
      %p166 = scmp.lt.s32.totalorder %s14, 1
      %s167 = scalar_select %p166, %s14, 1
      %s168 = smul.addr %s167, 16
      %s169 = smul.addr %s168, 8
      %s170 = scalar_lea.vmem %s3, %s169
      %v171 = vld [vmem:[%s2] sm:$0x3]
      %v172 = vld [vmem:[%s165] sm:$0xff]
      %v173 = vld [vmem:[%s165 + $0x8] sm:$0xff]
      %v174 = vld [vmem:[%s1] sm:$0xff]
      %v175 = vld [vmem:[%s1 + $0x8] sm:$0xff]
      %v176 = vld [vmem:[%s1 + $0x10] sm:$0xff]
      %v177 = vld [vmem:[%s1 + $0x18] sm:$0xff]
      %v178 = vld [vmem:[%s1 + $0x20] sm:$0xff]
      %v179 = vld [vmem:[%s1 + $0x28] sm:$0xff]
      %v180 = vld [vmem:[%s1 + $0x30] sm:$0xff]
      %v181 = vld [vmem:[%s1 + $0x38] sm:$0xff]
      %v182 = vld [vmem:[%s1 + $0x40] sm:$0xff]
      %v183 = vld [vmem:[%s1 + $0x48] sm:$0xff]
      %v184 = vld [vmem:[%s1 + $0x50] sm:$0xff]
      %v185 = vld [vmem:[%s1 + $0x58] sm:$0xff]
      %v186 = vld [vmem:[%s1 + $0x60] sm:$0xff]
      %v187 = vld [vmem:[%s1 + $0x68] sm:$0xff]
      %v188 = vld [vmem:[%s1 + $0x70] sm:$0xff]
      %v189 = vld [vmem:[%s1 + $0x78] sm:$0xff]
      %v190 = vld [vmem:[%s1 + $0x80] sm:$0xff]
      %v191 = vld [vmem:[%s1 + $0x88] sm:$0xff]
      %v192 = vld [vmem:[%s1 + $0x90] sm:$0xff]
      %v193 = vld [vmem:[%s1 + $0x98] sm:$0xff]
      %v194 = vld [vmem:[%s1 + $0xa0] sm:$0xff]
      %v195 = vld [vmem:[%s1 + $0xa8] sm:$0xff]
      %v196 = vld [vmem:[%s1 + $0xb0] sm:$0xff]
      %v197 = vld [vmem:[%s1 + $0xb8] sm:$0xff]
      %v198 = vld [vmem:[%s1 + $0xc0] sm:$0xff]
      %v199 = vld [vmem:[%s1 + $0xc8] sm:$0xff]
      %v200 = vld [vmem:[%s1 + $0xd0] sm:$0xff]
      %v201 = vld [vmem:[%s1 + $0xd8] sm:$0xff]
      %v202 = vld [vmem:[%s1 + $0xe0] sm:$0xff]
      %v203 = vld [vmem:[%s1 + $0xe8] sm:$0xff]
      %v204 = vld [vmem:[%s1 + $0xf0] sm:$0xff]
      %v205 = vld [vmem:[%s1 + $0xf8] sm:$0xff]
      %v206 = vld [vmem:[%s165 + $0x1] sm:$0xff]
      %v207 = vld [vmem:[%s165 + $0x9] sm:$0xff]
      %s208 = scalar_lea.vmem %s1, 256
      %v209 = vld [vmem:[%s208] sm:$0xff]
      %v210 = vld [vmem:[%s208 + $0x8] sm:$0xff]
      %v211 = vld [vmem:[%s208 + $0x10] sm:$0xff]
      %v212 = vld [vmem:[%s208 + $0x18] sm:$0xff]
      %v213 = vld [vmem:[%s208 + $0x20] sm:$0xff]
      %v214 = vld [vmem:[%s208 + $0x28] sm:$0xff]
      %v215 = vld [vmem:[%s208 + $0x30] sm:$0xff]
      %v216 = vld [vmem:[%s208 + $0x38] sm:$0xff]
      %v217 = vld [vmem:[%s208 + $0x40] sm:$0xff]
      %v218 = vld [vmem:[%s208 + $0x48] sm:$0xff]
      %v219 = vld [vmem:[%s208 + $0x50] sm:$0xff]
      %v220 = vld [vmem:[%s208 + $0x58] sm:$0xff]
      %v221 = vld [vmem:[%s208 + $0x60] sm:$0xff]
      %v222 = vld [vmem:[%s208 + $0x68] sm:$0xff]
      %v223 = vld [vmem:[%s208 + $0x70] sm:$0xff]
      %v224 = vld [vmem:[%s208 + $0x78] sm:$0xff]
      %v225 = vld [vmem:[%s208 + $0x80] sm:$0xff]
      %v226 = vld [vmem:[%s208 + $0x88] sm:$0xff]
      %v227 = vld [vmem:[%s208 + $0x90] sm:$0xff]
      %v228 = vld [vmem:[%s208 + $0x98] sm:$0xff]
      %v229 = vld [vmem:[%s208 + $0xa0] sm:$0xff]
      %v230 = vld [vmem:[%s208 + $0xa8] sm:$0xff]
      %v231 = vld [vmem:[%s208 + $0xb0] sm:$0xff]
      %v232 = vld [vmem:[%s208 + $0xb8] sm:$0xff]
      %v233 = vld [vmem:[%s208 + $0xc0] sm:$0xff]
      %v234 = vld [vmem:[%s208 + $0xc8] sm:$0xff]
      %v235 = vld [vmem:[%s208 + $0xd0] sm:$0xff]
      %v236 = vld [vmem:[%s208 + $0xd8] sm:$0xff]
      %v237 = vld [vmem:[%s208 + $0xe0] sm:$0xff]
      %v238 = vld [vmem:[%s208 + $0xe8] sm:$0xff]
      %v239 = vld [vmem:[%s208 + $0xf0] sm:$0xff]
      %v240 = vld [vmem:[%s208 + $0xf8] sm:$0xff]
      %241 = vmatprep.subr.mxu0 %v210
      %242 = vmatpush1.msra.mxu0 %v209
      %243 = vmatprep.subr.mxu0 %v212
      %244 = vmatpush1.msra.mxu0 %v211
      %245 = vmatprep.subr.mxu0 %v214
      %246 = vmatpush1.msra.mxu0 %v213
      %247 = vmatprep.subr.mxu0 %v216
      %248 = vmatpush1.msra.mxu0 %v215
      %249 = vmatprep.subr.mxu0 %v218
      %250 = vmatpush1.msra.mxu0 %v217
      %251 = vmatprep.subr.mxu0 %v220
      %252 = vmatpush1.msra.mxu0 %v219
      %253 = vmatprep.subr.mxu0 %v222
      %254 = vmatpush1.msra.mxu0 %v221
      %255 = vmatprep.subr.mxu0 %v224
      %256 = vmatpush1.msra.mxu0 %v223
      %257 = vmatprep.subr.mxu0 %v226
      %258 = vmatpush1.msra.mxu0 %v225
      %259 = vmatprep.subr.mxu0 %v228
      %260 = vmatpush1.msra.mxu0 %v227
      %261 = vmatprep.subr.mxu0 %v230
      %262 = vmatpush1.msra.mxu0 %v229
      %263 = vmatprep.subr.mxu0 %v232
      %264 = vmatpush1.msra.mxu0 %v231
      %265 = vmatprep.subr.mxu0 %v234
      %266 = vmatpush1.msra.mxu0 %v233
      %267 = vmatprep.subr.mxu0 %v236
      %268 = vmatpush1.msra.mxu0 %v235
      %269 = vmatprep.subr.mxu0 %v238
      %270 = vmatpush1.msra.mxu0 %v237
      %271 = vmatprep.subr.mxu0 %v240
      %272 = vmatpush1.msra.mxu0 %v239
      %273 = vmatprep.subr.mxu0 0.0
      %274 = vmatpush1.msra.mxu0 0.0
      %275 = vmatprep.subr.mxu0 0.0
      %276 = vmatpush1.msra.mxu0 0.0
      %277 = vmatprep.subr.mxu0 0.0
      %278 = vmatpush1.msra.mxu0 0.0
      %279 = vmatprep.subr.mxu0 0.0
      %280 = vmatpush1.msra.mxu0 0.0
      %281 = vmatprep.subr.mxu0 0.0
      %282 = vmatpush1.msra.mxu0 0.0
      %283 = vmatprep.subr.mxu0 0.0
      %284 = vmatpush1.msra.mxu0 0.0
      %285 = vmatprep.subr.mxu0 0.0
      %286 = vmatpush1.msra.mxu0 0.0
      %287 = vmatprep.subr.mxu0 0.0
      %288 = vmatpush1.msra.mxu0 0.0
      %289 = vmatprep.subr.mxu0 0.0
      %290 = vmatpush1.msra.mxu0 0.0
      %291 = vmatprep.subr.mxu0 0.0
      %292 = vmatpush1.msra.mxu0 0.0
      %293 = vmatprep.subr.mxu0 0.0
      %294 = vmatpush1.msra.mxu0 0.0
      %295 = vmatprep.subr.mxu0 0.0
      %296 = vmatpush1.msra.mxu0 0.0
      %297 = vmatprep.subr.mxu0 0.0
      %298 = vmatpush1.msra.mxu0 0.0
      %299 = vmatprep.subr.mxu0 0.0
      %300 = vmatpush1.msra.mxu0 0.0
      %301 = vmatprep.subr.mxu0 0.0
      %302 = vmatpush1.msra.mxu0 0.0
      %303 = vmatprep.subr.mxu0 0.0
      %304 = vmatpush1.msra.mxu0 0.0
      %305 = vmatprep.mubr.f32.mxu0 0.0
      %306 = vmatmul.mubr.f32.gmra.mrb[0].mxu0 %v206
      %v307 = vpop.f32.mrb[0].mxu0
      %v308 = vadd.f32 0.0, %v307
      %v309 = vpop.f32.mrb[0].mxu0
      %v310 = vadd.f32 0.0, %v309
      %311 = vmatprep.mubr.f32.mxu0 0.0
      %312 = vmatmul.mubr.f32.gmra.mrb[0].mxu0 %v207
      %v313 = vpop.f32.mrb[0].mxu0
      %v314 = vadd.f32 0.0, %v313
      %v315 = vpop.f32.mrb[0].mxu0
      %v316 = vadd.f32 0.0, %v315
      %317 = vdwg.mxu0
      %318 = vmatprep.subr.mxu0 %v175
      %319 = vmatpush1.msra.mxu0 %v174
      %320 = vmatprep.subr.mxu0 %v177
      %321 = vmatpush1.msra.mxu0 %v176
      %322 = vmatprep.subr.mxu0 %v179
      %323 = vmatpush1.msra.mxu0 %v178
      %324 = vmatprep.subr.mxu0 %v181
      %325 = vmatpush1.msra.mxu0 %v180
      %326 = vmatprep.subr.mxu0 %v183
      %327 = vmatpush1.msra.mxu0 %v182
      %328 = vmatprep.subr.mxu0 %v185
      %329 = vmatpush1.msra.mxu0 %v184
      %330 = vmatprep.subr.mxu0 %v187
      %331 = vmatpush1.msra.mxu0 %v186
      %332 = vmatprep.subr.mxu0 %v189
      %333 = vmatpush1.msra.mxu0 %v188
      %334 = vmatprep.subr.mxu0 %v191
      %335 = vmatpush1.msra.mxu0 %v190
      %336 = vmatprep.subr.mxu0 %v193
      %337 = vmatpush1.msra.mxu0 %v192
      %338 = vmatprep.subr.mxu0 %v195
      %339 = vmatpush1.msra.mxu0 %v194
      %340 = vmatprep.subr.mxu0 %v197
      %341 = vmatpush1.msra.mxu0 %v196
      %342 = vmatprep.subr.mxu0 %v199
      %343 = vmatpush1.msra.mxu0 %v198
      %344 = vmatprep.subr.mxu0 %v201
      %345 = vmatpush1.msra.mxu0 %v200
      %346 = vmatprep.subr.mxu0 %v203
      %347 = vmatpush1.msra.mxu0 %v202
      %348 = vmatprep.subr.mxu0 %v205
      %349 = vmatpush1.msra.mxu0 %v204
      %350 = vmatprep.subr.mxu0 0.0
      %351 = vmatpush1.msra.mxu0 0.0
      %352 = vmatprep.subr.mxu0 0.0
      %353 = vmatpush1.msra.mxu0 0.0
      %354 = vmatprep.subr.mxu0 0.0
      %355 = vmatpush1.msra.mxu0 0.0
      %356 = vmatprep.subr.mxu0 0.0
      %357 = vmatpush1.msra.mxu0 0.0
      %358 = vmatprep.subr.mxu0 0.0
      %359 = vmatpush1.msra.mxu0 0.0
      %360 = vmatprep.subr.mxu0 0.0
      %361 = vmatpush1.msra.mxu0 0.0
      %362 = vmatprep.subr.mxu0 0.0
      %363 = vmatpush1.msra.mxu0 0.0
      %364 = vmatprep.subr.mxu0 0.0
      %365 = vmatpush1.msra.mxu0 0.0
      %366 = vmatprep.subr.mxu0 0.0
      %367 = vmatpush1.msra.mxu0 0.0
      %368 = vmatprep.subr.mxu0 0.0
      %369 = vmatpush1.msra.mxu0 0.0
      %370 = vmatprep.subr.mxu0 0.0
      %371 = vmatpush1.msra.mxu0 0.0
      %372 = vmatprep.subr.mxu0 0.0
      %373 = vmatpush1.msra.mxu0 0.0
      %374 = vmatprep.subr.mxu0 0.0
      %375 = vmatpush1.msra.mxu0 0.0
      %376 = vmatprep.subr.mxu0 0.0
      %377 = vmatpush1.msra.mxu0 0.0
      %378 = vmatprep.subr.mxu0 0.0
      %379 = vmatpush1.msra.mxu0 0.0
      %380 = vmatprep.subr.mxu0 0.0
      %381 = vmatpush1.msra.mxu0 0.0
      %382 = vmatprep.mubr.f32.mxu0 0.0
      %383 = vmatmul.mubr.f32.gmra.mrb[0].mxu0 %v172
      %v384 = vpop.f32.mrb[0].mxu0
      %v385 = vadd.f32 %v308, %v384
      %v386 = vpop.f32.mrb[0].mxu0
      %v387 = vadd.f32 %v310, %v386
      %388 = vmatprep.mubr.f32.mxu0 0.0
      %389 = vmatmul.mubr.f32.gmra.mrb[0].mxu0 %v173
      %v390 = vpop.f32.mrb[0].mxu0
      %v391 = vadd.f32 %v314, %v390
      %v392 = vpop.f32.mrb[0].mxu0
      %v393 = vadd.f32 %v316, %v392
      %394 = vdwg.mxu0
      %v395 = vld [vmem:[%s165 + $0x2] sm:$0xff]
      %v396 = vld [vmem:[%s165 + $0xa] sm:$0xff]
      %s397 = scalar_lea.vmem %s1, 512
      %v398 = vld [vmem:[%s397] sm:$0xff]
      %v399 = vld [vmem:[%s397 + $0x8] sm:$0xff]
      %v400 = vld [vmem:[%s397 + $0x10] sm:$0xff]
      %v401 = vld [vmem:[%s397 + $0x18] sm:$0xff]
      %v402 = vld [vmem:[%s397 + $0x20] sm:$0xff]
      %v403 = vld [vmem:[%s397 + $0x28] sm:$0xff]
      %v404 = vld [vmem:[%s397 + $0x30] sm:$0xff]
      %v405 = vld [vmem:[%s397 + $0x38] sm:$0xff]
      %v406 = vld [vmem:[%s397 + $0x40] sm:$0xff]
      %v407 = vld [vmem:[%s397 + $0x48] sm:$0xff]
      %v408 = vld [vmem:[%s397 + $0x50] sm:$0xff]
      %v409 = vld [vmem:[%s397 + $0x58] sm:$0xff]
      %v410 = vld [vmem:[%s397 + $0x60] sm:$0xff]
      %v411 = vld [vmem:[%s397 + $0x68] sm:$0xff]
      %v412 = vld [vmem:[%s397 + $0x70] sm:$0xff]
      %v413 = vld [vmem:[%s397 + $0x78] sm:$0xff]
      %v414 = vld [vmem:[%s397 + $0x80] sm:$0xff]
      %v415 = vld [vmem:[%s397 + $0x88] sm:$0xff]
      %v416 = vld [vmem:[%s397 + $0x90] sm:$0xff]
      %v417 = vld [vmem:[%s397 + $0x98] sm:$0xff]
      %v418 = vld [vmem:[%s397 + $0xa0] sm:$0xff]
      %v419 = vld [vmem:[%s397 + $0xa8] sm:$0xff]
      %v420 = vld [vmem:[%s397 + $0xb0] sm:$0xff]
      %v421 = vld [vmem:[%s397 + $0xb8] sm:$0xff]
      %v422 = vld [vmem:[%s397 + $0xc0] sm:$0xff]
      %v423 = vld [vmem:[%s397 + $0xc8] sm:$0xff]
      %v424 = vld [vmem:[%s397 + $0xd0] sm:$0xff]
      %v425 = vld [vmem:[%s397 + $0xd8] sm:$0xff]
      %v426 = vld [vmem:[%s397 + $0xe0] sm:$0xff]
      %v427 = vld [vmem:[%s397 + $0xe8] sm:$0xff]
      %v428 = vld [vmem:[%s397 + $0xf0] sm:$0xff]
      %v429 = vld [vmem:[%s397 + $0xf8] sm:$0xff]
      %430 = vmatprep.subr.mxu0 %v399
      %431 = vmatpush1.msra.mxu0 %v398
      %432 = vmatprep.subr.mxu0 %v401
      %433 = vmatpush1.msra.mxu0 %v400
      %434 = vmatprep.subr.mxu0 %v403
      %435 = vmatpush1.msra.mxu0 %v402
      %436 = vmatprep.subr.mxu0 %v405
      %437 = vmatpush1.msra.mxu0 %v404
      %438 = vmatprep.subr.mxu0 %v407
      %439 = vmatpush1.msra.mxu0 %v406
      %440 = vmatprep.subr.mxu0 %v409
      %441 = vmatpush1.msra.mxu0 %v408
      %442 = vmatprep.subr.mxu0 %v411
      %443 = vmatpush1.msra.mxu0 %v410
      %444 = vmatprep.subr.mxu0 %v413
      %445 = vmatpush1.msra.mxu0 %v412
      %446 = vmatprep.subr.mxu0 %v415
      %447 = vmatpush1.msra.mxu0 %v414
      %448 = vmatprep.subr.mxu0 %v417
      %449 = vmatpush1.msra.mxu0 %v416
      %450 = vmatprep.subr.mxu0 %v419
      %451 = vmatpush1.msra.mxu0 %v418
      %452 = vmatprep.subr.mxu0 %v421
      %453 = vmatpush1.msra.mxu0 %v420
      %454 = vmatprep.subr.mxu0 %v423
      %455 = vmatpush1.msra.mxu0 %v422
      %456 = vmatprep.subr.mxu0 %v425
      %457 = vmatpush1.msra.mxu0 %v424
      %458 = vmatprep.subr.mxu0 %v427
      %459 = vmatpush1.msra.mxu0 %v426
      %460 = vmatprep.subr.mxu0 %v429
      %461 = vmatpush1.msra.mxu0 %v428
      %462 = vmatprep.subr.mxu0 0.0
      %463 = vmatpush1.msra.mxu0 0.0
      %464 = vmatprep.subr.mxu0 0.0
      %465 = vmatpush1.msra.mxu0 0.0
      %466 = vmatprep.subr.mxu0 0.0
      %467 = vmatpush1.msra.mxu0 0.0
      %468 = vmatprep.subr.mxu0 0.0
      %469 = vmatpush1.msra.mxu0 0.0
      %470 = vmatprep.subr.mxu0 0.0
      %471 = vmatpush1.msra.mxu0 0.0
      %472 = vmatprep.subr.mxu0 0.0
      %473 = vmatpush1.msra.mxu0 0.0
      %474 = vmatprep.subr.mxu0 0.0
      %475 = vmatpush1.msra.mxu0 0.0
      %476 = vmatprep.subr.mxu0 0.0
      %477 = vmatpush1.msra.mxu0 0.0
      %478 = vmatprep.subr.mxu0 0.0
      %479 = vmatpush1.msra.mxu0 0.0
      %480 = vmatprep.subr.mxu0 0.0
      %481 = vmatpush1.msra.mxu0 0.0
      %482 = vmatprep.subr.mxu0 0.0
      %483 = vmatpush1.msra.mxu0 0.0
      %484 = vmatprep.subr.mxu0 0.0
      %485 = vmatpush1.msra.mxu0 0.0
      %486 = vmatprep.subr.mxu0 0.0
      %487 = vmatpush1.msra.mxu0 0.0
      %488 = vmatprep.subr.mxu0 0.0
      %489 = vmatpush1.msra.mxu0 0.0
      %490 = vmatprep.subr.mxu0 0.0
      %491 = vmatpush1.msra.mxu0 0.0
      %492 = vmatprep.subr.mxu0 0.0
      %493 = vmatpush1.msra.mxu0 0.0
      %494 = vmatprep.mubr.f32.mxu0 0.0
      %495 = vmatmul.mubr.f32.gmra.mrb[0].mxu0 %v395
      %v496 = vpop.f32.mrb[0].mxu0
      %v497 = vadd.f32 0.0, %v496
      %v498 = vpop.f32.mrb[0].mxu0
      %v499 = vadd.f32 0.0, %v498
      %500 = vmatprep.mubr.f32.mxu0 0.0
      %501 = vmatmul.mubr.f32.gmra.mrb[0].mxu0 %v396
      %v502 = vpop.f32.mrb[0].mxu0
      %v503 = vadd.f32 0.0, %v502
      %v504 = vpop.f32.mrb[0].mxu0
      %v505 = vadd.f32 0.0, %v504
      %506 = vdwg.mxu0
      %v507 = vadd.f32 %v385, %v497
      %v508 = vadd.f32 %v387, %v499
      %v509 = vadd.f32 %v391, %v503
      %v510 = vadd.f32 %v393, %v505
      %s511 = scalar_lea.vmem %s165, 24
      %v512 = vld [vmem:[%s511] sm:$0xff]
      %v513 = vld [vmem:[%s511 + $0x8] sm:$0xff]
      %s514 = scalar_lea.vmem %s1, 768
      %v515 = vld [vmem:[%s514] sm:$0xff]
      %v516 = vld [vmem:[%s514 + $0x8] sm:$0xff]
      %v517 = vld [vmem:[%s514 + $0x10] sm:$0xff]
      %v518 = vld [vmem:[%s514 + $0x18] sm:$0xff]
      %v519 = vld [vmem:[%s514 + $0x20] sm:$0xff]
      %v520 = vld [vmem:[%s514 + $0x28] sm:$0xff]
      %v521 = vld [vmem:[%s514 + $0x30] sm:$0xff]
      %v522 = vld [vmem:[%s514 + $0x38] sm:$0xff]
      %v523 = vld [vmem:[%s514 + $0x40] sm:$0xff]
      %v524 = vld [vmem:[%s514 + $0x48] sm:$0xff]
      %v525 = vld [vmem:[%s514 + $0x50] sm:$0xff]
      %v526 = vld [vmem:[%s514 + $0x58] sm:$0xff]
      %v527 = vld [vmem:[%s514 + $0x60] sm:$0xff]
      %v528 = vld [vmem:[%s514 + $0x68] sm:$0xff]
      %v529 = vld [vmem:[%s514 + $0x70] sm:$0xff]
      %v530 = vld [vmem:[%s514 + $0x78] sm:$0xff]
      %v531 = vld [vmem:[%s514 + $0x80] sm:$0xff]
      %v532 = vld [vmem:[%s514 + $0x88] sm:$0xff]
      %v533 = vld [vmem:[%s514 + $0x90] sm:$0xff]
      %v534 = vld [vmem:[%s514 + $0x98] sm:$0xff]
      %v535 = vld [vmem:[%s514 + $0xa0] sm:$0xff]
      %v536 = vld [vmem:[%s514 + $0xa8] sm:$0xff]
      %v537 = vld [vmem:[%s514 + $0xb0] sm:$0xff]
      %v538 = vld [vmem:[%s514 + $0xb8] sm:$0xff]
      %v539 = vld [vmem:[%s514 + $0xc0] sm:$0xff]
      %v540 = vld [vmem:[%s514 + $0xc8] sm:$0xff]
      %v541 = vld [vmem:[%s514 + $0xd0] sm:$0xff]
      %v542 = vld [vmem:[%s514 + $0xd8] sm:$0xff]
      %v543 = vld [vmem:[%s514 + $0xe0] sm:$0xff]
      %v544 = vld [vmem:[%s514 + $0xe8] sm:$0xff]
      %v545 = vld [vmem:[%s514 + $0xf0] sm:$0xff]
      %v546 = vld [vmem:[%s514 + $0xf8] sm:$0xff]
      %547 = vmatprep.subr.mxu0 %v516
      %548 = vmatpush1.msra.mxu0 %v515
      %549 = vmatprep.subr.mxu0 %v518
      %550 = vmatpush1.msra.mxu0 %v517
      %551 = vmatprep.subr.mxu0 %v520
      %552 = vmatpush1.msra.mxu0 %v519
      %553 = vmatprep.subr.mxu0 %v522
      %554 = vmatpush1.msra.mxu0 %v521
      %555 = vmatprep.subr.mxu0 %v524
      %556 = vmatpush1.msra.mxu0 %v523
      %557 = vmatprep.subr.mxu0 %v526
      %558 = vmatpush1.msra.mxu0 %v525
      %559 = vmatprep.subr.mxu0 %v528
      %560 = vmatpush1.msra.mxu0 %v527
      %561 = vmatprep.subr.mxu0 %v530
      %562 = vmatpush1.msra.mxu0 %v529
      %563 = vmatprep.subr.mxu0 %v532
      %564 = vmatpush1.msra.mxu0 %v531
      %565 = vmatprep.subr.mxu0 %v534
      %566 = vmatpush1.msra.mxu0 %v533
      %567 = vmatprep.subr.mxu0 %v536
      %568 = vmatpush1.msra.mxu0 %v535
      %569 = vmatprep.subr.mxu0 %v538
      %570 = vmatpush1.msra.mxu0 %v537
      %571 = vmatprep.subr.mxu0 %v540
      %572 = vmatpush1.msra.mxu0 %v539
      %573 = vmatprep.subr.mxu0 %v542
      %574 = vmatpush1.msra.mxu0 %v541
      %575 = vmatprep.subr.mxu0 %v544
      %576 = vmatpush1.msra.mxu0 %v543
      %577 = vmatprep.subr.mxu0 %v546
      %578 = vmatpush1.msra.mxu0 %v545
      %579 = vmatprep.subr.mxu0 0.0
      %580 = vmatpush1.msra.mxu0 0.0
      %581 = vmatprep.subr.mxu0 0.0
      %582 = vmatpush1.msra.mxu0 0.0
      %583 = vmatprep.subr.mxu0 0.0
      %584 = vmatpush1.msra.mxu0 0.0
      %585 = vmatprep.subr.mxu0 0.0
      %586 = vmatpush1.msra.mxu0 0.0
      %587 = vmatprep.subr.mxu0 0.0
      %588 = vmatpush1.msra.mxu0 0.0
      %589 = vmatprep.subr.mxu0 0.0
      %590 = vmatpush1.msra.mxu0 0.0
      %591 = vmatprep.subr.mxu0 0.0
      %592 = vmatpush1.msra.mxu0 0.0
      %593 = vmatprep.subr.mxu0 0.0
      %594 = vmatpush1.msra.mxu0 0.0
      %595 = vmatprep.subr.mxu0 0.0
      %596 = vmatpush1.msra.mxu0 0.0
      %597 = vmatprep.subr.mxu0 0.0
      %598 = vmatpush1.msra.mxu0 0.0
      %599 = vmatprep.subr.mxu0 0.0
      %600 = vmatpush1.msra.mxu0 0.0
      %601 = vmatprep.subr.mxu0 0.0
      %602 = vmatpush1.msra.mxu0 0.0
      %603 = vmatprep.subr.mxu0 0.0
      %604 = vmatpush1.msra.mxu0 0.0
      %605 = vmatprep.subr.mxu0 0.0
      %606 = vmatpush1.msra.mxu0 0.0
      %607 = vmatprep.subr.mxu0 0.0
      %608 = vmatpush1.msra.mxu0 0.0
      %609 = vmatprep.subr.mxu0 0.0
      %610 = vmatpush1.msra.mxu0 0.0
      %611 = vmatprep.mubr.f32.mxu0 0.0
      %612 = vmatmul.mubr.f32.gmra.mrb[0].mxu0 %v512
      %v613 = vpop.f32.mrb[0].mxu0
      %v614 = vadd.f32 0.0, %v613
      %v615 = vpop.f32.mrb[0].mxu0
      %v616 = vadd.f32 0.0, %v615
      %617 = vmatprep.mubr.f32.mxu0 0.0
      %618 = vmatmul.mubr.f32.gmra.mrb[0].mxu0 %v513
      %v619 = vpop.f32.mrb[0].mxu0
      %v620 = vadd.f32 0.0, %v619
      %v621 = vpop.f32.mrb[0].mxu0
      %v622 = vadd.f32 0.0, %v621
      %623 = vdwg.mxu0
      %v624 = vadd.f32 %v507, %v614
      %v625 = vadd.f32 %v508, %v616
      %v626 = vadd.f32 %v509, %v620
      %v627 = vadd.f32 %v510, %v622
      %v628 = vld [vmem:[%s511 + $0x1] sm:$0xff]
      %v629 = vld [vmem:[%s511 + $0x9] sm:$0xff]
      %s630 = scalar_lea.vmem %s1, 1024
      %v631 = vld [vmem:[%s630] sm:$0xff]
      %v632 = vld [vmem:[%s630 + $0x8] sm:$0xff]
      %v633 = vld [vmem:[%s630 + $0x10] sm:$0xff]
      %v634 = vld [vmem:[%s630 + $0x18] sm:$0xff]
      %v635 = vld [vmem:[%s630 + $0x20] sm:$0xff]
      %v636 = vld [vmem:[%s630 + $0x28] sm:$0xff]
      %v637 = vld [vmem:[%s630 + $0x30] sm:$0xff]
      %v638 = vld [vmem:[%s630 + $0x38] sm:$0xff]
      %v639 = vld [vmem:[%s630 + $0x40] sm:$0xff]
      %v640 = vld [vmem:[%s630 + $0x48] sm:$0xff]
      %v641 = vld [vmem:[%s630 + $0x50] sm:$0xff]
      %v642 = vld [vmem:[%s630 + $0x58] sm:$0xff]
      %v643 = vld [vmem:[%s630 + $0x60] sm:$0xff]
      %v644 = vld [vmem:[%s630 + $0x68] sm:$0xff]
      %v645 = vld [vmem:[%s630 + $0x70] sm:$0xff]
      %v646 = vld [vmem:[%s630 + $0x78] sm:$0xff]
      %v647 = vld [vmem:[%s630 + $0x80] sm:$0xff]
      %v648 = vld [vmem:[%s630 + $0x88] sm:$0xff]
      %v649 = vld [vmem:[%s630 + $0x90] sm:$0xff]
      %v650 = vld [vmem:[%s630 + $0x98] sm:$0xff]
      %v651 = vld [vmem:[%s630 + $0xa0] sm:$0xff]
      %v652 = vld [vmem:[%s630 + $0xa8] sm:$0xff]
      %v653 = vld [vmem:[%s630 + $0xb0] sm:$0xff]
      %v654 = vld [vmem:[%s630 + $0xb8] sm:$0xff]
      %v655 = vld [vmem:[%s630 + $0xc0] sm:$0xff]
      %v656 = vld [vmem:[%s630 + $0xc8] sm:$0xff]
      %v657 = vld [vmem:[%s630 + $0xd0] sm:$0xff]
      %v658 = vld [vmem:[%s630 + $0xd8] sm:$0xff]
      %v659 = vld [vmem:[%s630 + $0xe0] sm:$0xff]
      %v660 = vld [vmem:[%s630 + $0xe8] sm:$0xff]
      %v661 = vld [vmem:[%s630 + $0xf0] sm:$0xff]
      %v662 = vld [vmem:[%s630 + $0xf8] sm:$0xff]
      %663 = vmatprep.subr.mxu0 %v632
      %664 = vmatpush1.msra.mxu0 %v631
      %665 = vmatprep.subr.mxu0 %v634
      %666 = vmatpush1.msra.mxu0 %v633
      %667 = vmatprep.subr.mxu0 %v636
      %668 = vmatpush1.msra.mxu0 %v635
      %669 = vmatprep.subr.mxu0 %v638
      %670 = vmatpush1.msra.mxu0 %v637
      %671 = vmatprep.subr.mxu0 %v640
      %672 = vmatpush1.msra.mxu0 %v639
      %673 = vmatprep.subr.mxu0 %v642
      %674 = vmatpush1.msra.mxu0 %v641
      %675 = vmatprep.subr.mxu0 %v644
      %676 = vmatpush1.msra.mxu0 %v643
      %677 = vmatprep.subr.mxu0 %v646
      %678 = vmatpush1.msra.mxu0 %v645
      %679 = vmatprep.subr.mxu0 %v648
      %680 = vmatpush1.msra.mxu0 %v647
      %681 = vmatprep.subr.mxu0 %v650
      %682 = vmatpush1.msra.mxu0 %v649
      %683 = vmatprep.subr.mxu0 %v652
      %684 = vmatpush1.msra.mxu0 %v651
      %685 = vmatprep.subr.mxu0 %v654
      %686 = vmatpush1.msra.mxu0 %v653
      %687 = vmatprep.subr.mxu0 %v656
      %688 = vmatpush1.msra.mxu0 %v655
      %689 = vmatprep.subr.mxu0 %v658
      %690 = vmatpush1.msra.mxu0 %v657
      %691 = vmatprep.subr.mxu0 %v660
      %692 = vmatpush1.msra.mxu0 %v659
      %693 = vmatprep.subr.mxu0 %v662
      %694 = vmatpush1.msra.mxu0 %v661
      %695 = vmatprep.subr.mxu0 0.0
      %696 = vmatpush1.msra.mxu0 0.0
      %697 = vmatprep.subr.mxu0 0.0
      %698 = vmatpush1.msra.mxu0 0.0
      %699 = vmatprep.subr.mxu0 0.0
      %700 = vmatpush1.msra.mxu0 0.0
      %701 = vmatprep.subr.mxu0 0.0
      %702 = vmatpush1.msra.mxu0 0.0
      %703 = vmatprep.subr.mxu0 0.0
      %704 = vmatpush1.msra.mxu0 0.0
      %705 = vmatprep.subr.mxu0 0.0
      %706 = vmatpush1.msra.mxu0 0.0
      %707 = vmatprep.subr.mxu0 0.0
      %708 = vmatpush1.msra.mxu0 0.0
      %709 = vmatprep.subr.mxu0 0.0
      %710 = vmatpush1.msra.mxu0 0.0
      %711 = vmatprep.subr.mxu0 0.0
      %712 = vmatpush1.msra.mxu0 0.0
      %713 = vmatprep.subr.mxu0 0.0
      %714 = vmatpush1.msra.mxu0 0.0
      %715 = vmatprep.subr.mxu0 0.0
      %716 = vmatpush1.msra.mxu0 0.0
      %717 = vmatprep.subr.mxu0 0.0
      %718 = vmatpush1.msra.mxu0 0.0
      %719 = vmatprep.subr.mxu0 0.0
      %720 = vmatpush1.msra.mxu0 0.0
      %721 = vmatprep.subr.mxu0 0.0
      %722 = vmatpush1.msra.mxu0 0.0
      %723 = vmatprep.subr.mxu0 0.0
      %724 = vmatpush1.msra.mxu0 0.0
      %725 = vmatprep.subr.mxu0 0.0
      %726 = vmatpush1.msra.mxu0 0.0
      %727 = vmatprep.mubr.f32.mxu0 0.0
      %728 = vmatmul.mubr.f32.gmra.mrb[0].mxu0 %v628
      %v729 = vpop.f32.mrb[0].mxu0
      %v730 = vadd.f32 0.0, %v729
      %v731 = vpop.f32.mrb[0].mxu0
      %v732 = vadd.f32 0.0, %v731
      %733 = vmatprep.mubr.f32.mxu0 0.0
      %734 = vmatmul.mubr.f32.gmra.mrb[0].mxu0 %v629
      %v735 = vpop.f32.mrb[0].mxu0
      %v736 = vadd.f32 0.0, %v735
      %v737 = vpop.f32.mrb[0].mxu0
      %v738 = vadd.f32 0.0, %v737
      %739 = vdwg.mxu0
      %v740 = vadd.f32 %v624, %v730
      %v741 = vadd.f32 %v625, %v732
      %v742 = vadd.f32 %v626, %v736
      %v743 = vadd.f32 %v627, %v738
      %v744 = vld [vmem:[%s511 + $0x2] sm:$0xff]
      %v745 = vld [vmem:[%s511 + $0xa] sm:$0xff]
      %s746 = scalar_lea.vmem %s1, 1280
      %v747 = vld [vmem:[%s746] sm:$0xff]
      %v748 = vld [vmem:[%s746 + $0x8] sm:$0xff]
      %v749 = vld [vmem:[%s746 + $0x10] sm:$0xff]
      %v750 = vld [vmem:[%s746 + $0x18] sm:$0xff]
      %v751 = vld [vmem:[%s746 + $0x20] sm:$0xff]
      %v752 = vld [vmem:[%s746 + $0x28] sm:$0xff]
      %v753 = vld [vmem:[%s746 + $0x30] sm:$0xff]
      %v754 = vld [vmem:[%s746 + $0x38] sm:$0xff]
      %v755 = vld [vmem:[%s746 + $0x40] sm:$0xff]
      %v756 = vld [vmem:[%s746 + $0x48] sm:$0xff]
      %v757 = vld [vmem:[%s746 + $0x50] sm:$0xff]
      %v758 = vld [vmem:[%s746 + $0x58] sm:$0xff]
      %v759 = vld [vmem:[%s746 + $0x60] sm:$0xff]
      %v760 = vld [vmem:[%s746 + $0x68] sm:$0xff]
      %v761 = vld [vmem:[%s746 + $0x70] sm:$0xff]
      %v762 = vld [vmem:[%s746 + $0x78] sm:$0xff]
      %v763 = vld [vmem:[%s746 + $0x80] sm:$0xff]
      %v764 = vld [vmem:[%s746 + $0x88] sm:$0xff]
      %v765 = vld [vmem:[%s746 + $0x90] sm:$0xff]
      %v766 = vld [vmem:[%s746 + $0x98] sm:$0xff]
      %v767 = vld [vmem:[%s746 + $0xa0] sm:$0xff]
      %v768 = vld [vmem:[%s746 + $0xa8] sm:$0xff]
      %v769 = vld [vmem:[%s746 + $0xb0] sm:$0xff]
      %v770 = vld [vmem:[%s746 + $0xb8] sm:$0xff]
      %v771 = vld [vmem:[%s746 + $0xc0] sm:$0xff]
      %v772 = vld [vmem:[%s746 + $0xc8] sm:$0xff]
      %v773 = vld [vmem:[%s746 + $0xd0] sm:$0xff]
      %v774 = vld [vmem:[%s746 + $0xd8] sm:$0xff]
      %v775 = vld [vmem:[%s746 + $0xe0] sm:$0xff]
      %v776 = vld [vmem:[%s746 + $0xe8] sm:$0xff]
      %v777 = vld [vmem:[%s746 + $0xf0] sm:$0xff]
      %v778 = vld [vmem:[%s746 + $0xf8] sm:$0xff]
      %779 = vmatprep.subr.mxu0 %v748
      %780 = vmatpush1.msra.mxu0 %v747
      %781 = vmatprep.subr.mxu0 %v750
      %782 = vmatpush1.msra.mxu0 %v749
      %783 = vmatprep.subr.mxu0 %v752
      %784 = vmatpush1.msra.mxu0 %v751
      %785 = vmatprep.subr.mxu0 %v754
      %786 = vmatpush1.msra.mxu0 %v753
      %787 = vmatprep.subr.mxu0 %v756
      %788 = vmatpush1.msra.mxu0 %v755
      %789 = vmatprep.subr.mxu0 %v758
      %790 = vmatpush1.msra.mxu0 %v757
      %791 = vmatprep.subr.mxu0 %v760
      %792 = vmatpush1.msra.mxu0 %v759
      %793 = vmatprep.subr.mxu0 %v762
      %794 = vmatpush1.msra.mxu0 %v761
      %795 = vmatprep.subr.mxu0 %v764
      %796 = vmatpush1.msra.mxu0 %v763
      %797 = vmatprep.subr.mxu0 %v766
      %798 = vmatpush1.msra.mxu0 %v765
      %799 = vmatprep.subr.mxu0 %v768
      %800 = vmatpush1.msra.mxu0 %v767
      %801 = vmatprep.subr.mxu0 %v770
      %802 = vmatpush1.msra.mxu0 %v769
      %803 = vmatprep.subr.mxu0 %v772
      %804 = vmatpush1.msra.mxu0 %v771
      %805 = vmatprep.subr.mxu0 %v774
      %806 = vmatpush1.msra.mxu0 %v773
      %807 = vmatprep.subr.mxu0 %v776
      %808 = vmatpush1.msra.mxu0 %v775
      %809 = vmatprep.subr.mxu0 %v778
      %810 = vmatpush1.msra.mxu0 %v777
      %811 = vmatprep.subr.mxu0 0.0
      %812 = vmatpush1.msra.mxu0 0.0
      %813 = vmatprep.subr.mxu0 0.0
      %814 = vmatpush1.msra.mxu0 0.0
      %815 = vmatprep.subr.mxu0 0.0
      %816 = vmatpush1.msra.mxu0 0.0
      %817 = vmatprep.subr.mxu0 0.0
      %818 = vmatpush1.msra.mxu0 0.0
      %819 = vmatprep.subr.mxu0 0.0
      %820 = vmatpush1.msra.mxu0 0.0
      %821 = vmatprep.subr.mxu0 0.0
      %822 = vmatpush1.msra.mxu0 0.0
      %823 = vmatprep.subr.mxu0 0.0
      %824 = vmatpush1.msra.mxu0 0.0
      %825 = vmatprep.subr.mxu0 0.0
      %826 = vmatpush1.msra.mxu0 0.0
      %827 = vmatprep.subr.mxu0 0.0
      %828 = vmatpush1.msra.mxu0 0.0
      %829 = vmatprep.subr.mxu0 0.0
      %830 = vmatpush1.msra.mxu0 0.0
      %831 = vmatprep.subr.mxu0 0.0
      %832 = vmatpush1.msra.mxu0 0.0
      %833 = vmatprep.subr.mxu0 0.0
      %834 = vmatpush1.msra.mxu0 0.0
      %835 = vmatprep.subr.mxu0 0.0
      %836 = vmatpush1.msra.mxu0 0.0
      %837 = vmatprep.subr.mxu0 0.0
      %838 = vmatpush1.msra.mxu0 0.0
      %839 = vmatprep.subr.mxu0 0.0
      %840 = vmatpush1.msra.mxu0 0.0
      %841 = vmatprep.subr.mxu0 0.0
      %842 = vmatpush1.msra.mxu0 0.0
      %843 = vmatprep.mubr.f32.mxu0 0.0
      %844 = vmatmul.mubr.f32.gmra.mrb[0].mxu0 %v744
      %v845 = vpop.f32.mrb[0].mxu0
      %v846 = vadd.f32 0.0, %v845
      %v847 = vpop.f32.mrb[0].mxu0
      %v848 = vadd.f32 0.0, %v847
      %849 = vmatprep.mubr.f32.mxu0 0.0
      %850 = vmatmul.mubr.f32.gmra.mrb[0].mxu0 %v745
      %v851 = vpop.f32.mrb[0].mxu0
      %v852 = vadd.f32 0.0, %v851
      %v853 = vpop.f32.mrb[0].mxu0
      %v854 = vadd.f32 0.0, %v853
      %855 = vdwg.mxu0
      %v856 = vadd.f32 %v740, %v846
      %v857 = vadd.f32 %v741, %v848
      %v858 = vadd.f32 %v742, %v852
      %v859 = vadd.f32 %v743, %v854
      %s860 = scalar_lea.vmem %s165, 48
      %v861 = vld [vmem:[%s860] sm:$0xff]
      %v862 = vld [vmem:[%s860 + $0x8] sm:$0xff]
      %s863 = scalar_lea.vmem %s1, 1536
      %v864 = vld [vmem:[%s863] sm:$0xff]
      %v865 = vld [vmem:[%s863 + $0x8] sm:$0xff]
      %v866 = vld [vmem:[%s863 + $0x10] sm:$0xff]
      %v867 = vld [vmem:[%s863 + $0x18] sm:$0xff]
      %v868 = vld [vmem:[%s863 + $0x20] sm:$0xff]
      %v869 = vld [vmem:[%s863 + $0x28] sm:$0xff]
      %v870 = vld [vmem:[%s863 + $0x30] sm:$0xff]
      %v871 = vld [vmem:[%s863 + $0x38] sm:$0xff]
      %v872 = vld [vmem:[%s863 + $0x40] sm:$0xff]
      %v873 = vld [vmem:[%s863 + $0x48] sm:$0xff]
      %v874 = vld [vmem:[%s863 + $0x50] sm:$0xff]
      %v875 = vld [vmem:[%s863 + $0x58] sm:$0xff]
      %v876 = vld [vmem:[%s863 + $0x60] sm:$0xff]
      %v877 = vld [vmem:[%s863 + $0x68] sm:$0xff]
      %v878 = vld [vmem:[%s863 + $0x70] sm:$0xff]
      %v879 = vld [vmem:[%s863 + $0x78] sm:$0xff]
      %v880 = vld [vmem:[%s863 + $0x80] sm:$0xff]
      %v881 = vld [vmem:[%s863 + $0x88] sm:$0xff]
      %v882 = vld [vmem:[%s863 + $0x90] sm:$0xff]
      %v883 = vld [vmem:[%s863 + $0x98] sm:$0xff]
      %v884 = vld [vmem:[%s863 + $0xa0] sm:$0xff]
      %v885 = vld [vmem:[%s863 + $0xa8] sm:$0xff]
      %v886 = vld [vmem:[%s863 + $0xb0] sm:$0xff]
      %v887 = vld [vmem:[%s863 + $0xb8] sm:$0xff]
      %v888 = vld [vmem:[%s863 + $0xc0] sm:$0xff]
      %v889 = vld [vmem:[%s863 + $0xc8] sm:$0xff]
      %v890 = vld [vmem:[%s863 + $0xd0] sm:$0xff]
      %v891 = vld [vmem:[%s863 + $0xd8] sm:$0xff]
      %v892 = vld [vmem:[%s863 + $0xe0] sm:$0xff]
      %v893 = vld [vmem:[%s863 + $0xe8] sm:$0xff]
      %v894 = vld [vmem:[%s863 + $0xf0] sm:$0xff]
      %v895 = vld [vmem:[%s863 + $0xf8] sm:$0xff]
      %896 = vmatprep.subr.mxu0 %v865
      %897 = vmatpush1.msra.mxu0 %v864
      %898 = vmatprep.subr.mxu0 %v867
      %899 = vmatpush1.msra.mxu0 %v866
      %900 = vmatprep.subr.mxu0 %v869
      %901 = vmatpush1.msra.mxu0 %v868
      %902 = vmatprep.subr.mxu0 %v871
      %903 = vmatpush1.msra.mxu0 %v870
      %904 = vmatprep.subr.mxu0 %v873
      %905 = vmatpush1.msra.mxu0 %v872
      %906 = vmatprep.subr.mxu0 %v875
      %907 = vmatpush1.msra.mxu0 %v874
      %908 = vmatprep.subr.mxu0 %v877
      %909 = vmatpush1.msra.mxu0 %v876
      %910 = vmatprep.subr.mxu0 %v879
      %911 = vmatpush1.msra.mxu0 %v878
      %912 = vmatprep.subr.mxu0 %v881
      %913 = vmatpush1.msra.mxu0 %v880
      %914 = vmatprep.subr.mxu0 %v883
      %915 = vmatpush1.msra.mxu0 %v882
      %916 = vmatprep.subr.mxu0 %v885
      %917 = vmatpush1.msra.mxu0 %v884
      %918 = vmatprep.subr.mxu0 %v887
      %919 = vmatpush1.msra.mxu0 %v886
      %920 = vmatprep.subr.mxu0 %v889
      %921 = vmatpush1.msra.mxu0 %v888
      %922 = vmatprep.subr.mxu0 %v891
      %923 = vmatpush1.msra.mxu0 %v890
      %924 = vmatprep.subr.mxu0 %v893
      %925 = vmatpush1.msra.mxu0 %v892
      %926 = vmatprep.subr.mxu0 %v895
      %927 = vmatpush1.msra.mxu0 %v894
      %928 = vmatprep.subr.mxu0 0.0
      %929 = vmatpush1.msra.mxu0 0.0
      %930 = vmatprep.subr.mxu0 0.0
      %931 = vmatpush1.msra.mxu0 0.0
      %932 = vmatprep.subr.mxu0 0.0
      %933 = vmatpush1.msra.mxu0 0.0
      %934 = vmatprep.subr.mxu0 0.0
      %935 = vmatpush1.msra.mxu0 0.0
      %936 = vmatprep.subr.mxu0 0.0
      %937 = vmatpush1.msra.mxu0 0.0
      %938 = vmatprep.subr.mxu0 0.0
      %939 = vmatpush1.msra.mxu0 0.0
      %940 = vmatprep.subr.mxu0 0.0
      %941 = vmatpush1.msra.mxu0 0.0
      %942 = vmatprep.subr.mxu0 0.0
      %943 = vmatpush1.msra.mxu0 0.0
      %944 = vmatprep.subr.mxu0 0.0
      %945 = vmatpush1.msra.mxu0 0.0
      %946 = vmatprep.subr.mxu0 0.0
      %947 = vmatpush1.msra.mxu0 0.0
      %948 = vmatprep.subr.mxu0 0.0
      %949 = vmatpush1.msra.mxu0 0.0
      %950 = vmatprep.subr.mxu0 0.0
      %951 = vmatpush1.msra.mxu0 0.0
      %952 = vmatprep.subr.mxu0 0.0
      %953 = vmatpush1.msra.mxu0 0.0
      %954 = vmatprep.subr.mxu0 0.0
      %955 = vmatpush1.msra.mxu0 0.0
      %956 = vmatprep.subr.mxu0 0.0
      %957 = vmatpush1.msra.mxu0 0.0
      %958 = vmatprep.subr.mxu0 0.0
      %959 = vmatpush1.msra.mxu0 0.0
      %960 = vmatprep.mubr.f32.mxu0 0.0
      %961 = vmatmul.mubr.f32.gmra.mrb[0].mxu0 %v861
      %v962 = vpop.f32.mrb[0].mxu0
      %v963 = vadd.f32 0.0, %v962
      %v964 = vpop.f32.mrb[0].mxu0
      %v965 = vadd.f32 0.0, %v964
      %966 = vmatprep.mubr.f32.mxu0 0.0
      %967 = vmatmul.mubr.f32.gmra.mrb[0].mxu0 %v862
      %v968 = vpop.f32.mrb[0].mxu0
      %v969 = vadd.f32 0.0, %v968
      %v970 = vpop.f32.mrb[0].mxu0
      %v971 = vadd.f32 0.0, %v970
      %972 = vdwg.mxu0
      %v973 = vadd.f32 %v856, %v963
      %v974 = vadd.f32 %v857, %v965
      %v975 = vadd.f32 %v858, %v969
      %v976 = vadd.f32 %v859, %v971
      %v977 = vld [vmem:[%s860 + $0x1] sm:$0xff]
      %v978 = vld [vmem:[%s860 + $0x9] sm:$0xff]
      %s979 = scalar_lea.vmem %s1, 1792
      %v980 = vld [vmem:[%s979] sm:$0xff]
      %v981 = vld [vmem:[%s979 + $0x8] sm:$0xff]
      %v982 = vld [vmem:[%s979 + $0x10] sm:$0xff]
      %v983 = vld [vmem:[%s979 + $0x18] sm:$0xff]
      %v984 = vld [vmem:[%s979 + $0x20] sm:$0xff]
      %v985 = vld [vmem:[%s979 + $0x28] sm:$0xff]
      %v986 = vld [vmem:[%s979 + $0x30] sm:$0xff]
      %v987 = vld [vmem:[%s979 + $0x38] sm:$0xff]
      %v988 = vld [vmem:[%s979 + $0x40] sm:$0xff]
      %v989 = vld [vmem:[%s979 + $0x48] sm:$0xff]
      %v990 = vld [vmem:[%s979 + $0x50] sm:$0xff]
      %v991 = vld [vmem:[%s979 + $0x58] sm:$0xff]
      %v992 = vld [vmem:[%s979 + $0x60] sm:$0xff]
      %v993 = vld [vmem:[%s979 + $0x68] sm:$0xff]
      %v994 = vld [vmem:[%s979 + $0x70] sm:$0xff]
      %v995 = vld [vmem:[%s979 + $0x78] sm:$0xff]
      %v996 = vld [vmem:[%s979 + $0x80] sm:$0xff]
      %v997 = vld [vmem:[%s979 + $0x88] sm:$0xff]
      %v998 = vld [vmem:[%s979 + $0x90] sm:$0xff]
      %v999 = vld [vmem:[%s979 + $0x98] sm:$0xff]
      %v1000 = vld [vmem:[%s979 + $0xa0] sm:$0xff]
      %v1001 = vld [vmem:[%s979 + $0xa8] sm:$0xff]
      %v1002 = vld [vmem:[%s979 + $0xb0] sm:$0xff]
      %v1003 = vld [vmem:[%s979 + $0xb8] sm:$0xff]
      %v1004 = vld [vmem:[%s979 + $0xc0] sm:$0xff]
      %v1005 = vld [vmem:[%s979 + $0xc8] sm:$0xff]
      %v1006 = vld [vmem:[%s979 + $0xd0] sm:$0xff]
      %v1007 = vld [vmem:[%s979 + $0xd8] sm:$0xff]
      %v1008 = vld [vmem:[%s979 + $0xe0] sm:$0xff]
      %v1009 = vld [vmem:[%s979 + $0xe8] sm:$0xff]
      %v1010 = vld [vmem:[%s979 + $0xf0] sm:$0xff]
      %v1011 = vld [vmem:[%s979 + $0xf8] sm:$0xff]
      %1012 = vmatprep.subr.mxu0 %v981
      %1013 = vmatpush1.msra.mxu0 %v980
      %1014 = vmatprep.subr.mxu0 %v983
      %1015 = vmatpush1.msra.mxu0 %v982
      %1016 = vmatprep.subr.mxu0 %v985
      %1017 = vmatpush1.msra.mxu0 %v984
      %1018 = vmatprep.subr.mxu0 %v987
      %1019 = vmatpush1.msra.mxu0 %v986
      %1020 = vmatprep.subr.mxu0 %v989
      %1021 = vmatpush1.msra.mxu0 %v988
      %1022 = vmatprep.subr.mxu0 %v991
      %1023 = vmatpush1.msra.mxu0 %v990
      %1024 = vmatprep.subr.mxu0 %v993
      %1025 = vmatpush1.msra.mxu0 %v992
      %1026 = vmatprep.subr.mxu0 %v995
      %1027 = vmatpush1.msra.mxu0 %v994
      %1028 = vmatprep.subr.mxu0 %v997
      %1029 = vmatpush1.msra.mxu0 %v996
      %1030 = vmatprep.subr.mxu0 %v999
      %1031 = vmatpush1.msra.mxu0 %v998
      %1032 = vmatprep.subr.mxu0 %v1001
      %1033 = vmatpush1.msra.mxu0 %v1000
      %1034 = vmatprep.subr.mxu0 %v1003
      %1035 = vmatpush1.msra.mxu0 %v1002
      %1036 = vmatprep.subr.mxu0 %v1005
      %1037 = vmatpush1.msra.mxu0 %v1004
      %1038 = vmatprep.subr.mxu0 %v1007
      %1039 = vmatpush1.msra.mxu0 %v1006
      %1040 = vmatprep.subr.mxu0 %v1009
      %1041 = vmatpush1.msra.mxu0 %v1008
      %1042 = vmatprep.subr.mxu0 %v1011
      %1043 = vmatpush1.msra.mxu0 %v1010
      %1044 = vmatprep.subr.mxu0 0.0
      %1045 = vmatpush1.msra.mxu0 0.0
      %1046 = vmatprep.subr.mxu0 0.0
      %1047 = vmatpush1.msra.mxu0 0.0
      %1048 = vmatprep.subr.mxu0 0.0
      %1049 = vmatpush1.msra.mxu0 0.0
      %1050 = vmatprep.subr.mxu0 0.0
      %1051 = vmatpush1.msra.mxu0 0.0
      %1052 = vmatprep.subr.mxu0 0.0
      %1053 = vmatpush1.msra.mxu0 0.0
      %1054 = vmatprep.subr.mxu0 0.0
      %1055 = vmatpush1.msra.mxu0 0.0
      %1056 = vmatprep.subr.mxu0 0.0
      %1057 = vmatpush1.msra.mxu0 0.0
      %1058 = vmatprep.subr.mxu0 0.0
      %1059 = vmatpush1.msra.mxu0 0.0
      %1060 = vmatprep.subr.mxu0 0.0
      %1061 = vmatpush1.msra.mxu0 0.0
      %1062 = vmatprep.subr.mxu0 0.0
      %1063 = vmatpush1.msra.mxu0 0.0
      %1064 = vmatprep.subr.mxu0 0.0
      %1065 = vmatpush1.msra.mxu0 0.0
      %1066 = vmatprep.subr.mxu0 0.0
      %1067 = vmatpush1.msra.mxu0 0.0
      %1068 = vmatprep.subr.mxu0 0.0
      %1069 = vmatpush1.msra.mxu0 0.0
      %1070 = vmatprep.subr.mxu0 0.0
      %1071 = vmatpush1.msra.mxu0 0.0
      %1072 = vmatprep.subr.mxu0 0.0
      %1073 = vmatpush1.msra.mxu0 0.0
      %1074 = vmatprep.subr.mxu0 0.0
      %1075 = vmatpush1.msra.mxu0 0.0
      %1076 = vmatprep.mubr.f32.mxu0 0.0
      %1077 = vmatmul.mubr.f32.gmra.mrb[0].mxu0 %v977
      %v1078 = vpop.f32.mrb[0].mxu0
      %v1079 = vadd.f32 0.0, %v1078
      %v1080 = vpop.f32.mrb[0].mxu0
      %v1081 = vadd.f32 0.0, %v1080
      %1082 = vmatprep.mubr.f32.mxu0 0.0
      %1083 = vmatmul.mubr.f32.gmra.mrb[0].mxu0 %v978
      %v1084 = vpop.f32.mrb[0].mxu0
      %v1085 = vadd.f32 0.0, %v1084
      %v1086 = vpop.f32.mrb[0].mxu0
      %v1087 = vadd.f32 0.0, %v1086
      %1088 = vdwg.mxu0
      %v1089 = vadd.f32 %v973, %v1079
      %v1090 = vadd.f32 %v974, %v1081
      %v1091 = vadd.f32 %v975, %v1085
      %v1092 = vadd.f32 %v976, %v1087
      %v1093 = vld [vmem:[%s860 + $0x2] sm:$0xff]
      %v1094 = vld [vmem:[%s860 + $0xa] sm:$0xff]
      %s1095 = scalar_lea.vmem %s1, 2048
      %v1096 = vld [vmem:[%s1095] sm:$0xff]
      %v1097 = vld [vmem:[%s1095 + $0x8] sm:$0xff]
      %v1098 = vld [vmem:[%s1095 + $0x10] sm:$0xff]
      %v1099 = vld [vmem:[%s1095 + $0x18] sm:$0xff]
      %v1100 = vld [vmem:[%s1095 + $0x20] sm:$0xff]
      %v1101 = vld [vmem:[%s1095 + $0x28] sm:$0xff]
      %v1102 = vld [vmem:[%s1095 + $0x30] sm:$0xff]
      %v1103 = vld [vmem:[%s1095 + $0x38] sm:$0xff]
      %v1104 = vld [vmem:[%s1095 + $0x40] sm:$0xff]
      %v1105 = vld [vmem:[%s1095 + $0x48] sm:$0xff]
      %v1106 = vld [vmem:[%s1095 + $0x50] sm:$0xff]
      %v1107 = vld [vmem:[%s1095 + $0x58] sm:$0xff]
      %v1108 = vld [vmem:[%s1095 + $0x60] sm:$0xff]
      %v1109 = vld [vmem:[%s1095 + $0x68] sm:$0xff]
      %v1110 = vld [vmem:[%s1095 + $0x70] sm:$0xff]
      %v1111 = vld [vmem:[%s1095 + $0x78] sm:$0xff]
      %v1112 = vld [vmem:[%s1095 + $0x80] sm:$0xff]
      %v1113 = vld [vmem:[%s1095 + $0x88] sm:$0xff]
      %v1114 = vld [vmem:[%s1095 + $0x90] sm:$0xff]
      %v1115 = vld [vmem:[%s1095 + $0x98] sm:$0xff]
      %v1116 = vld [vmem:[%s1095 + $0xa0] sm:$0xff]
      %v1117 = vld [vmem:[%s1095 + $0xa8] sm:$0xff]
      %v1118 = vld [vmem:[%s1095 + $0xb0] sm:$0xff]
      %v1119 = vld [vmem:[%s1095 + $0xb8] sm:$0xff]
      %v1120 = vld [vmem:[%s1095 + $0xc0] sm:$0xff]
      %v1121 = vld [vmem:[%s1095 + $0xc8] sm:$0xff]
      %v1122 = vld [vmem:[%s1095 + $0xd0] sm:$0xff]
      %v1123 = vld [vmem:[%s1095 + $0xd8] sm:$0xff]
      %v1124 = vld [vmem:[%s1095 + $0xe0] sm:$0xff]
      %v1125 = vld [vmem:[%s1095 + $0xe8] sm:$0xff]
      %v1126 = vld [vmem:[%s1095 + $0xf0] sm:$0xff]
      %v1127 = vld [vmem:[%s1095 + $0xf8] sm:$0xff]
      %1128 = vmatprep.subr.mxu0 %v1097
      %1129 = vmatpush1.msra.mxu0 %v1096
      %1130 = vmatprep.subr.mxu0 %v1099
      %1131 = vmatpush1.msra.mxu0 %v1098
      %1132 = vmatprep.subr.mxu0 %v1101
      %1133 = vmatpush1.msra.mxu0 %v1100
      %1134 = vmatprep.subr.mxu0 %v1103
      %1135 = vmatpush1.msra.mxu0 %v1102
      %1136 = vmatprep.subr.mxu0 %v1105
      %1137 = vmatpush1.msra.mxu0 %v1104
      %1138 = vmatprep.subr.mxu0 %v1107
      %1139 = vmatpush1.msra.mxu0 %v1106
      %1140 = vmatprep.subr.mxu0 %v1109
      %1141 = vmatpush1.msra.mxu0 %v1108
      %1142 = vmatprep.subr.mxu0 %v1111
      %1143 = vmatpush1.msra.mxu0 %v1110
      %1144 = vmatprep.subr.mxu0 %v1113
      %1145 = vmatpush1.msra.mxu0 %v1112
      %1146 = vmatprep.subr.mxu0 %v1115
      %1147 = vmatpush1.msra.mxu0 %v1114
      %1148 = vmatprep.subr.mxu0 %v1117
      %1149 = vmatpush1.msra.mxu0 %v1116
      %1150 = vmatprep.subr.mxu0 %v1119
      %1151 = vmatpush1.msra.mxu0 %v1118
      %1152 = vmatprep.subr.mxu0 %v1121
      %1153 = vmatpush1.msra.mxu0 %v1120
      %1154 = vmatprep.subr.mxu0 %v1123
      %1155 = vmatpush1.msra.mxu0 %v1122
      %1156 = vmatprep.subr.mxu0 %v1125
      %1157 = vmatpush1.msra.mxu0 %v1124
      %1158 = vmatprep.subr.mxu0 %v1127
      %1159 = vmatpush1.msra.mxu0 %v1126
      %1160 = vmatprep.subr.mxu0 0.0
      %1161 = vmatpush1.msra.mxu0 0.0
      %1162 = vmatprep.subr.mxu0 0.0
      %1163 = vmatpush1.msra.mxu0 0.0
      %1164 = vmatprep.subr.mxu0 0.0
      %1165 = vmatpush1.msra.mxu0 0.0
      %1166 = vmatprep.subr.mxu0 0.0
      %1167 = vmatpush1.msra.mxu0 0.0
      %1168 = vmatprep.subr.mxu0 0.0
      %1169 = vmatpush1.msra.mxu0 0.0
      %1170 = vmatprep.subr.mxu0 0.0
      %1171 = vmatpush1.msra.mxu0 0.0
      %1172 = vmatprep.subr.mxu0 0.0
      %1173 = vmatpush1.msra.mxu0 0.0
      %1174 = vmatprep.subr.mxu0 0.0
      %1175 = vmatpush1.msra.mxu0 0.0
      %1176 = vmatprep.subr.mxu0 0.0
      %1177 = vmatpush1.msra.mxu0 0.0
      %1178 = vmatprep.subr.mxu0 0.0
      %1179 = vmatpush1.msra.mxu0 0.0
      %1180 = vmatprep.subr.mxu0 0.0
      %1181 = vmatpush1.msra.mxu0 0.0
      %1182 = vmatprep.subr.mxu0 0.0
      %1183 = vmatpush1.msra.mxu0 0.0
      %1184 = vmatprep.subr.mxu0 0.0
      %1185 = vmatpush1.msra.mxu0 0.0
      %1186 = vmatprep.subr.mxu0 0.0
      %1187 = vmatpush1.msra.mxu0 0.0
      %1188 = vmatprep.subr.mxu0 0.0
      %1189 = vmatpush1.msra.mxu0 0.0
      %1190 = vmatprep.subr.mxu0 0.0
      %1191 = vmatpush1.msra.mxu0 0.0
      %1192 = vmatprep.mubr.f32.mxu0 0.0
      %1193 = vmatmul.mubr.f32.gmra.mrb[0].mxu0 %v1093
      %v1194 = vpop.f32.mrb[0].mxu0
      %v1195 = vadd.f32 0.0, %v1194
      %v1196 = vpop.f32.mrb[0].mxu0
      %v1197 = vadd.f32 0.0, %v1196
      %1198 = vmatprep.mubr.f32.mxu0 0.0
      %1199 = vmatmul.mubr.f32.gmra.mrb[0].mxu0 %v1094
      %v1200 = vpop.f32.mrb[0].mxu0
      %v1201 = vadd.f32 0.0, %v1200
      %v1202 = vpop.f32.mrb[0].mxu0
      %v1203 = vadd.f32 0.0, %v1202
      %1204 = vdwg.mxu0
      %v1205 = vadd.f32 %v1089, %v1195
      %v1206 = vadd.f32 %v1090, %v1197
      %v1207 = vadd.f32 %v1091, %v1201
      %v1208 = vadd.f32 %v1092, %v1203
      %v1210 = vlaneseq
      %v1211 = vshrl.u32 %v1210, 7
      %v1212 = vsub.s32 0, %v1211
      %v1213 = vrot.slane %v171, %v1212
      %v1214 = vlaneseq
      %v1215 = vshrl.u32 %v1214, 7
      %v1216 = vsub.s32 1, %v1215
      %v1217 = vrot.slane %v171, %v1216
      %v1220 = vadd.f32 %v1205, %v1213
      %v1221 = vadd.f32 %v1206, %v1217
      %v1222 = vadd.f32 %v1207, %v1213
      %v1223 = vadd.f32 %v1208, %v1217
      %1224 = vst [vmem:[%s170] sm:$0xff] %v1220
      %1225 = vst [vmem:[%s170 + $0x8] sm:$0xff] %v1221
      %1226 = vst [vmem:[%s170 + $0x10] sm:$0xff] %v1222
      %1227 = vst [vmem:[%s170 + $0x18] sm:$0xff] %v1223
      %v1228 = vld [vmem:[%s511] sm:$0xff]
      %v1229 = vld [vmem:[%s511 + $0x8] sm:$0xff]
      %v1230 = vld [vmem:[%s1] sm:$0xff]
      %v1231 = vld [vmem:[%s1 + $0x8] sm:$0xff]
      %v1232 = vld [vmem:[%s1 + $0x10] sm:$0xff]
      %v1233 = vld [vmem:[%s1 + $0x18] sm:$0xff]
      %v1234 = vld [vmem:[%s1 + $0x20] sm:$0xff]
      %v1235 = vld [vmem:[%s1 + $0x28] sm:$0xff]
      %v1236 = vld [vmem:[%s1 + $0x30] sm:$0xff]
      %v1237 = vld [vmem:[%s1 + $0x38] sm:$0xff]
      %v1238 = vld [vmem:[%s1 + $0x40] sm:$0xff]
      %v1239 = vld [vmem:[%s1 + $0x48] sm:$0xff]
      %v1240 = vld [vmem:[%s1 + $0x50] sm:$0xff]
      %v1241 = vld [vmem:[%s1 + $0x58] sm:$0xff]
      %v1242 = vld [vmem:[%s1 + $0x60] sm:$0xff]
      %v1243 = vld [vmem:[%s1 + $0x68] sm:$0xff]
      %v1244 = vld [vmem:[%s1 + $0x70] sm:$0xff]
      %v1245 = vld [vmem:[%s1 + $0x78] sm:$0xff]
      %v1246 = vld [vmem:[%s1 + $0x80] sm:$0xff]
      %v1247 = vld [vmem:[%s1 + $0x88] sm:$0xff]
      %v1248 = vld [vmem:[%s1 + $0x90] sm:$0xff]
      %v1249 = vld [vmem:[%s1 + $0x98] sm:$0xff]
      %v1250 = vld [vmem:[%s1 + $0xa0] sm:$0xff]
      %v1251 = vld [vmem:[%s1 + $0xa8] sm:$0xff]
      %v1252 = vld [vmem:[%s1 + $0xb0] sm:$0xff]
      %v1253 = vld [vmem:[%s1 + $0xb8] sm:$0xff]
      %v1254 = vld [vmem:[%s1 + $0xc0] sm:$0xff]
      %v1255 = vld [vmem:[%s1 + $0xc8] sm:$0xff]
      %v1256 = vld [vmem:[%s1 + $0xd0] sm:$0xff]
      %v1257 = vld [vmem:[%s1 + $0xd8] sm:$0xff]
      %v1258 = vld [vmem:[%s1 + $0xe0] sm:$0xff]
      %v1259 = vld [vmem:[%s1 + $0xe8] sm:$0xff]
      %v1260 = vld [vmem:[%s1 + $0xf0] sm:$0xff]
      %v1261 = vld [vmem:[%s1 + $0xf8] sm:$0xff]
      %v1262 = vld [vmem:[%s511 + $0x1] sm:$0xff]
      %v1263 = vld [vmem:[%s511 + $0x9] sm:$0xff]
      %v1264 = vld [vmem:[%s208] sm:$0xff]
      %v1265 = vld [vmem:[%s208 + $0x8] sm:$0xff]
      %v1266 = vld [vmem:[%s208 + $0x10] sm:$0xff]
      %v1267 = vld [vmem:[%s208 + $0x18] sm:$0xff]
      %v1268 = vld [vmem:[%s208 + $0x20] sm:$0xff]
      %v1269 = vld [vmem:[%s208 + $0x28] sm:$0xff]
      %v1270 = vld [vmem:[%s208 + $0x30] sm:$0xff]
      %v1271 = vld [vmem:[%s208 + $0x38] sm:$0xff]
      %v1272 = vld [vmem:[%s208 + $0x40] sm:$0xff]
      %v1273 = vld [vmem:[%s208 + $0x48] sm:$0xff]
      %v1274 = vld [vmem:[%s208 + $0x50] sm:$0xff]
      %v1275 = vld [vmem:[%s208 + $0x58] sm:$0xff]
      %v1276 = vld [vmem:[%s208 + $0x60] sm:$0xff]
      %v1277 = vld [vmem:[%s208 + $0x68] sm:$0xff]
      %v1278 = vld [vmem:[%s208 + $0x70] sm:$0xff]
      %v1279 = vld [vmem:[%s208 + $0x78] sm:$0xff]
      %v1280 = vld [vmem:[%s208 + $0x80] sm:$0xff]
      %v1281 = vld [vmem:[%s208 + $0x88] sm:$0xff]
      %v1282 = vld [vmem:[%s208 + $0x90] sm:$0xff]
      %v1283 = vld [vmem:[%s208 + $0x98] sm:$0xff]
      %v1284 = vld [vmem:[%s208 + $0xa0] sm:$0xff]
      %v1285 = vld [vmem:[%s208 + $0xa8] sm:$0xff]
      %v1286 = vld [vmem:[%s208 + $0xb0] sm:$0xff]
      %v1287 = vld [vmem:[%s208 + $0xb8] sm:$0xff]
      %v1288 = vld [vmem:[%s208 + $0xc0] sm:$0xff]
      %v1289 = vld [vmem:[%s208 + $0xc8] sm:$0xff]
      %v1290 = vld [vmem:[%s208 + $0xd0] sm:$0xff]
      %v1291 = vld [vmem:[%s208 + $0xd8] sm:$0xff]
      %v1292 = vld [vmem:[%s208 + $0xe0] sm:$0xff]
      %v1293 = vld [vmem:[%s208 + $0xe8] sm:$0xff]
      %v1294 = vld [vmem:[%s208 + $0xf0] sm:$0xff]
      %v1295 = vld [vmem:[%s208 + $0xf8] sm:$0xff]
      %1296 = vmatprep.subr.mxu0 %v1265
      %1297 = vmatpush1.msra.mxu0 %v1264
      %1298 = vmatprep.subr.mxu0 %v1267
      %1299 = vmatpush1.msra.mxu0 %v1266
      %1300 = vmatprep.subr.mxu0 %v1269
      %1301 = vmatpush1.msra.mxu0 %v1268
      %1302 = vmatprep.subr.mxu0 %v1271
      %1303 = vmatpush1.msra.mxu0 %v1270
      %1304 = vmatprep.subr.mxu0 %v1273
      %1305 = vmatpush1.msra.mxu0 %v1272
      %1306 = vmatprep.subr.mxu0 %v1275
      %1307 = vmatpush1.msra.mxu0 %v1274
      %1308 = vmatprep.subr.mxu0 %v1277
      %1309 = vmatpush1.msra.mxu0 %v1276
      %1310 = vmatprep.subr.mxu0 %v1279
      %1311 = vmatpush1.msra.mxu0 %v1278
      %1312 = vmatprep.subr.mxu0 %v1281
      %1313 = vmatpush1.msra.mxu0 %v1280
      %1314 = vmatprep.subr.mxu0 %v1283
      %1315 = vmatpush1.msra.mxu0 %v1282
      %1316 = vmatprep.subr.mxu0 %v1285
      %1317 = vmatpush1.msra.mxu0 %v1284
      %1318 = vmatprep.subr.mxu0 %v1287
      %1319 = vmatpush1.msra.mxu0 %v1286
      %1320 = vmatprep.subr.mxu0 %v1289
      %1321 = vmatpush1.msra.mxu0 %v1288
      %1322 = vmatprep.subr.mxu0 %v1291
      %1323 = vmatpush1.msra.mxu0 %v1290
      %1324 = vmatprep.subr.mxu0 %v1293
      %1325 = vmatpush1.msra.mxu0 %v1292
      %1326 = vmatprep.subr.mxu0 %v1295
      %1327 = vmatpush1.msra.mxu0 %v1294
      %1328 = vmatprep.subr.mxu0 0.0
      %1329 = vmatpush1.msra.mxu0 0.0
      %1330 = vmatprep.subr.mxu0 0.0
      %1331 = vmatpush1.msra.mxu0 0.0
      %1332 = vmatprep.subr.mxu0 0.0
      %1333 = vmatpush1.msra.mxu0 0.0
      %1334 = vmatprep.subr.mxu0 0.0
      %1335 = vmatpush1.msra.mxu0 0.0
      %1336 = vmatprep.subr.mxu0 0.0
      %1337 = vmatpush1.msra.mxu0 0.0
      %1338 = vmatprep.subr.mxu0 0.0
      %1339 = vmatpush1.msra.mxu0 0.0
      %1340 = vmatprep.subr.mxu0 0.0
      %1341 = vmatpush1.msra.mxu0 0.0
      %1342 = vmatprep.subr.mxu0 0.0
      %1343 = vmatpush1.msra.mxu0 0.0
      %1344 = vmatprep.subr.mxu0 0.0
      %1345 = vmatpush1.msra.mxu0 0.0
      %1346 = vmatprep.subr.mxu0 0.0
      %1347 = vmatpush1.msra.mxu0 0.0
      %1348 = vmatprep.subr.mxu0 0.0
      %1349 = vmatpush1.msra.mxu0 0.0
      %1350 = vmatprep.subr.mxu0 0.0
      %1351 = vmatpush1.msra.mxu0 0.0
      %1352 = vmatprep.subr.mxu0 0.0
      %1353 = vmatpush1.msra.mxu0 0.0
      %1354 = vmatprep.subr.mxu0 0.0
      %1355 = vmatpush1.msra.mxu0 0.0
      %1356 = vmatprep.subr.mxu0 0.0
      %1357 = vmatpush1.msra.mxu0 0.0
      %1358 = vmatprep.subr.mxu0 0.0
      %1359 = vmatpush1.msra.mxu0 0.0
      %1360 = vmatprep.mubr.f32.mxu0 0.0
      %1361 = vmatmul.mubr.f32.gmra.mrb[0].mxu0 %v1262
      %v1362 = vpop.f32.mrb[0].mxu0
      %v1363 = vadd.f32 0.0, %v1362
      %v1364 = vpop.f32.mrb[0].mxu0
      %v1365 = vadd.f32 0.0, %v1364
      %1366 = vmatprep.mubr.f32.mxu0 0.0
      %1367 = vmatmul.mubr.f32.gmra.mrb[0].mxu0 %v1263
      %v1368 = vpop.f32.mrb[0].mxu0
      %v1369 = vadd.f32 0.0, %v1368
      %v1370 = vpop.f32.mrb[0].mxu0
      %v1371 = vadd.f32 0.0, %v1370
      %1372 = vdwg.mxu0
      %1373 = vmatprep.subr.mxu0 %v1231
      %1374 = vmatpush1.msra.mxu0 %v1230
      %1375 = vmatprep.subr.mxu0 %v1233
      %1376 = vmatpush1.msra.mxu0 %v1232
      %1377 = vmatprep.subr.mxu0 %v1235
      %1378 = vmatpush1.msra.mxu0 %v1234
      %1379 = vmatprep.subr.mxu0 %v1237
      %1380 = vmatpush1.msra.mxu0 %v1236
      %1381 = vmatprep.subr.mxu0 %v1239
      %1382 = vmatpush1.msra.mxu0 %v1238
      %1383 = vmatprep.subr.mxu0 %v1241
      %1384 = vmatpush1.msra.mxu0 %v1240
      %1385 = vmatprep.subr.mxu0 %v1243
      %1386 = vmatpush1.msra.mxu0 %v1242
      %1387 = vmatprep.subr.mxu0 %v1245
      %1388 = vmatpush1.msra.mxu0 %v1244
      %1389 = vmatprep.subr.mxu0 %v1247
      %1390 = vmatpush1.msra.mxu0 %v1246
      %1391 = vmatprep.subr.mxu0 %v1249
      %1392 = vmatpush1.msra.mxu0 %v1248
      %1393 = vmatprep.subr.mxu0 %v1251
      %1394 = vmatpush1.msra.mxu0 %v1250
      %1395 = vmatprep.subr.mxu0 %v1253
      %1396 = vmatpush1.msra.mxu0 %v1252
      %1397 = vmatprep.subr.mxu0 %v1255
      %1398 = vmatpush1.msra.mxu0 %v1254
      %1399 = vmatprep.subr.mxu0 %v1257
      %1400 = vmatpush1.msra.mxu0 %v1256
      %1401 = vmatprep.subr.mxu0 %v1259
      %1402 = vmatpush1.msra.mxu0 %v1258
      %1403 = vmatprep.subr.mxu0 %v1261
      %1404 = vmatpush1.msra.mxu0 %v1260
      %1405 = vmatprep.subr.mxu0 0.0
      %1406 = vmatpush1.msra.mxu0 0.0
      %1407 = vmatprep.subr.mxu0 0.0
      %1408 = vmatpush1.msra.mxu0 0.0
      %1409 = vmatprep.subr.mxu0 0.0
      %1410 = vmatpush1.msra.mxu0 0.0
      %1411 = vmatprep.subr.mxu0 0.0
      %1412 = vmatpush1.msra.mxu0 0.0
      %1413 = vmatprep.subr.mxu0 0.0
      %1414 = vmatpush1.msra.mxu0 0.0
      %1415 = vmatprep.subr.mxu0 0.0
      %1416 = vmatpush1.msra.mxu0 0.0
      %1417 = vmatprep.subr.mxu0 0.0
      %1418 = vmatpush1.msra.mxu0 0.0
      %1419 = vmatprep.subr.mxu0 0.0
      %1420 = vmatpush1.msra.mxu0 0.0
      %1421 = vmatprep.subr.mxu0 0.0
      %1422 = vmatpush1.msra.mxu0 0.0
      %1423 = vmatprep.subr.mxu0 0.0
      %1424 = vmatpush1.msra.mxu0 0.0
      %1425 = vmatprep.subr.mxu0 0.0
      %1426 = vmatpush1.msra.mxu0 0.0
      %1427 = vmatprep.subr.mxu0 0.0
      %1428 = vmatpush1.msra.mxu0 0.0
      %1429 = vmatprep.subr.mxu0 0.0
      %1430 = vmatpush1.msra.mxu0 0.0
      %1431 = vmatprep.subr.mxu0 0.0
      %1432 = vmatpush1.msra.mxu0 0.0
      %1433 = vmatprep.subr.mxu0 0.0
      %1434 = vmatpush1.msra.mxu0 0.0
      %1435 = vmatprep.subr.mxu0 0.0
      %1436 = vmatpush1.msra.mxu0 0.0
      %1437 = vmatprep.mubr.f32.mxu0 0.0
      %1438 = vmatmul.mubr.f32.gmra.mrb[0].mxu0 %v1228
      %v1439 = vpop.f32.mrb[0].mxu0
      %v1440 = vadd.f32 %v1363, %v1439
      %v1441 = vpop.f32.mrb[0].mxu0
      %v1442 = vadd.f32 %v1365, %v1441
      %1443 = vmatprep.mubr.f32.mxu0 0.0
      %1444 = vmatmul.mubr.f32.gmra.mrb[0].mxu0 %v1229
      %v1445 = vpop.f32.mrb[0].mxu0
      %v1446 = vadd.f32 %v1369, %v1445
      %v1447 = vpop.f32.mrb[0].mxu0
      %v1448 = vadd.f32 %v1371, %v1447
      %1449 = vdwg.mxu0
      %v1450 = vld [vmem:[%s511 + $0x2] sm:$0xff]
      %v1451 = vld [vmem:[%s511 + $0xa] sm:$0xff]
      %v1452 = vld [vmem:[%s397] sm:$0xff]
      %v1453 = vld [vmem:[%s397 + $0x8] sm:$0xff]
      %v1454 = vld [vmem:[%s397 + $0x10] sm:$0xff]
      %v1455 = vld [vmem:[%s397 + $0x18] sm:$0xff]
      %v1456 = vld [vmem:[%s397 + $0x20] sm:$0xff]
      %v1457 = vld [vmem:[%s397 + $0x28] sm:$0xff]
      %v1458 = vld [vmem:[%s397 + $0x30] sm:$0xff]
      %v1459 = vld [vmem:[%s397 + $0x38] sm:$0xff]
      %v1460 = vld [vmem:[%s397 + $0x40] sm:$0xff]
      %v1461 = vld [vmem:[%s397 + $0x48] sm:$0xff]
      %v1462 = vld [vmem:[%s397 + $0x50] sm:$0xff]
      %v1463 = vld [vmem:[%s397 + $0x58] sm:$0xff]
      %v1464 = vld [vmem:[%s397 + $0x60] sm:$0xff]
      %v1465 = vld [vmem:[%s397 + $0x68] sm:$0xff]
      %v1466 = vld [vmem:[%s397 + $0x70] sm:$0xff]
      %v1467 = vld [vmem:[%s397 + $0x78] sm:$0xff]
      %v1468 = vld [vmem:[%s397 + $0x80] sm:$0xff]
      %v1469 = vld [vmem:[%s397 + $0x88] sm:$0xff]
      %v1470 = vld [vmem:[%s397 + $0x90] sm:$0xff]
      %v1471 = vld [vmem:[%s397 + $0x98] sm:$0xff]
      %v1472 = vld [vmem:[%s397 + $0xa0] sm:$0xff]
      %v1473 = vld [vmem:[%s397 + $0xa8] sm:$0xff]
      %v1474 = vld [vmem:[%s397 + $0xb0] sm:$0xff]
      %v1475 = vld [vmem:[%s397 + $0xb8] sm:$0xff]
      %v1476 = vld [vmem:[%s397 + $0xc0] sm:$0xff]
      %v1477 = vld [vmem:[%s397 + $0xc8] sm:$0xff]
      %v1478 = vld [vmem:[%s397 + $0xd0] sm:$0xff]
      %v1479 = vld [vmem:[%s397 + $0xd8] sm:$0xff]
      %v1480 = vld [vmem:[%s397 + $0xe0] sm:$0xff]
      %v1481 = vld [vmem:[%s397 + $0xe8] sm:$0xff]
      %v1482 = vld [vmem:[%s397 + $0xf0] sm:$0xff]
      %v1483 = vld [vmem:[%s397 + $0xf8] sm:$0xff]
      %1484 = vmatprep.subr.mxu0 %v1453
      %1485 = vmatpush1.msra.mxu0 %v1452
      %1486 = vmatprep.subr.mxu0 %v1455
      %1487 = vmatpush1.msra.mxu0 %v1454
      %1488 = vmatprep.subr.mxu0 %v1457
      %1489 = vmatpush1.msra.mxu0 %v1456
      %1490 = vmatprep.subr.mxu0 %v1459
      %1491 = vmatpush1.msra.mxu0 %v1458
      %1492 = vmatprep.subr.mxu0 %v1461
      %1493 = vmatpush1.msra.mxu0 %v1460
      %1494 = vmatprep.subr.mxu0 %v1463
      %1495 = vmatpush1.msra.mxu0 %v1462
      %1496 = vmatprep.subr.mxu0 %v1465
      %1497 = vmatpush1.msra.mxu0 %v1464
      %1498 = vmatprep.subr.mxu0 %v1467
      %1499 = vmatpush1.msra.mxu0 %v1466
      %1500 = vmatprep.subr.mxu0 %v1469
      %1501 = vmatpush1.msra.mxu0 %v1468
      %1502 = vmatprep.subr.mxu0 %v1471
      %1503 = vmatpush1.msra.mxu0 %v1470
      %1504 = vmatprep.subr.mxu0 %v1473
      %1505 = vmatpush1.msra.mxu0 %v1472
      %1506 = vmatprep.subr.mxu0 %v1475
      %1507 = vmatpush1.msra.mxu0 %v1474
      %1508 = vmatprep.subr.mxu0 %v1477
      %1509 = vmatpush1.msra.mxu0 %v1476
      %1510 = vmatprep.subr.mxu0 %v1479
      %1511 = vmatpush1.msra.mxu0 %v1478
      %1512 = vmatprep.subr.mxu0 %v1481
      %1513 = vmatpush1.msra.mxu0 %v1480
      %1514 = vmatprep.subr.mxu0 %v1483
      %1515 = vmatpush1.msra.mxu0 %v1482
      %1516 = vmatprep.subr.mxu0 0.0
      %1517 = vmatpush1.msra.mxu0 0.0
      %1518 = vmatprep.subr.mxu0 0.0
      %1519 = vmatpush1.msra.mxu0 0.0
      %1520 = vmatprep.subr.mxu0 0.0
      %1521 = vmatpush1.msra.mxu0 0.0
      %1522 = vmatprep.subr.mxu0 0.0
      %1523 = vmatpush1.msra.mxu0 0.0
      %1524 = vmatprep.subr.mxu0 0.0
      %1525 = vmatpush1.msra.mxu0 0.0
      %1526 = vmatprep.subr.mxu0 0.0
      %1527 = vmatpush1.msra.mxu0 0.0
      %1528 = vmatprep.subr.mxu0 0.0
      %1529 = vmatpush1.msra.mxu0 0.0
      %1530 = vmatprep.subr.mxu0 0.0
      %1531 = vmatpush1.msra.mxu0 0.0
      %1532 = vmatprep.subr.mxu0 0.0
      %1533 = vmatpush1.msra.mxu0 0.0
      %1534 = vmatprep.subr.mxu0 0.0
      %1535 = vmatpush1.msra.mxu0 0.0
      %1536 = vmatprep.subr.mxu0 0.0
      %1537 = vmatpush1.msra.mxu0 0.0
      %1538 = vmatprep.subr.mxu0 0.0
      %1539 = vmatpush1.msra.mxu0 0.0
      %1540 = vmatprep.subr.mxu0 0.0
      %1541 = vmatpush1.msra.mxu0 0.0
      %1542 = vmatprep.subr.mxu0 0.0
      %1543 = vmatpush1.msra.mxu0 0.0
      %1544 = vmatprep.subr.mxu0 0.0
      %1545 = vmatpush1.msra.mxu0 0.0
      %1546 = vmatprep.subr.mxu0 0.0
      %1547 = vmatpush1.msra.mxu0 0.0
      %1548 = vmatprep.mubr.f32.mxu0 0.0
      %1549 = vmatmul.mubr.f32.gmra.mrb[0].mxu0 %v1450
      %v1550 = vpop.f32.mrb[0].mxu0
      %v1551 = vadd.f32 0.0, %v1550
      %v1552 = vpop.f32.mrb[0].mxu0
      %v1553 = vadd.f32 0.0, %v1552
      %1554 = vmatprep.mubr.f32.mxu0 0.0
      %1555 = vmatmul.mubr.f32.gmra.mrb[0].mxu0 %v1451
      %v1556 = vpop.f32.mrb[0].mxu0
      %v1557 = vadd.f32 0.0, %v1556
      %v1558 = vpop.f32.mrb[0].mxu0
      %v1559 = vadd.f32 0.0, %v1558
      %1560 = vdwg.mxu0
      %v1561 = vadd.f32 %v1440, %v1551
      %v1562 = vadd.f32 %v1442, %v1553
      %v1563 = vadd.f32 %v1446, %v1557
      %v1564 = vadd.f32 %v1448, %v1559
      %v1565 = vld [vmem:[%s860] sm:$0xff]
      %v1566 = vld [vmem:[%s860 + $0x8] sm:$0xff]
      %v1567 = vld [vmem:[%s514] sm:$0xff]
      %v1568 = vld [vmem:[%s514 + $0x8] sm:$0xff]
      %v1569 = vld [vmem:[%s514 + $0x10] sm:$0xff]
      %v1570 = vld [vmem:[%s514 + $0x18] sm:$0xff]
      %v1571 = vld [vmem:[%s514 + $0x20] sm:$0xff]
      %v1572 = vld [vmem:[%s514 + $0x28] sm:$0xff]
      %v1573 = vld [vmem:[%s514 + $0x30] sm:$0xff]
      %v1574 = vld [vmem:[%s514 + $0x38] sm:$0xff]
      %v1575 = vld [vmem:[%s514 + $0x40] sm:$0xff]
      %v1576 = vld [vmem:[%s514 + $0x48] sm:$0xff]
      %v1577 = vld [vmem:[%s514 + $0x50] sm:$0xff]
      %v1578 = vld [vmem:[%s514 + $0x58] sm:$0xff]
      %v1579 = vld [vmem:[%s514 + $0x60] sm:$0xff]
      %v1580 = vld [vmem:[%s514 + $0x68] sm:$0xff]
      %v1581 = vld [vmem:[%s514 + $0x70] sm:$0xff]
      %v1582 = vld [vmem:[%s514 + $0x78] sm:$0xff]
      %v1583 = vld [vmem:[%s514 + $0x80] sm:$0xff]
      %v1584 = vld [vmem:[%s514 + $0x88] sm:$0xff]
      %v1585 = vld [vmem:[%s514 + $0x90] sm:$0xff]
      %v1586 = vld [vmem:[%s514 + $0x98] sm:$0xff]
      %v1587 = vld [vmem:[%s514 + $0xa0] sm:$0xff]
      %v1588 = vld [vmem:[%s514 + $0xa8] sm:$0xff]
      %v1589 = vld [vmem:[%s514 + $0xb0] sm:$0xff]
      %v1590 = vld [vmem:[%s514 + $0xb8] sm:$0xff]
      %v1591 = vld [vmem:[%s514 + $0xc0] sm:$0xff]
      %v1592 = vld [vmem:[%s514 + $0xc8] sm:$0xff]
      %v1593 = vld [vmem:[%s514 + $0xd0] sm:$0xff]
      %v1594 = vld [vmem:[%s514 + $0xd8] sm:$0xff]
      %v1595 = vld [vmem:[%s514 + $0xe0] sm:$0xff]
      %v1596 = vld [vmem:[%s514 + $0xe8] sm:$0xff]
      %v1597 = vld [vmem:[%s514 + $0xf0] sm:$0xff]
      %v1598 = vld [vmem:[%s514 + $0xf8] sm:$0xff]
      %1599 = vmatprep.subr.mxu0 %v1568
      %1600 = vmatpush1.msra.mxu0 %v1567
      %1601 = vmatprep.subr.mxu0 %v1570
      %1602 = vmatpush1.msra.mxu0 %v1569
      %1603 = vmatprep.subr.mxu0 %v1572
      %1604 = vmatpush1.msra.mxu0 %v1571
      %1605 = vmatprep.subr.mxu0 %v1574
      %1606 = vmatpush1.msra.mxu0 %v1573
      %1607 = vmatprep.subr.mxu0 %v1576
      %1608 = vmatpush1.msra.mxu0 %v1575
      %1609 = vmatprep.subr.mxu0 %v1578
      %1610 = vmatpush1.msra.mxu0 %v1577
      %1611 = vmatprep.subr.mxu0 %v1580
      %1612 = vmatpush1.msra.mxu0 %v1579
      %1613 = vmatprep.subr.mxu0 %v1582
      %1614 = vmatpush1.msra.mxu0 %v1581
      %1615 = vmatprep.subr.mxu0 %v1584
      %1616 = vmatpush1.msra.mxu0 %v1583
      %1617 = vmatprep.subr.mxu0 %v1586
      %1618 = vmatpush1.msra.mxu0 %v1585
      %1619 = vmatprep.subr.mxu0 %v1588
      %1620 = vmatpush1.msra.mxu0 %v1587
      %1621 = vmatprep.subr.mxu0 %v1590
      %1622 = vmatpush1.msra.mxu0 %v1589
      %1623 = vmatprep.subr.mxu0 %v1592
      %1624 = vmatpush1.msra.mxu0 %v1591
      %1625 = vmatprep.subr.mxu0 %v1594
      %1626 = vmatpush1.msra.mxu0 %v1593
      %1627 = vmatprep.subr.mxu0 %v1596
      %1628 = vmatpush1.msra.mxu0 %v1595
      %1629 = vmatprep.subr.mxu0 %v1598
      %1630 = vmatpush1.msra.mxu0 %v1597
      %1631 = vmatprep.subr.mxu0 0.0
      %1632 = vmatpush1.msra.mxu0 0.0
      %1633 = vmatprep.subr.mxu0 0.0
      %1634 = vmatpush1.msra.mxu0 0.0
      %1635 = vmatprep.subr.mxu0 0.0
      %1636 = vmatpush1.msra.mxu0 0.0
      %1637 = vmatprep.subr.mxu0 0.0
      %1638 = vmatpush1.msra.mxu0 0.0
      %1639 = vmatprep.subr.mxu0 0.0
      %1640 = vmatpush1.msra.mxu0 0.0
      %1641 = vmatprep.subr.mxu0 0.0
      %1642 = vmatpush1.msra.mxu0 0.0
      %1643 = vmatprep.subr.mxu0 0.0
      %1644 = vmatpush1.msra.mxu0 0.0
      %1645 = vmatprep.subr.mxu0 0.0
      %1646 = vmatpush1.msra.mxu0 0.0
      %1647 = vmatprep.subr.mxu0 0.0
      %1648 = vmatpush1.msra.mxu0 0.0
      %1649 = vmatprep.subr.mxu0 0.0
      %1650 = vmatpush1.msra.mxu0 0.0
      %1651 = vmatprep.subr.mxu0 0.0
      %1652 = vmatpush1.msra.mxu0 0.0
      %1653 = vmatprep.subr.mxu0 0.0
      %1654 = vmatpush1.msra.mxu0 0.0
      %1655 = vmatprep.subr.mxu0 0.0
      %1656 = vmatpush1.msra.mxu0 0.0
      %1657 = vmatprep.subr.mxu0 0.0
      %1658 = vmatpush1.msra.mxu0 0.0
      %1659 = vmatprep.subr.mxu0 0.0
      %1660 = vmatpush1.msra.mxu0 0.0
      %1661 = vmatprep.subr.mxu0 0.0
      %1662 = vmatpush1.msra.mxu0 0.0
      %1663 = vmatprep.mubr.f32.mxu0 0.0
      %1664 = vmatmul.mubr.f32.gmra.mrb[0].mxu0 %v1565
      %v1665 = vpop.f32.mrb[0].mxu0
      %v1666 = vadd.f32 0.0, %v1665
      %v1667 = vpop.f32.mrb[0].mxu0
      %v1668 = vadd.f32 0.0, %v1667
      %1669 = vmatprep.mubr.f32.mxu0 0.0
      %1670 = vmatmul.mubr.f32.gmra.mrb[0].mxu0 %v1566
      %v1671 = vpop.f32.mrb[0].mxu0
      %v1672 = vadd.f32 0.0, %v1671
      %v1673 = vpop.f32.mrb[0].mxu0
      %v1674 = vadd.f32 0.0, %v1673
      %1675 = vdwg.mxu0
      %v1676 = vadd.f32 %v1561, %v1666
      %v1677 = vadd.f32 %v1562, %v1668
      %v1678 = vadd.f32 %v1563, %v1672
      %v1679 = vadd.f32 %v1564, %v1674
      %v1680 = vld [vmem:[%s860 + $0x1] sm:$0xff]
      %v1681 = vld [vmem:[%s860 + $0x9] sm:$0xff]
      %v1682 = vld [vmem:[%s630] sm:$0xff]
      %v1683 = vld [vmem:[%s630 + $0x8] sm:$0xff]
      %v1684 = vld [vmem:[%s630 + $0x10] sm:$0xff]
      %v1685 = vld [vmem:[%s630 + $0x18] sm:$0xff]
      %v1686 = vld [vmem:[%s630 + $0x20] sm:$0xff]
      %v1687 = vld [vmem:[%s630 + $0x28] sm:$0xff]
      %v1688 = vld [vmem:[%s630 + $0x30] sm:$0xff]
      %v1689 = vld [vmem:[%s630 + $0x38] sm:$0xff]
      %v1690 = vld [vmem:[%s630 + $0x40] sm:$0xff]
      %v1691 = vld [vmem:[%s630 + $0x48] sm:$0xff]
      %v1692 = vld [vmem:[%s630 + $0x50] sm:$0xff]
      %v1693 = vld [vmem:[%s630 + $0x58] sm:$0xff]
      %v1694 = vld [vmem:[%s630 + $0x60] sm:$0xff]
      %v1695 = vld [vmem:[%s630 + $0x68] sm:$0xff]
      %v1696 = vld [vmem:[%s630 + $0x70] sm:$0xff]
      %v1697 = vld [vmem:[%s630 + $0x78] sm:$0xff]
      %v1698 = vld [vmem:[%s630 + $0x80] sm:$0xff]
      %v1699 = vld [vmem:[%s630 + $0x88] sm:$0xff]
      %v1700 = vld [vmem:[%s630 + $0x90] sm:$0xff]
      %v1701 = vld [vmem:[%s630 + $0x98] sm:$0xff]
      %v1702 = vld [vmem:[%s630 + $0xa0] sm:$0xff]
      %v1703 = vld [vmem:[%s630 + $0xa8] sm:$0xff]
      %v1704 = vld [vmem:[%s630 + $0xb0] sm:$0xff]
      %v1705 = vld [vmem:[%s630 + $0xb8] sm:$0xff]
      %v1706 = vld [vmem:[%s630 + $0xc0] sm:$0xff]
      %v1707 = vld [vmem:[%s630 + $0xc8] sm:$0xff]
      %v1708 = vld [vmem:[%s630 + $0xd0] sm:$0xff]
      %v1709 = vld [vmem:[%s630 + $0xd8] sm:$0xff]
      %v1710 = vld [vmem:[%s630 + $0xe0] sm:$0xff]
      %v1711 = vld [vmem:[%s630 + $0xe8] sm:$0xff]
      %v1712 = vld [vmem:[%s630 + $0xf0] sm:$0xff]
      %v1713 = vld [vmem:[%s630 + $0xf8] sm:$0xff]
      %1714 = vmatprep.subr.mxu0 %v1683
      %1715 = vmatpush1.msra.mxu0 %v1682
      %1716 = vmatprep.subr.mxu0 %v1685
      %1717 = vmatpush1.msra.mxu0 %v1684
      %1718 = vmatprep.subr.mxu0 %v1687
      %1719 = vmatpush1.msra.mxu0 %v1686
      %1720 = vmatprep.subr.mxu0 %v1689
      %1721 = vmatpush1.msra.mxu0 %v1688
      %1722 = vmatprep.subr.mxu0 %v1691
      %1723 = vmatpush1.msra.mxu0 %v1690
      %1724 = vmatprep.subr.mxu0 %v1693
      %1725 = vmatpush1.msra.mxu0 %v1692
      %1726 = vmatprep.subr.mxu0 %v1695
      %1727 = vmatpush1.msra.mxu0 %v1694
      %1728 = vmatprep.subr.mxu0 %v1697
      %1729 = vmatpush1.msra.mxu0 %v1696
      %1730 = vmatprep.subr.mxu0 %v1699
      %1731 = vmatpush1.msra.mxu0 %v1698
      %1732 = vmatprep.subr.mxu0 %v1701
      %1733 = vmatpush1.msra.mxu0 %v1700
      %1734 = vmatprep.subr.mxu0 %v1703
      %1735 = vmatpush1.msra.mxu0 %v1702
      %1736 = vmatprep.subr.mxu0 %v1705
      %1737 = vmatpush1.msra.mxu0 %v1704
      %1738 = vmatprep.subr.mxu0 %v1707
      %1739 = vmatpush1.msra.mxu0 %v1706
      %1740 = vmatprep.subr.mxu0 %v1709
      %1741 = vmatpush1.msra.mxu0 %v1708
      %1742 = vmatprep.subr.mxu0 %v1711
      %1743 = vmatpush1.msra.mxu0 %v1710
      %1744 = vmatprep.subr.mxu0 %v1713
      %1745 = vmatpush1.msra.mxu0 %v1712
      %1746 = vmatprep.subr.mxu0 0.0
      %1747 = vmatpush1.msra.mxu0 0.0
      %1748 = vmatprep.subr.mxu0 0.0
      %1749 = vmatpush1.msra.mxu0 0.0
      %1750 = vmatprep.subr.mxu0 0.0
      %1751 = vmatpush1.msra.mxu0 0.0
      %1752 = vmatprep.subr.mxu0 0.0
      %1753 = vmatpush1.msra.mxu0 0.0
      %1754 = vmatprep.subr.mxu0 0.0
      %1755 = vmatpush1.msra.mxu0 0.0
      %1756 = vmatprep.subr.mxu0 0.0
      %1757 = vmatpush1.msra.mxu0 0.0
      %1758 = vmatprep.subr.mxu0 0.0
      %1759 = vmatpush1.msra.mxu0 0.0
      %1760 = vmatprep.subr.mxu0 0.0
      %1761 = vmatpush1.msra.mxu0 0.0
      %1762 = vmatprep.subr.mxu0 0.0
      %1763 = vmatpush1.msra.mxu0 0.0
      %1764 = vmatprep.subr.mxu0 0.0
      %1765 = vmatpush1.msra.mxu0 0.0
      %1766 = vmatprep.subr.mxu0 0.0
      %1767 = vmatpush1.msra.mxu0 0.0
      %1768 = vmatprep.subr.mxu0 0.0
      %1769 = vmatpush1.msra.mxu0 0.0
      %1770 = vmatprep.subr.mxu0 0.0
      %1771 = vmatpush1.msra.mxu0 0.0
      %1772 = vmatprep.subr.mxu0 0.0
      %1773 = vmatpush1.msra.mxu0 0.0
      %1774 = vmatprep.subr.mxu0 0.0
      %1775 = vmatpush1.msra.mxu0 0.0
      %1776 = vmatprep.subr.mxu0 0.0
      %1777 = vmatpush1.msra.mxu0 0.0
      %1778 = vmatprep.mubr.f32.mxu0 0.0
      %1779 = vmatmul.mubr.f32.gmra.mrb[0].mxu0 %v1680
      %v1780 = vpop.f32.mrb[0].mxu0
      %v1781 = vadd.f32 0.0, %v1780
      %v1782 = vpop.f32.mrb[0].mxu0
      %v1783 = vadd.f32 0.0, %v1782
      %1784 = vmatprep.mubr.f32.mxu0 0.0
      %1785 = vmatmul.mubr.f32.gmra.mrb[0].mxu0 %v1681
      %v1786 = vpop.f32.mrb[0].mxu0
      %v1787 = vadd.f32 0.0, %v1786
      %v1788 = vpop.f32.mrb[0].mxu0
      %v1789 = vadd.f32 0.0, %v1788
      %1790 = vdwg.mxu0
      %v1791 = vadd.f32 %v1676, %v1781
      %v1792 = vadd.f32 %v1677, %v1783
      %v1793 = vadd.f32 %v1678, %v1787
      %v1794 = vadd.f32 %v1679, %v1789
      %v1795 = vld [vmem:[%s860 + $0x2] sm:$0xff]
      %v1796 = vld [vmem:[%s860 + $0xa] sm:$0xff]
      %v1797 = vld [vmem:[%s746] sm:$0xff]
      %v1798 = vld [vmem:[%s746 + $0x8] sm:$0xff]
      %v1799 = vld [vmem:[%s746 + $0x10] sm:$0xff]
      %v1800 = vld [vmem:[%s746 + $0x18] sm:$0xff]
      %v1801 = vld [vmem:[%s746 + $0x20] sm:$0xff]
      %v1802 = vld [vmem:[%s746 + $0x28] sm:$0xff]
      %v1803 = vld [vmem:[%s746 + $0x30] sm:$0xff]
      %v1804 = vld [vmem:[%s746 + $0x38] sm:$0xff]
      %v1805 = vld [vmem:[%s746 + $0x40] sm:$0xff]
      %v1806 = vld [vmem:[%s746 + $0x48] sm:$0xff]
      %v1807 = vld [vmem:[%s746 + $0x50] sm:$0xff]
      %v1808 = vld [vmem:[%s746 + $0x58] sm:$0xff]
      %v1809 = vld [vmem:[%s746 + $0x60] sm:$0xff]
      %v1810 = vld [vmem:[%s746 + $0x68] sm:$0xff]
      %v1811 = vld [vmem:[%s746 + $0x70] sm:$0xff]
      %v1812 = vld [vmem:[%s746 + $0x78] sm:$0xff]
      %v1813 = vld [vmem:[%s746 + $0x80] sm:$0xff]
      %v1814 = vld [vmem:[%s746 + $0x88] sm:$0xff]
      %v1815 = vld [vmem:[%s746 + $0x90] sm:$0xff]
      %v1816 = vld [vmem:[%s746 + $0x98] sm:$0xff]
      %v1817 = vld [vmem:[%s746 + $0xa0] sm:$0xff]
      %v1818 = vld [vmem:[%s746 + $0xa8] sm:$0xff]
      %v1819 = vld [vmem:[%s746 + $0xb0] sm:$0xff]
      %v1820 = vld [vmem:[%s746 + $0xb8] sm:$0xff]
      %v1821 = vld [vmem:[%s746 + $0xc0] sm:$0xff]
      %v1822 = vld [vmem:[%s746 + $0xc8] sm:$0xff]
      %v1823 = vld [vmem:[%s746 + $0xd0] sm:$0xff]
      %v1824 = vld [vmem:[%s746 + $0xd8] sm:$0xff]
      %v1825 = vld [vmem:[%s746 + $0xe0] sm:$0xff]
      %v1826 = vld [vmem:[%s746 + $0xe8] sm:$0xff]
      %v1827 = vld [vmem:[%s746 + $0xf0] sm:$0xff]
      %v1828 = vld [vmem:[%s746 + $0xf8] sm:$0xff]
      %1829 = vmatprep.subr.mxu0 %v1798
      %1830 = vmatpush1.msra.mxu0 %v1797
      %1831 = vmatprep.subr.mxu0 %v1800
      %1832 = vmatpush1.msra.mxu0 %v1799
      %1833 = vmatprep.subr.mxu0 %v1802
      %1834 = vmatpush1.msra.mxu0 %v1801
      %1835 = vmatprep.subr.mxu0 %v1804
      %1836 = vmatpush1.msra.mxu0 %v1803
      %1837 = vmatprep.subr.mxu0 %v1806
      %1838 = vmatpush1.msra.mxu0 %v1805
      %1839 = vmatprep.subr.mxu0 %v1808
      %1840 = vmatpush1.msra.mxu0 %v1807
      %1841 = vmatprep.subr.mxu0 %v1810
      %1842 = vmatpush1.msra.mxu0 %v1809
      %1843 = vmatprep.subr.mxu0 %v1812
      %1844 = vmatpush1.msra.mxu0 %v1811
      %1845 = vmatprep.subr.mxu0 %v1814
      %1846 = vmatpush1.msra.mxu0 %v1813
      %1847 = vmatprep.subr.mxu0 %v1816
      %1848 = vmatpush1.msra.mxu0 %v1815
      %1849 = vmatprep.subr.mxu0 %v1818
      %1850 = vmatpush1.msra.mxu0 %v1817
      %1851 = vmatprep.subr.mxu0 %v1820
      %1852 = vmatpush1.msra.mxu0 %v1819
      %1853 = vmatprep.subr.mxu0 %v1822
      %1854 = vmatpush1.msra.mxu0 %v1821
      %1855 = vmatprep.subr.mxu0 %v1824
      %1856 = vmatpush1.msra.mxu0 %v1823
      %1857 = vmatprep.subr.mxu0 %v1826
      %1858 = vmatpush1.msra.mxu0 %v1825
      %1859 = vmatprep.subr.mxu0 %v1828
      %1860 = vmatpush1.msra.mxu0 %v1827
      %1861 = vmatprep.subr.mxu0 0.0
      %1862 = vmatpush1.msra.mxu0 0.0
      %1863 = vmatprep.subr.mxu0 0.0
      %1864 = vmatpush1.msra.mxu0 0.0
      %1865 = vmatprep.subr.mxu0 0.0
      %1866 = vmatpush1.msra.mxu0 0.0
      %1867 = vmatprep.subr.mxu0 0.0
      %1868 = vmatpush1.msra.mxu0 0.0
      %1869 = vmatprep.subr.mxu0 0.0
      %1870 = vmatpush1.msra.mxu0 0.0
      %1871 = vmatprep.subr.mxu0 0.0
      %1872 = vmatpush1.msra.mxu0 0.0
      %1873 = vmatprep.subr.mxu0 0.0
      %1874 = vmatpush1.msra.mxu0 0.0
      %1875 = vmatprep.subr.mxu0 0.0
      %1876 = vmatpush1.msra.mxu0 0.0
      %1877 = vmatprep.subr.mxu0 0.0
      %1878 = vmatpush1.msra.mxu0 0.0
      %1879 = vmatprep.subr.mxu0 0.0
      %1880 = vmatpush1.msra.mxu0 0.0
      %1881 = vmatprep.subr.mxu0 0.0
      %1882 = vmatpush1.msra.mxu0 0.0
      %1883 = vmatprep.subr.mxu0 0.0
      %1884 = vmatpush1.msra.mxu0 0.0
      %1885 = vmatprep.subr.mxu0 0.0
      %1886 = vmatpush1.msra.mxu0 0.0
      %1887 = vmatprep.subr.mxu0 0.0
      %1888 = vmatpush1.msra.mxu0 0.0
      %1889 = vmatprep.subr.mxu0 0.0
      %1890 = vmatpush1.msra.mxu0 0.0
      %1891 = vmatprep.subr.mxu0 0.0
      %1892 = vmatpush1.msra.mxu0 0.0
      %1893 = vmatprep.mubr.f32.mxu0 0.0
      %1894 = vmatmul.mubr.f32.gmra.mrb[0].mxu0 %v1795
      %v1895 = vpop.f32.mrb[0].mxu0
      %v1896 = vadd.f32 0.0, %v1895
      %v1897 = vpop.f32.mrb[0].mxu0
      %v1898 = vadd.f32 0.0, %v1897
      %1899 = vmatprep.mubr.f32.mxu0 0.0
      %1900 = vmatmul.mubr.f32.gmra.mrb[0].mxu0 %v1796
      %v1901 = vpop.f32.mrb[0].mxu0
      %v1902 = vadd.f32 0.0, %v1901
      %v1903 = vpop.f32.mrb[0].mxu0
      %v1904 = vadd.f32 0.0, %v1903
      %1905 = vdwg.mxu0
      %v1906 = vadd.f32 %v1791, %v1896
      %v1907 = vadd.f32 %v1792, %v1898
      %v1908 = vadd.f32 %v1793, %v1902
      %v1909 = vadd.f32 %v1794, %v1904
      %s1910 = scalar_lea.vmem %s165, 72
      %v1911 = vld [vmem:[%s1910] sm:$0xff]
      %v1912 = vld [vmem:[%s1910 + $0x8] sm:$0xff]
      %v1913 = vld [vmem:[%s863] sm:$0xff]
      %v1914 = vld [vmem:[%s863 + $0x8] sm:$0xff]
      %v1915 = vld [vmem:[%s863 + $0x10] sm:$0xff]
      %v1916 = vld [vmem:[%s863 + $0x18] sm:$0xff]
      %v1917 = vld [vmem:[%s863 + $0x20] sm:$0xff]
      %v1918 = vld [vmem:[%s863 + $0x28] sm:$0xff]
      %v1919 = vld [vmem:[%s863 + $0x30] sm:$0xff]
      %v1920 = vld [vmem:[%s863 + $0x38] sm:$0xff]
      %v1921 = vld [vmem:[%s863 + $0x40] sm:$0xff]
      %v1922 = vld [vmem:[%s863 + $0x48] sm:$0xff]
      %v1923 = vld [vmem:[%s863 + $0x50] sm:$0xff]
      %v1924 = vld [vmem:[%s863 + $0x58] sm:$0xff]
      %v1925 = vld [vmem:[%s863 + $0x60] sm:$0xff]
      %v1926 = vld [vmem:[%s863 + $0x68] sm:$0xff]
      %v1927 = vld [vmem:[%s863 + $0x70] sm:$0xff]
      %v1928 = vld [vmem:[%s863 + $0x78] sm:$0xff]
      %v1929 = vld [vmem:[%s863 + $0x80] sm:$0xff]
      %v1930 = vld [vmem:[%s863 + $0x88] sm:$0xff]
      %v1931 = vld [vmem:[%s863 + $0x90] sm:$0xff]
      %v1932 = vld [vmem:[%s863 + $0x98] sm:$0xff]
      %v1933 = vld [vmem:[%s863 + $0xa0] sm:$0xff]
      %v1934 = vld [vmem:[%s863 + $0xa8] sm:$0xff]
      %v1935 = vld [vmem:[%s863 + $0xb0] sm:$0xff]
      %v1936 = vld [vmem:[%s863 + $0xb8] sm:$0xff]
      %v1937 = vld [vmem:[%s863 + $0xc0] sm:$0xff]
      %v1938 = vld [vmem:[%s863 + $0xc8] sm:$0xff]
      %v1939 = vld [vmem:[%s863 + $0xd0] sm:$0xff]
      %v1940 = vld [vmem:[%s863 + $0xd8] sm:$0xff]
      %v1941 = vld [vmem:[%s863 + $0xe0] sm:$0xff]
      %v1942 = vld [vmem:[%s863 + $0xe8] sm:$0xff]
      %v1943 = vld [vmem:[%s863 + $0xf0] sm:$0xff]
      %v1944 = vld [vmem:[%s863 + $0xf8] sm:$0xff]
      %1945 = vmatprep.subr.mxu0 %v1914
      %1946 = vmatpush1.msra.mxu0 %v1913
      %1947 = vmatprep.subr.mxu0 %v1916
      %1948 = vmatpush1.msra.mxu0 %v1915
      %1949 = vmatprep.subr.mxu0 %v1918
      %1950 = vmatpush1.msra.mxu0 %v1917
      %1951 = vmatprep.subr.mxu0 %v1920
      %1952 = vmatpush1.msra.mxu0 %v1919
      %1953 = vmatprep.subr.mxu0 %v1922
      %1954 = vmatpush1.msra.mxu0 %v1921
      %1955 = vmatprep.subr.mxu0 %v1924
      %1956 = vmatpush1.msra.mxu0 %v1923
      %1957 = vmatprep.subr.mxu0 %v1926
      %1958 = vmatpush1.msra.mxu0 %v1925
      %1959 = vmatprep.subr.mxu0 %v1928
      %1960 = vmatpush1.msra.mxu0 %v1927
      %1961 = vmatprep.subr.mxu0 %v1930
      %1962 = vmatpush1.msra.mxu0 %v1929
      %1963 = vmatprep.subr.mxu0 %v1932
      %1964 = vmatpush1.msra.mxu0 %v1931
      %1965 = vmatprep.subr.mxu0 %v1934
      %1966 = vmatpush1.msra.mxu0 %v1933
      %1967 = vmatprep.subr.mxu0 %v1936
      %1968 = vmatpush1.msra.mxu0 %v1935
      %1969 = vmatprep.subr.mxu0 %v1938
      %1970 = vmatpush1.msra.mxu0 %v1937
      %1971 = vmatprep.subr.mxu0 %v1940
      %1972 = vmatpush1.msra.mxu0 %v1939
      %1973 = vmatprep.subr.mxu0 %v1942
      %1974 = vmatpush1.msra.mxu0 %v1941
      %1975 = vmatprep.subr.mxu0 %v1944
      %1976 = vmatpush1.msra.mxu0 %v1943
      %1977 = vmatprep.subr.mxu0 0.0
      %1978 = vmatpush1.msra.mxu0 0.0
      %1979 = vmatprep.subr.mxu0 0.0
      %1980 = vmatpush1.msra.mxu0 0.0
      %1981 = vmatprep.subr.mxu0 0.0
      %1982 = vmatpush1.msra.mxu0 0.0
      %1983 = vmatprep.subr.mxu0 0.0
      %1984 = vmatpush1.msra.mxu0 0.0
      %1985 = vmatprep.subr.mxu0 0.0
      %1986 = vmatpush1.msra.mxu0 0.0
      %1987 = vmatprep.subr.mxu0 0.0
      %1988 = vmatpush1.msra.mxu0 0.0
      %1989 = vmatprep.subr.mxu0 0.0
      %1990 = vmatpush1.msra.mxu0 0.0
      %1991 = vmatprep.subr.mxu0 0.0
      %1992 = vmatpush1.msra.mxu0 0.0
      %1993 = vmatprep.subr.mxu0 0.0
      %1994 = vmatpush1.msra.mxu0 0.0
      %1995 = vmatprep.subr.mxu0 0.0
      %1996 = vmatpush1.msra.mxu0 0.0
      %1997 = vmatprep.subr.mxu0 0.0
      %1998 = vmatpush1.msra.mxu0 0.0
      %1999 = vmatprep.subr.mxu0 0.0
      %2000 = vmatpush1.msra.mxu0 0.0
      %2001 = vmatprep.subr.mxu0 0.0
      %2002 = vmatpush1.msra.mxu0 0.0
      %2003 = vmatprep.subr.mxu0 0.0
      %2004 = vmatpush1.msra.mxu0 0.0
      %2005 = vmatprep.subr.mxu0 0.0
      %2006 = vmatpush1.msra.mxu0 0.0
      %2007 = vmatprep.subr.mxu0 0.0
      %2008 = vmatpush1.msra.mxu0 0.0
      %2009 = vmatprep.mubr.f32.mxu0 0.0
      %2010 = vmatmul.mubr.f32.gmra.mrb[0].mxu0 %v1911
      %v2011 = vpop.f32.mrb[0].mxu0
      %v2012 = vadd.f32 0.0, %v2011
      %v2013 = vpop.f32.mrb[0].mxu0
      %v2014 = vadd.f32 0.0, %v2013
      %2015 = vmatprep.mubr.f32.mxu0 0.0
      %2016 = vmatmul.mubr.f32.gmra.mrb[0].mxu0 %v1912
      %v2017 = vpop.f32.mrb[0].mxu0
      %v2018 = vadd.f32 0.0, %v2017
      %v2019 = vpop.f32.mrb[0].mxu0
      %v2020 = vadd.f32 0.0, %v2019
      %2021 = vdwg.mxu0
      %v2022 = vadd.f32 %v1906, %v2012
      %v2023 = vadd.f32 %v1907, %v2014
      %v2024 = vadd.f32 %v1908, %v2018
      %v2025 = vadd.f32 %v1909, %v2020
      %v2026 = vld [vmem:[%s1910 + $0x1] sm:$0xff]
      %v2027 = vld [vmem:[%s1910 + $0x9] sm:$0xff]
      %v2028 = vld [vmem:[%s979] sm:$0xff]
      %v2029 = vld [vmem:[%s979 + $0x8] sm:$0xff]
      %v2030 = vld [vmem:[%s979 + $0x10] sm:$0xff]
      %v2031 = vld [vmem:[%s979 + $0x18] sm:$0xff]
      %v2032 = vld [vmem:[%s979 + $0x20] sm:$0xff]
      %v2033 = vld [vmem:[%s979 + $0x28] sm:$0xff]
      %v2034 = vld [vmem:[%s979 + $0x30] sm:$0xff]
      %v2035 = vld [vmem:[%s979 + $0x38] sm:$0xff]
      %v2036 = vld [vmem:[%s979 + $0x40] sm:$0xff]
      %v2037 = vld [vmem:[%s979 + $0x48] sm:$0xff]
      %v2038 = vld [vmem:[%s979 + $0x50] sm:$0xff]
      %v2039 = vld [vmem:[%s979 + $0x58] sm:$0xff]
      %v2040 = vld [vmem:[%s979 + $0x60] sm:$0xff]
      %v2041 = vld [vmem:[%s979 + $0x68] sm:$0xff]
      %v2042 = vld [vmem:[%s979 + $0x70] sm:$0xff]
      %v2043 = vld [vmem:[%s979 + $0x78] sm:$0xff]
      %v2044 = vld [vmem:[%s979 + $0x80] sm:$0xff]
      %v2045 = vld [vmem:[%s979 + $0x88] sm:$0xff]
      %v2046 = vld [vmem:[%s979 + $0x90] sm:$0xff]
      %v2047 = vld [vmem:[%s979 + $0x98] sm:$0xff]
      %v2048 = vld [vmem:[%s979 + $0xa0] sm:$0xff]
      %v2049 = vld [vmem:[%s979 + $0xa8] sm:$0xff]
      %v2050 = vld [vmem:[%s979 + $0xb0] sm:$0xff]
      %v2051 = vld [vmem:[%s979 + $0xb8] sm:$0xff]
      %v2052 = vld [vmem:[%s979 + $0xc0] sm:$0xff]
      %v2053 = vld [vmem:[%s979 + $0xc8] sm:$0xff]
      %v2054 = vld [vmem:[%s979 + $0xd0] sm:$0xff]
      %v2055 = vld [vmem:[%s979 + $0xd8] sm:$0xff]
      %v2056 = vld [vmem:[%s979 + $0xe0] sm:$0xff]
      %v2057 = vld [vmem:[%s979 + $0xe8] sm:$0xff]
      %v2058 = vld [vmem:[%s979 + $0xf0] sm:$0xff]
      %v2059 = vld [vmem:[%s979 + $0xf8] sm:$0xff]
      %2060 = vmatprep.subr.mxu0 %v2029
      %2061 = vmatpush1.msra.mxu0 %v2028
      %2062 = vmatprep.subr.mxu0 %v2031
      %2063 = vmatpush1.msra.mxu0 %v2030
      %2064 = vmatprep.subr.mxu0 %v2033
      %2065 = vmatpush1.msra.mxu0 %v2032
      %2066 = vmatprep.subr.mxu0 %v2035
      %2067 = vmatpush1.msra.mxu0 %v2034
      %2068 = vmatprep.subr.mxu0 %v2037
      %2069 = vmatpush1.msra.mxu0 %v2036
      %2070 = vmatprep.subr.mxu0 %v2039
      %2071 = vmatpush1.msra.mxu0 %v2038
      %2072 = vmatprep.subr.mxu0 %v2041
      %2073 = vmatpush1.msra.mxu0 %v2040
      %2074 = vmatprep.subr.mxu0 %v2043
      %2075 = vmatpush1.msra.mxu0 %v2042
      %2076 = vmatprep.subr.mxu0 %v2045
      %2077 = vmatpush1.msra.mxu0 %v2044
      %2078 = vmatprep.subr.mxu0 %v2047
      %2079 = vmatpush1.msra.mxu0 %v2046
      %2080 = vmatprep.subr.mxu0 %v2049
      %2081 = vmatpush1.msra.mxu0 %v2048
      %2082 = vmatprep.subr.mxu0 %v2051
      %2083 = vmatpush1.msra.mxu0 %v2050
      %2084 = vmatprep.subr.mxu0 %v2053
      %2085 = vmatpush1.msra.mxu0 %v2052
      %2086 = vmatprep.subr.mxu0 %v2055
      %2087 = vmatpush1.msra.mxu0 %v2054
      %2088 = vmatprep.subr.mxu0 %v2057
      %2089 = vmatpush1.msra.mxu0 %v2056
      %2090 = vmatprep.subr.mxu0 %v2059
      %2091 = vmatpush1.msra.mxu0 %v2058
      %2092 = vmatprep.subr.mxu0 0.0
      %2093 = vmatpush1.msra.mxu0 0.0
      %2094 = vmatprep.subr.mxu0 0.0
      %2095 = vmatpush1.msra.mxu0 0.0
      %2096 = vmatprep.subr.mxu0 0.0
      %2097 = vmatpush1.msra.mxu0 0.0
      %2098 = vmatprep.subr.mxu0 0.0
      %2099 = vmatpush1.msra.mxu0 0.0
      %2100 = vmatprep.subr.mxu0 0.0
      %2101 = vmatpush1.msra.mxu0 0.0
      %2102 = vmatprep.subr.mxu0 0.0
      %2103 = vmatpush1.msra.mxu0 0.0
      %2104 = vmatprep.subr.mxu0 0.0
      %2105 = vmatpush1.msra.mxu0 0.0
      %2106 = vmatprep.subr.mxu0 0.0
      %2107 = vmatpush1.msra.mxu0 0.0
      %2108 = vmatprep.subr.mxu0 0.0
      %2109 = vmatpush1.msra.mxu0 0.0
      %2110 = vmatprep.subr.mxu0 0.0
      %2111 = vmatpush1.msra.mxu0 0.0
      %2112 = vmatprep.subr.mxu0 0.0
      %2113 = vmatpush1.msra.mxu0 0.0
      %2114 = vmatprep.subr.mxu0 0.0
      %2115 = vmatpush1.msra.mxu0 0.0
      %2116 = vmatprep.subr.mxu0 0.0
      %2117 = vmatpush1.msra.mxu0 0.0
      %2118 = vmatprep.subr.mxu0 0.0
      %2119 = vmatpush1.msra.mxu0 0.0
      %2120 = vmatprep.subr.mxu0 0.0
      %2121 = vmatpush1.msra.mxu0 0.0
      %2122 = vmatprep.subr.mxu0 0.0
      %2123 = vmatpush1.msra.mxu0 0.0
      %2124 = vmatprep.mubr.f32.mxu0 0.0
      %2125 = vmatmul.mubr.f32.gmra.mrb[0].mxu0 %v2026
      %v2126 = vpop.f32.mrb[0].mxu0
      %v2127 = vadd.f32 0.0, %v2126
      %v2128 = vpop.f32.mrb[0].mxu0
      %v2129 = vadd.f32 0.0, %v2128
      %2130 = vmatprep.mubr.f32.mxu0 0.0
      %2131 = vmatmul.mubr.f32.gmra.mrb[0].mxu0 %v2027
      %v2132 = vpop.f32.mrb[0].mxu0
      %v2133 = vadd.f32 0.0, %v2132
      %v2134 = vpop.f32.mrb[0].mxu0
      %v2135 = vadd.f32 0.0, %v2134
      %2136 = vdwg.mxu0
      %v2137 = vadd.f32 %v2022, %v2127
      %v2138 = vadd.f32 %v2023, %v2129
      %v2139 = vadd.f32 %v2024, %v2133
      %v2140 = vadd.f32 %v2025, %v2135
      %v2141 = vld [vmem:[%s1910 + $0x2] sm:$0xff]
      %v2142 = vld [vmem:[%s1910 + $0xa] sm:$0xff]
      %v2143 = vld [vmem:[%s1095] sm:$0xff]
      %v2144 = vld [vmem:[%s1095 + $0x8] sm:$0xff]
      %v2145 = vld [vmem:[%s1095 + $0x10] sm:$0xff]
      %v2146 = vld [vmem:[%s1095 + $0x18] sm:$0xff]
      %v2147 = vld [vmem:[%s1095 + $0x20] sm:$0xff]
      %v2148 = vld [vmem:[%s1095 + $0x28] sm:$0xff]
      %v2149 = vld [vmem:[%s1095 + $0x30] sm:$0xff]
      %v2150 = vld [vmem:[%s1095 + $0x38] sm:$0xff]
      %v2151 = vld [vmem:[%s1095 + $0x40] sm:$0xff]
      %v2152 = vld [vmem:[%s1095 + $0x48] sm:$0xff]
      %v2153 = vld [vmem:[%s1095 + $0x50] sm:$0xff]
      %v2154 = vld [vmem:[%s1095 + $0x58] sm:$0xff]
      %v2155 = vld [vmem:[%s1095 + $0x60] sm:$0xff]
      %v2156 = vld [vmem:[%s1095 + $0x68] sm:$0xff]
      %v2157 = vld [vmem:[%s1095 + $0x70] sm:$0xff]
      %v2158 = vld [vmem:[%s1095 + $0x78] sm:$0xff]
      %v2159 = vld [vmem:[%s1095 + $0x80] sm:$0xff]
      %v2160 = vld [vmem:[%s1095 + $0x88] sm:$0xff]
      %v2161 = vld [vmem:[%s1095 + $0x90] sm:$0xff]
      %v2162 = vld [vmem:[%s1095 + $0x98] sm:$0xff]
      %v2163 = vld [vmem:[%s1095 + $0xa0] sm:$0xff]
      %v2164 = vld [vmem:[%s1095 + $0xa8] sm:$0xff]
      %v2165 = vld [vmem:[%s1095 + $0xb0] sm:$0xff]
      %v2166 = vld [vmem:[%s1095 + $0xb8] sm:$0xff]
      %v2167 = vld [vmem:[%s1095 + $0xc0] sm:$0xff]
      %v2168 = vld [vmem:[%s1095 + $0xc8] sm:$0xff]
      %v2169 = vld [vmem:[%s1095 + $0xd0] sm:$0xff]
      %v2170 = vld [vmem:[%s1095 + $0xd8] sm:$0xff]
      %v2171 = vld [vmem:[%s1095 + $0xe0] sm:$0xff]
      %v2172 = vld [vmem:[%s1095 + $0xe8] sm:$0xff]
      %v2173 = vld [vmem:[%s1095 + $0xf0] sm:$0xff]
      %v2174 = vld [vmem:[%s1095 + $0xf8] sm:$0xff]
      %2175 = vmatprep.subr.mxu0 %v2144
      %2176 = vmatpush1.msra.mxu0 %v2143
      %2177 = vmatprep.subr.mxu0 %v2146
      %2178 = vmatpush1.msra.mxu0 %v2145
      %2179 = vmatprep.subr.mxu0 %v2148
      %2180 = vmatpush1.msra.mxu0 %v2147
      %2181 = vmatprep.subr.mxu0 %v2150
      %2182 = vmatpush1.msra.mxu0 %v2149
      %2183 = vmatprep.subr.mxu0 %v2152
      %2184 = vmatpush1.msra.mxu0 %v2151
      %2185 = vmatprep.subr.mxu0 %v2154
      %2186 = vmatpush1.msra.mxu0 %v2153
      %2187 = vmatprep.subr.mxu0 %v2156
      %2188 = vmatpush1.msra.mxu0 %v2155
      %2189 = vmatprep.subr.mxu0 %v2158
      %2190 = vmatpush1.msra.mxu0 %v2157
      %2191 = vmatprep.subr.mxu0 %v2160
      %2192 = vmatpush1.msra.mxu0 %v2159
      %2193 = vmatprep.subr.mxu0 %v2162
      %2194 = vmatpush1.msra.mxu0 %v2161
      %2195 = vmatprep.subr.mxu0 %v2164
      %2196 = vmatpush1.msra.mxu0 %v2163
      %2197 = vmatprep.subr.mxu0 %v2166
      %2198 = vmatpush1.msra.mxu0 %v2165
      %2199 = vmatprep.subr.mxu0 %v2168
      %2200 = vmatpush1.msra.mxu0 %v2167
      %2201 = vmatprep.subr.mxu0 %v2170
      %2202 = vmatpush1.msra.mxu0 %v2169
      %2203 = vmatprep.subr.mxu0 %v2172
      %2204 = vmatpush1.msra.mxu0 %v2171
      %2205 = vmatprep.subr.mxu0 %v2174
      %2206 = vmatpush1.msra.mxu0 %v2173
      %2207 = vmatprep.subr.mxu0 0.0
      %2208 = vmatpush1.msra.mxu0 0.0
      %2209 = vmatprep.subr.mxu0 0.0
      %2210 = vmatpush1.msra.mxu0 0.0
      %2211 = vmatprep.subr.mxu0 0.0
      %2212 = vmatpush1.msra.mxu0 0.0
      %2213 = vmatprep.subr.mxu0 0.0
      %2214 = vmatpush1.msra.mxu0 0.0
      %2215 = vmatprep.subr.mxu0 0.0
      %2216 = vmatpush1.msra.mxu0 0.0
      %2217 = vmatprep.subr.mxu0 0.0
      %2218 = vmatpush1.msra.mxu0 0.0
      %2219 = vmatprep.subr.mxu0 0.0
      %2220 = vmatpush1.msra.mxu0 0.0
      %2221 = vmatprep.subr.mxu0 0.0
      %2222 = vmatpush1.msra.mxu0 0.0
      %2223 = vmatprep.subr.mxu0 0.0
      %2224 = vmatpush1.msra.mxu0 0.0
      %2225 = vmatprep.subr.mxu0 0.0
      %2226 = vmatpush1.msra.mxu0 0.0
      %2227 = vmatprep.subr.mxu0 0.0
      %2228 = vmatpush1.msra.mxu0 0.0
      %2229 = vmatprep.subr.mxu0 0.0
      %2230 = vmatpush1.msra.mxu0 0.0
      %2231 = vmatprep.subr.mxu0 0.0
      %2232 = vmatpush1.msra.mxu0 0.0
      %2233 = vmatprep.subr.mxu0 0.0
      %2234 = vmatpush1.msra.mxu0 0.0
      %2235 = vmatprep.subr.mxu0 0.0
      %2236 = vmatpush1.msra.mxu0 0.0
      %2237 = vmatprep.subr.mxu0 0.0
      %2238 = vmatpush1.msra.mxu0 0.0
      %2239 = vmatprep.mubr.f32.mxu0 0.0
      %2240 = vmatmul.mubr.f32.gmra.mrb[0].mxu0 %v2141
      %v2241 = vpop.f32.mrb[0].mxu0
      %v2242 = vadd.f32 0.0, %v2241
      %v2243 = vpop.f32.mrb[0].mxu0
      %v2244 = vadd.f32 0.0, %v2243
      %2245 = vmatprep.mubr.f32.mxu0 0.0
      %2246 = vmatmul.mubr.f32.gmra.mrb[0].mxu0 %v2142
      %v2247 = vpop.f32.mrb[0].mxu0
      %v2248 = vadd.f32 0.0, %v2247
      %v2249 = vpop.f32.mrb[0].mxu0
      %v2250 = vadd.f32 0.0, %v2249
      %2251 = vdwg.mxu0
      %v2252 = vadd.f32 %v2137, %v2242
      %v2253 = vadd.f32 %v2138, %v2244
      %v2254 = vadd.f32 %v2139, %v2248
      %v2255 = vadd.f32 %v2140, %v2250
      %v2256 = vadd.f32 %v2252, %v1213
      %v2257 = vadd.f32 %v2253, %v1217
      %v2258 = vadd.f32 %v2254, %v1213
      %v2259 = vadd.f32 %v2255, %v1217
      %s2260 = scalar_lea.vmem %s170, 32
      %2261 = vst [vmem:[%s2260] sm:$0xff] %v2256
      %2262 = vst [vmem:[%s2260 + $0x8] sm:$0xff] %v2257
      %2263 = vst [vmem:[%s2260 + $0x10] sm:$0xff] %v2258
      %2264 = vst [vmem:[%s2260 + $0x18] sm:$0xff] %v2259
      %v2265 = vld [vmem:[%s860] sm:$0xff]
      %v2266 = vld [vmem:[%s860 + $0x8] sm:$0xff]
      %v2267 = vld [vmem:[%s1] sm:$0xff]
      %v2268 = vld [vmem:[%s1 + $0x8] sm:$0xff]
      %v2269 = vld [vmem:[%s1 + $0x10] sm:$0xff]
      %v2270 = vld [vmem:[%s1 + $0x18] sm:$0xff]
      %v2271 = vld [vmem:[%s1 + $0x20] sm:$0xff]
      %v2272 = vld [vmem:[%s1 + $0x28] sm:$0xff]
      %v2273 = vld [vmem:[%s1 + $0x30] sm:$0xff]
      %v2274 = vld [vmem:[%s1 + $0x38] sm:$0xff]
      %v2275 = vld [vmem:[%s1 + $0x40] sm:$0xff]
      %v2276 = vld [vmem:[%s1 + $0x48] sm:$0xff]
      %v2277 = vld [vmem:[%s1 + $0x50] sm:$0xff]
      %v2278 = vld [vmem:[%s1 + $0x58] sm:$0xff]
      %v2279 = vld [vmem:[%s1 + $0x60] sm:$0xff]
      %v2280 = vld [vmem:[%s1 + $0x68] sm:$0xff]
      %v2281 = vld [vmem:[%s1 + $0x70] sm:$0xff]
      %v2282 = vld [vmem:[%s1 + $0x78] sm:$0xff]
      %v2283 = vld [vmem:[%s1 + $0x80] sm:$0xff]
      %v2284 = vld [vmem:[%s1 + $0x88] sm:$0xff]
      %v2285 = vld [vmem:[%s1 + $0x90] sm:$0xff]
      %v2286 = vld [vmem:[%s1 + $0x98] sm:$0xff]
      %v2287 = vld [vmem:[%s1 + $0xa0] sm:$0xff]
      %v2288 = vld [vmem:[%s1 + $0xa8] sm:$0xff]
      %v2289 = vld [vmem:[%s1 + $0xb0] sm:$0xff]
      %v2290 = vld [vmem:[%s1 + $0xb8] sm:$0xff]
      %v2291 = vld [vmem:[%s1 + $0xc0] sm:$0xff]
      %v2292 = vld [vmem:[%s1 + $0xc8] sm:$0xff]
      %v2293 = vld [vmem:[%s1 + $0xd0] sm:$0xff]
      %v2294 = vld [vmem:[%s1 + $0xd8] sm:$0xff]
      %v2295 = vld [vmem:[%s1 + $0xe0] sm:$0xff]
      %v2296 = vld [vmem:[%s1 + $0xe8] sm:$0xff]
      %v2297 = vld [vmem:[%s1 + $0xf0] sm:$0xff]
      %v2298 = vld [vmem:[%s1 + $0xf8] sm:$0xff]
      %v2299 = vld [vmem:[%s860 + $0x1] sm:$0xff]
      %v2300 = vld [vmem:[%s860 + $0x9] sm:$0xff]
      %v2301 = vld [vmem:[%s208] sm:$0xff]
      %v2302 = vld [vmem:[%s208 + $0x8] sm:$0xff]
      %v2303 = vld [vmem:[%s208 + $0x10] sm:$0xff]
      %v2304 = vld [vmem:[%s208 + $0x18] sm:$0xff]
      %v2305 = vld [vmem:[%s208 + $0x20] sm:$0xff]
      %v2306 = vld [vmem:[%s208 + $0x28] sm:$0xff]
      %v2307 = vld [vmem:[%s208 + $0x30] sm:$0xff]
      %v2308 = vld [vmem:[%s208 + $0x38] sm:$0xff]
      %v2309 = vld [vmem:[%s208 + $0x40] sm:$0xff]
      %v2310 = vld [vmem:[%s208 + $0x48] sm:$0xff]
      %v2311 = vld [vmem:[%s208 + $0x50] sm:$0xff]
      %v2312 = vld [vmem:[%s208 + $0x58] sm:$0xff]
      %v2313 = vld [vmem:[%s208 + $0x60] sm:$0xff]
      %v2314 = vld [vmem:[%s208 + $0x68] sm:$0xff]
      %v2315 = vld [vmem:[%s208 + $0x70] sm:$0xff]
      %v2316 = vld [vmem:[%s208 + $0x78] sm:$0xff]
      %v2317 = vld [vmem:[%s208 + $0x80] sm:$0xff]
      %v2318 = vld [vmem:[%s208 + $0x88] sm:$0xff]
      %v2319 = vld [vmem:[%s208 + $0x90] sm:$0xff]
      %v2320 = vld [vmem:[%s208 + $0x98] sm:$0xff]
      %v2321 = vld [vmem:[%s208 + $0xa0] sm:$0xff]
      %v2322 = vld [vmem:[%s208 + $0xa8] sm:$0xff]
      %v2323 = vld [vmem:[%s208 + $0xb0] sm:$0xff]
      %v2324 = vld [vmem:[%s208 + $0xb8] sm:$0xff]
      %v2325 = vld [vmem:[%s208 + $0xc0] sm:$0xff]
      %v2326 = vld [vmem:[%s208 + $0xc8] sm:$0xff]
      %v2327 = vld [vmem:[%s208 + $0xd0] sm:$0xff]
      %v2328 = vld [vmem:[%s208 + $0xd8] sm:$0xff]
      %v2329 = vld [vmem:[%s208 + $0xe0] sm:$0xff]
      %v2330 = vld [vmem:[%s208 + $0xe8] sm:$0xff]
      %v2331 = vld [vmem:[%s208 + $0xf0] sm:$0xff]
      %v2332 = vld [vmem:[%s208 + $0xf8] sm:$0xff]
      %2333 = vmatprep.subr.mxu0 %v2302
      %2334 = vmatpush1.msra.mxu0 %v2301
      %2335 = vmatprep.subr.mxu0 %v2304
      %2336 = vmatpush1.msra.mxu0 %v2303
      %2337 = vmatprep.subr.mxu0 %v2306
      %2338 = vmatpush1.msra.mxu0 %v2305
      %2339 = vmatprep.subr.mxu0 %v2308
      %2340 = vmatpush1.msra.mxu0 %v2307
      %2341 = vmatprep.subr.mxu0 %v2310
      %2342 = vmatpush1.msra.mxu0 %v2309
      %2343 = vmatprep.subr.mxu0 %v2312
      %2344 = vmatpush1.msra.mxu0 %v2311
      %2345 = vmatprep.subr.mxu0 %v2314
      %2346 = vmatpush1.msra.mxu0 %v2313
      %2347 = vmatprep.subr.mxu0 %v2316
      %2348 = vmatpush1.msra.mxu0 %v2315
      %2349 = vmatprep.subr.mxu0 %v2318
      %2350 = vmatpush1.msra.mxu0 %v2317
      %2351 = vmatprep.subr.mxu0 %v2320
      %2352 = vmatpush1.msra.mxu0 %v2319
      %2353 = vmatprep.subr.mxu0 %v2322
      %2354 = vmatpush1.msra.mxu0 %v2321
      %2355 = vmatprep.subr.mxu0 %v2324
      %2356 = vmatpush1.msra.mxu0 %v2323
      %2357 = vmatprep.subr.mxu0 %v2326
      %2358 = vmatpush1.msra.mxu0 %v2325
      %2359 = vmatprep.subr.mxu0 %v2328
      %2360 = vmatpush1.msra.mxu0 %v2327
      %2361 = vmatprep.subr.mxu0 %v2330
      %2362 = vmatpush1.msra.mxu0 %v2329
      %2363 = vmatprep.subr.mxu0 %v2332
      %2364 = vmatpush1.msra.mxu0 %v2331
      %2365 = vmatprep.subr.mxu0 0.0
      %2366 = vmatpush1.msra.mxu0 0.0
      %2367 = vmatprep.subr.mxu0 0.0
      %2368 = vmatpush1.msra.mxu0 0.0
      %2369 = vmatprep.subr.mxu0 0.0
      %2370 = vmatpush1.msra.mxu0 0.0
      %2371 = vmatprep.subr.mxu0 0.0
      %2372 = vmatpush1.msra.mxu0 0.0
      %2373 = vmatprep.subr.mxu0 0.0
      %2374 = vmatpush1.msra.mxu0 0.0
      %2375 = vmatprep.subr.mxu0 0.0
      %2376 = vmatpush1.msra.mxu0 0.0
      %2377 = vmatprep.subr.mxu0 0.0
      %2378 = vmatpush1.msra.mxu0 0.0
      %2379 = vmatprep.subr.mxu0 0.0
      %2380 = vmatpush1.msra.mxu0 0.0
      %2381 = vmatprep.subr.mxu0 0.0
      %2382 = vmatpush1.msra.mxu0 0.0
      %2383 = vmatprep.subr.mxu0 0.0
      %2384 = vmatpush1.msra.mxu0 0.0
      %2385 = vmatprep.subr.mxu0 0.0
      %2386 = vmatpush1.msra.mxu0 0.0
      %2387 = vmatprep.subr.mxu0 0.0
      %2388 = vmatpush1.msra.mxu0 0.0
      %2389 = vmatprep.subr.mxu0 0.0
      %2390 = vmatpush1.msra.mxu0 0.0
      %2391 = vmatprep.subr.mxu0 0.0
      %2392 = vmatpush1.msra.mxu0 0.0
      %2393 = vmatprep.subr.mxu0 0.0
      %2394 = vmatpush1.msra.mxu0 0.0
      %2395 = vmatprep.subr.mxu0 0.0
      %2396 = vmatpush1.msra.mxu0 0.0
      %2397 = vmatprep.mubr.f32.mxu0 0.0
      %2398 = vmatmul.mubr.f32.gmra.mrb[0].mxu0 %v2299
      %v2399 = vpop.f32.mrb[0].mxu0
      %v2400 = vadd.f32 0.0, %v2399
      %v2401 = vpop.f32.mrb[0].mxu0
      %v2402 = vadd.f32 0.0, %v2401
      %2403 = vmatprep.mubr.f32.mxu0 0.0
      %2404 = vmatmul.mubr.f32.gmra.mrb[0].mxu0 %v2300
      %v2405 = vpop.f32.mrb[0].mxu0
      %v2406 = vadd.f32 0.0, %v2405
      %v2407 = vpop.f32.mrb[0].mxu0
      %v2408 = vadd.f32 0.0, %v2407
      %2409 = vdwg.mxu0
      %2410 = vmatprep.subr.mxu0 %v2268
      %2411 = vmatpush1.msra.mxu0 %v2267
      %2412 = vmatprep.subr.mxu0 %v2270
      %2413 = vmatpush1.msra.mxu0 %v2269
      %2414 = vmatprep.subr.mxu0 %v2272
      %2415 = vmatpush1.msra.mxu0 %v2271
      %2416 = vmatprep.subr.mxu0 %v2274
      %2417 = vmatpush1.msra.mxu0 %v2273
      %2418 = vmatprep.subr.mxu0 %v2276
      %2419 = vmatpush1.msra.mxu0 %v2275
      %2420 = vmatprep.subr.mxu0 %v2278
      %2421 = vmatpush1.msra.mxu0 %v2277
      %2422 = vmatprep.subr.mxu0 %v2280
      %2423 = vmatpush1.msra.mxu0 %v2279
      %2424 = vmatprep.subr.mxu0 %v2282
      %2425 = vmatpush1.msra.mxu0 %v2281
      %2426 = vmatprep.subr.mxu0 %v2284
      %2427 = vmatpush1.msra.mxu0 %v2283
      %2428 = vmatprep.subr.mxu0 %v2286
      %2429 = vmatpush1.msra.mxu0 %v2285
      %2430 = vmatprep.subr.mxu0 %v2288
      %2431 = vmatpush1.msra.mxu0 %v2287
      %2432 = vmatprep.subr.mxu0 %v2290
      %2433 = vmatpush1.msra.mxu0 %v2289
      %2434 = vmatprep.subr.mxu0 %v2292
      %2435 = vmatpush1.msra.mxu0 %v2291
      %2436 = vmatprep.subr.mxu0 %v2294
      %2437 = vmatpush1.msra.mxu0 %v2293
      %2438 = vmatprep.subr.mxu0 %v2296
      %2439 = vmatpush1.msra.mxu0 %v2295
      %2440 = vmatprep.subr.mxu0 %v2298
      %2441 = vmatpush1.msra.mxu0 %v2297
      %2442 = vmatprep.subr.mxu0 0.0
      %2443 = vmatpush1.msra.mxu0 0.0
      %2444 = vmatprep.subr.mxu0 0.0
      %2445 = vmatpush1.msra.mxu0 0.0
      %2446 = vmatprep.subr.mxu0 0.0
      %2447 = vmatpush1.msra.mxu0 0.0
      %2448 = vmatprep.subr.mxu0 0.0
      %2449 = vmatpush1.msra.mxu0 0.0
      %2450 = vmatprep.subr.mxu0 0.0
      %2451 = vmatpush1.msra.mxu0 0.0
      %2452 = vmatprep.subr.mxu0 0.0
      %2453 = vmatpush1.msra.mxu0 0.0
      %2454 = vmatprep.subr.mxu0 0.0
      %2455 = vmatpush1.msra.mxu0 0.0
      %2456 = vmatprep.subr.mxu0 0.0
      %2457 = vmatpush1.msra.mxu0 0.0
      %2458 = vmatprep.subr.mxu0 0.0
      %2459 = vmatpush1.msra.mxu0 0.0
      %2460 = vmatprep.subr.mxu0 0.0
      %2461 = vmatpush1.msra.mxu0 0.0
      %2462 = vmatprep.subr.mxu0 0.0
      %2463 = vmatpush1.msra.mxu0 0.0
      %2464 = vmatprep.subr.mxu0 0.0
      %2465 = vmatpush1.msra.mxu0 0.0
      %2466 = vmatprep.subr.mxu0 0.0
      %2467 = vmatpush1.msra.mxu0 0.0
      %2468 = vmatprep.subr.mxu0 0.0
      %2469 = vmatpush1.msra.mxu0 0.0
      %2470 = vmatprep.subr.mxu0 0.0
      %2471 = vmatpush1.msra.mxu0 0.0
      %2472 = vmatprep.subr.mxu0 0.0
      %2473 = vmatpush1.msra.mxu0 0.0
      %2474 = vmatprep.mubr.f32.mxu0 0.0
      %2475 = vmatmul.mubr.f32.gmra.mrb[0].mxu0 %v2265
      %v2476 = vpop.f32.mrb[0].mxu0
      %v2477 = vadd.f32 %v2400, %v2476
      %v2478 = vpop.f32.mrb[0].mxu0
      %v2479 = vadd.f32 %v2402, %v2478
      %2480 = vmatprep.mubr.f32.mxu0 0.0
      %2481 = vmatmul.mubr.f32.gmra.mrb[0].mxu0 %v2266
      %v2482 = vpop.f32.mrb[0].mxu0
      %v2483 = vadd.f32 %v2406, %v2482
      %v2484 = vpop.f32.mrb[0].mxu0
      %v2485 = vadd.f32 %v2408, %v2484
      %2486 = vdwg.mxu0
      %v2487 = vld [vmem:[%s860 + $0x2] sm:$0xff]
      %v2488 = vld [vmem:[%s860 + $0xa] sm:$0xff]
      %v2489 = vld [vmem:[%s397] sm:$0xff]
      %v2490 = vld [vmem:[%s397 + $0x8] sm:$0xff]
      %v2491 = vld [vmem:[%s397 + $0x10] sm:$0xff]
      %v2492 = vld [vmem:[%s397 + $0x18] sm:$0xff]
      %v2493 = vld [vmem:[%s397 + $0x20] sm:$0xff]
      %v2494 = vld [vmem:[%s397 + $0x28] sm:$0xff]
      %v2495 = vld [vmem:[%s397 + $0x30] sm:$0xff]
      %v2496 = vld [vmem:[%s397 + $0x38] sm:$0xff]
      %v2497 = vld [vmem:[%s397 + $0x40] sm:$0xff]
      %v2498 = vld [vmem:[%s397 + $0x48] sm:$0xff]
      %v2499 = vld [vmem:[%s397 + $0x50] sm:$0xff]
      %v2500 = vld [vmem:[%s397 + $0x58] sm:$0xff]
      %v2501 = vld [vmem:[%s397 + $0x60] sm:$0xff]
      %v2502 = vld [vmem:[%s397 + $0x68] sm:$0xff]
      %v2503 = vld [vmem:[%s397 + $0x70] sm:$0xff]
      %v2504 = vld [vmem:[%s397 + $0x78] sm:$0xff]
      %v2505 = vld [vmem:[%s397 + $0x80] sm:$0xff]
      %v2506 = vld [vmem:[%s397 + $0x88] sm:$0xff]
      %v2507 = vld [vmem:[%s397 + $0x90] sm:$0xff]
      %v2508 = vld [vmem:[%s397 + $0x98] sm:$0xff]
      %v2509 = vld [vmem:[%s397 + $0xa0] sm:$0xff]
      %v2510 = vld [vmem:[%s397 + $0xa8] sm:$0xff]
      %v2511 = vld [vmem:[%s397 + $0xb0] sm:$0xff]
      %v2512 = vld [vmem:[%s397 + $0xb8] sm:$0xff]
      %v2513 = vld [vmem:[%s397 + $0xc0] sm:$0xff]
      %v2514 = vld [vmem:[%s397 + $0xc8] sm:$0xff]
      %v2515 = vld [vmem:[%s397 + $0xd0] sm:$0xff]
      %v2516 = vld [vmem:[%s397 + $0xd8] sm:$0xff]
      %v2517 = vld [vmem:[%s397 + $0xe0] sm:$0xff]
      %v2518 = vld [vmem:[%s397 + $0xe8] sm:$0xff]
      %v2519 = vld [vmem:[%s397 + $0xf0] sm:$0xff]
      %v2520 = vld [vmem:[%s397 + $0xf8] sm:$0xff]
      %2521 = vmatprep.subr.mxu0 %v2490
      %2522 = vmatpush1.msra.mxu0 %v2489
      %2523 = vmatprep.subr.mxu0 %v2492
      %2524 = vmatpush1.msra.mxu0 %v2491
      %2525 = vmatprep.subr.mxu0 %v2494
      %2526 = vmatpush1.msra.mxu0 %v2493
      %2527 = vmatprep.subr.mxu0 %v2496
      %2528 = vmatpush1.msra.mxu0 %v2495
      %2529 = vmatprep.subr.mxu0 %v2498
      %2530 = vmatpush1.msra.mxu0 %v2497
      %2531 = vmatprep.subr.mxu0 %v2500
      %2532 = vmatpush1.msra.mxu0 %v2499
      %2533 = vmatprep.subr.mxu0 %v2502
      %2534 = vmatpush1.msra.mxu0 %v2501
      %2535 = vmatprep.subr.mxu0 %v2504
      %2536 = vmatpush1.msra.mxu0 %v2503
      %2537 = vmatprep.subr.mxu0 %v2506
      %2538 = vmatpush1.msra.mxu0 %v2505
      %2539 = vmatprep.subr.mxu0 %v2508
      %2540 = vmatpush1.msra.mxu0 %v2507
      %2541 = vmatprep.subr.mxu0 %v2510
      %2542 = vmatpush1.msra.mxu0 %v2509
      %2543 = vmatprep.subr.mxu0 %v2512
      %2544 = vmatpush1.msra.mxu0 %v2511
      %2545 = vmatprep.subr.mxu0 %v2514
      %2546 = vmatpush1.msra.mxu0 %v2513
      %2547 = vmatprep.subr.mxu0 %v2516
      %2548 = vmatpush1.msra.mxu0 %v2515
      %2549 = vmatprep.subr.mxu0 %v2518
      %2550 = vmatpush1.msra.mxu0 %v2517
      %2551 = vmatprep.subr.mxu0 %v2520
      %2552 = vmatpush1.msra.mxu0 %v2519
      %2553 = vmatprep.subr.mxu0 0.0
      %2554 = vmatpush1.msra.mxu0 0.0
      %2555 = vmatprep.subr.mxu0 0.0
      %2556 = vmatpush1.msra.mxu0 0.0
      %2557 = vmatprep.subr.mxu0 0.0
      %2558 = vmatpush1.msra.mxu0 0.0
      %2559 = vmatprep.subr.mxu0 0.0
      %2560 = vmatpush1.msra.mxu0 0.0
      %2561 = vmatprep.subr.mxu0 0.0
      %2562 = vmatpush1.msra.mxu0 0.0
      %2563 = vmatprep.subr.mxu0 0.0
      %2564 = vmatpush1.msra.mxu0 0.0
      %2565 = vmatprep.subr.mxu0 0.0
      %2566 = vmatpush1.msra.mxu0 0.0
      %2567 = vmatprep.subr.mxu0 0.0
      %2568 = vmatpush1.msra.mxu0 0.0
      %2569 = vmatprep.subr.mxu0 0.0
      %2570 = vmatpush1.msra.mxu0 0.0
      %2571 = vmatprep.subr.mxu0 0.0
      %2572 = vmatpush1.msra.mxu0 0.0
      %2573 = vmatprep.subr.mxu0 0.0
      %2574 = vmatpush1.msra.mxu0 0.0
      %2575 = vmatprep.subr.mxu0 0.0
      %2576 = vmatpush1.msra.mxu0 0.0
      %2577 = vmatprep.subr.mxu0 0.0
      %2578 = vmatpush1.msra.mxu0 0.0
      %2579 = vmatprep.subr.mxu0 0.0
      %2580 = vmatpush1.msra.mxu0 0.0
      %2581 = vmatprep.subr.mxu0 0.0
      %2582 = vmatpush1.msra.mxu0 0.0
      %2583 = vmatprep.subr.mxu0 0.0
      %2584 = vmatpush1.msra.mxu0 0.0
      %2585 = vmatprep.mubr.f32.mxu0 0.0
      %2586 = vmatmul.mubr.f32.gmra.mrb[0].mxu0 %v2487
      %v2587 = vpop.f32.mrb[0].mxu0
      %v2588 = vadd.f32 0.0, %v2587
      %v2589 = vpop.f32.mrb[0].mxu0
      %v2590 = vadd.f32 0.0, %v2589
      %2591 = vmatprep.mubr.f32.mxu0 0.0
      %2592 = vmatmul.mubr.f32.gmra.mrb[0].mxu0 %v2488
      %v2593 = vpop.f32.mrb[0].mxu0
      %v2594 = vadd.f32 0.0, %v2593
      %v2595 = vpop.f32.mrb[0].mxu0
      %v2596 = vadd.f32 0.0, %v2595
      %2597 = vdwg.mxu0
      %v2598 = vadd.f32 %v2477, %v2588
      %v2599 = vadd.f32 %v2479, %v2590
      %v2600 = vadd.f32 %v2483, %v2594
      %v2601 = vadd.f32 %v2485, %v2596
      %v2602 = vld [vmem:[%s1910] sm:$0xff]
      %v2603 = vld [vmem:[%s1910 + $0x8] sm:$0xff]
      %v2604 = vld [vmem:[%s514] sm:$0xff]
      %v2605 = vld [vmem:[%s514 + $0x8] sm:$0xff]
      %v2606 = vld [vmem:[%s514 + $0x10] sm:$0xff]
      %v2607 = vld [vmem:[%s514 + $0x18] sm:$0xff]
      %v2608 = vld [vmem:[%s514 + $0x20] sm:$0xff]
      %v2609 = vld [vmem:[%s514 + $0x28] sm:$0xff]
      %v2610 = vld [vmem:[%s514 + $0x30] sm:$0xff]
      %v2611 = vld [vmem:[%s514 + $0x38] sm:$0xff]
      %v2612 = vld [vmem:[%s514 + $0x40] sm:$0xff]
      %v2613 = vld [vmem:[%s514 + $0x48] sm:$0xff]
      %v2614 = vld [vmem:[%s514 + $0x50] sm:$0xff]
      %v2615 = vld [vmem:[%s514 + $0x58] sm:$0xff]
      %v2616 = vld [vmem:[%s514 + $0x60] sm:$0xff]
      %v2617 = vld [vmem:[%s514 + $0x68] sm:$0xff]
      %v2618 = vld [vmem:[%s514 + $0x70] sm:$0xff]
      %v2619 = vld [vmem:[%s514 + $0x78] sm:$0xff]
      %v2620 = vld [vmem:[%s514 + $0x80] sm:$0xff]
      %v2621 = vld [vmem:[%s514 + $0x88] sm:$0xff]
      %v2622 = vld [vmem:[%s514 + $0x90] sm:$0xff]
      %v2623 = vld [vmem:[%s514 + $0x98] sm:$0xff]
      %v2624 = vld [vmem:[%s514 + $0xa0] sm:$0xff]
      %v2625 = vld [vmem:[%s514 + $0xa8] sm:$0xff]
      %v2626 = vld [vmem:[%s514 + $0xb0] sm:$0xff]
      %v2627 = vld [vmem:[%s514 + $0xb8] sm:$0xff]
      %v2628 = vld [vmem:[%s514 + $0xc0] sm:$0xff]
      %v2629 = vld [vmem:[%s514 + $0xc8] sm:$0xff]
      %v2630 = vld [vmem:[%s514 + $0xd0] sm:$0xff]
      %v2631 = vld [vmem:[%s514 + $0xd8] sm:$0xff]
      %v2632 = vld [vmem:[%s514 + $0xe0] sm:$0xff]
      %v2633 = vld [vmem:[%s514 + $0xe8] sm:$0xff]
      %v2634 = vld [vmem:[%s514 + $0xf0] sm:$0xff]
      %v2635 = vld [vmem:[%s514 + $0xf8] sm:$0xff]
      %2636 = vmatprep.subr.mxu0 %v2605
      %2637 = vmatpush1.msra.mxu0 %v2604
      %2638 = vmatprep.subr.mxu0 %v2607
      %2639 = vmatpush1.msra.mxu0 %v2606
      %2640 = vmatprep.subr.mxu0 %v2609
      %2641 = vmatpush1.msra.mxu0 %v2608
      %2642 = vmatprep.subr.mxu0 %v2611
      %2643 = vmatpush1.msra.mxu0 %v2610
      %2644 = vmatprep.subr.mxu0 %v2613
      %2645 = vmatpush1.msra.mxu0 %v2612
      %2646 = vmatprep.subr.mxu0 %v2615
      %2647 = vmatpush1.msra.mxu0 %v2614
      %2648 = vmatprep.subr.mxu0 %v2617
      %2649 = vmatpush1.msra.mxu0 %v2616
      %2650 = vmatprep.subr.mxu0 %v2619
      %2651 = vmatpush1.msra.mxu0 %v2618
      %2652 = vmatprep.subr.mxu0 %v2621
      %2653 = vmatpush1.msra.mxu0 %v2620
      %2654 = vmatprep.subr.mxu0 %v2623
      %2655 = vmatpush1.msra.mxu0 %v2622
      %2656 = vmatprep.subr.mxu0 %v2625
      %2657 = vmatpush1.msra.mxu0 %v2624
      %2658 = vmatprep.subr.mxu0 %v2627
      %2659 = vmatpush1.msra.mxu0 %v2626
      %2660 = vmatprep.subr.mxu0 %v2629
      %2661 = vmatpush1.msra.mxu0 %v2628
      %2662 = vmatprep.subr.mxu0 %v2631
      %2663 = vmatpush1.msra.mxu0 %v2630
      %2664 = vmatprep.subr.mxu0 %v2633
      %2665 = vmatpush1.msra.mxu0 %v2632
      %2666 = vmatprep.subr.mxu0 %v2635
      %2667 = vmatpush1.msra.mxu0 %v2634
      %2668 = vmatprep.subr.mxu0 0.0
      %2669 = vmatpush1.msra.mxu0 0.0
      %2670 = vmatprep.subr.mxu0 0.0
      %2671 = vmatpush1.msra.mxu0 0.0
      %2672 = vmatprep.subr.mxu0 0.0
      %2673 = vmatpush1.msra.mxu0 0.0
      %2674 = vmatprep.subr.mxu0 0.0
      %2675 = vmatpush1.msra.mxu0 0.0
      %2676 = vmatprep.subr.mxu0 0.0
      %2677 = vmatpush1.msra.mxu0 0.0
      %2678 = vmatprep.subr.mxu0 0.0
      %2679 = vmatpush1.msra.mxu0 0.0
      %2680 = vmatprep.subr.mxu0 0.0
      %2681 = vmatpush1.msra.mxu0 0.0
      %2682 = vmatprep.subr.mxu0 0.0
      %2683 = vmatpush1.msra.mxu0 0.0
      %2684 = vmatprep.subr.mxu0 0.0
      %2685 = vmatpush1.msra.mxu0 0.0
      %2686 = vmatprep.subr.mxu0 0.0
      %2687 = vmatpush1.msra.mxu0 0.0
      %2688 = vmatprep.subr.mxu0 0.0
      %2689 = vmatpush1.msra.mxu0 0.0
      %2690 = vmatprep.subr.mxu0 0.0
      %2691 = vmatpush1.msra.mxu0 0.0
      %2692 = vmatprep.subr.mxu0 0.0
      %2693 = vmatpush1.msra.mxu0 0.0
      %2694 = vmatprep.subr.mxu0 0.0
      %2695 = vmatpush1.msra.mxu0 0.0
      %2696 = vmatprep.subr.mxu0 0.0
      %2697 = vmatpush1.msra.mxu0 0.0
      %2698 = vmatprep.subr.mxu0 0.0
      %2699 = vmatpush1.msra.mxu0 0.0
      %2700 = vmatprep.mubr.f32.mxu0 0.0
      %2701 = vmatmul.mubr.f32.gmra.mrb[0].mxu0 %v2602
      %v2702 = vpop.f32.mrb[0].mxu0
      %v2703 = vadd.f32 0.0, %v2702
      %v2704 = vpop.f32.mrb[0].mxu0
      %v2705 = vadd.f32 0.0, %v2704
      %2706 = vmatprep.mubr.f32.mxu0 0.0
      %2707 = vmatmul.mubr.f32.gmra.mrb[0].mxu0 %v2603
      %v2708 = vpop.f32.mrb[0].mxu0
      %v2709 = vadd.f32 0.0, %v2708
      %v2710 = vpop.f32.mrb[0].mxu0
      %v2711 = vadd.f32 0.0, %v2710
      %2712 = vdwg.mxu0
      %v2713 = vadd.f32 %v2598, %v2703
      %v2714 = vadd.f32 %v2599, %v2705
      %v2715 = vadd.f32 %v2600, %v2709
      %v2716 = vadd.f32 %v2601, %v2711
      %v2717 = vld [vmem:[%s1910 + $0x1] sm:$0xff]
      %v2718 = vld [vmem:[%s1910 + $0x9] sm:$0xff]
      %v2719 = vld [vmem:[%s630] sm:$0xff]
      %v2720 = vld [vmem:[%s630 + $0x8] sm:$0xff]
      %v2721 = vld [vmem:[%s630 + $0x10] sm:$0xff]
      %v2722 = vld [vmem:[%s630 + $0x18] sm:$0xff]
      %v2723 = vld [vmem:[%s630 + $0x20] sm:$0xff]
      %v2724 = vld [vmem:[%s630 + $0x28] sm:$0xff]
      %v2725 = vld [vmem:[%s630 + $0x30] sm:$0xff]
      %v2726 = vld [vmem:[%s630 + $0x38] sm:$0xff]
      %v2727 = vld [vmem:[%s630 + $0x40] sm:$0xff]
      %v2728 = vld [vmem:[%s630 + $0x48] sm:$0xff]
      %v2729 = vld [vmem:[%s630 + $0x50] sm:$0xff]
      %v2730 = vld [vmem:[%s630 + $0x58] sm:$0xff]
      %v2731 = vld [vmem:[%s630 + $0x60] sm:$0xff]
      %v2732 = vld [vmem:[%s630 + $0x68] sm:$0xff]
      %v2733 = vld [vmem:[%s630 + $0x70] sm:$0xff]
      %v2734 = vld [vmem:[%s630 + $0x78] sm:$0xff]
      %v2735 = vld [vmem:[%s630 + $0x80] sm:$0xff]
      %v2736 = vld [vmem:[%s630 + $0x88] sm:$0xff]
      %v2737 = vld [vmem:[%s630 + $0x90] sm:$0xff]
      %v2738 = vld [vmem:[%s630 + $0x98] sm:$0xff]
      %v2739 = vld [vmem:[%s630 + $0xa0] sm:$0xff]
      %v2740 = vld [vmem:[%s630 + $0xa8] sm:$0xff]
      %v2741 = vld [vmem:[%s630 + $0xb0] sm:$0xff]
      %v2742 = vld [vmem:[%s630 + $0xb8] sm:$0xff]
      %v2743 = vld [vmem:[%s630 + $0xc0] sm:$0xff]
      %v2744 = vld [vmem:[%s630 + $0xc8] sm:$0xff]
      %v2745 = vld [vmem:[%s630 + $0xd0] sm:$0xff]
      %v2746 = vld [vmem:[%s630 + $0xd8] sm:$0xff]
      %v2747 = vld [vmem:[%s630 + $0xe0] sm:$0xff]
      %v2748 = vld [vmem:[%s630 + $0xe8] sm:$0xff]
      %v2749 = vld [vmem:[%s630 + $0xf0] sm:$0xff]
      %v2750 = vld [vmem:[%s630 + $0xf8] sm:$0xff]
      %2751 = vmatprep.subr.mxu0 %v2720
      %2752 = vmatpush1.msra.mxu0 %v2719
      %2753 = vmatprep.subr.mxu0 %v2722
      %2754 = vmatpush1.msra.mxu0 %v2721
      %2755 = vmatprep.subr.mxu0 %v2724
      %2756 = vmatpush1.msra.mxu0 %v2723
      %2757 = vmatprep.subr.mxu0 %v2726
      %2758 = vmatpush1.msra.mxu0 %v2725
      %2759 = vmatprep.subr.mxu0 %v2728
      %2760 = vmatpush1.msra.mxu0 %v2727
      %2761 = vmatprep.subr.mxu0 %v2730
      %2762 = vmatpush1.msra.mxu0 %v2729
      %2763 = vmatprep.subr.mxu0 %v2732
      %2764 = vmatpush1.msra.mxu0 %v2731
      %2765 = vmatprep.subr.mxu0 %v2734
      %2766 = vmatpush1.msra.mxu0 %v2733
      %2767 = vmatprep.subr.mxu0 %v2736
      %2768 = vmatpush1.msra.mxu0 %v2735
      %2769 = vmatprep.subr.mxu0 %v2738
      %2770 = vmatpush1.msra.mxu0 %v2737
      %2771 = vmatprep.subr.mxu0 %v2740
      %2772 = vmatpush1.msra.mxu0 %v2739
      %2773 = vmatprep.subr.mxu0 %v2742
      %2774 = vmatpush1.msra.mxu0 %v2741
      %2775 = vmatprep.subr.mxu0 %v2744
      %2776 = vmatpush1.msra.mxu0 %v2743
      %2777 = vmatprep.subr.mxu0 %v2746
      %2778 = vmatpush1.msra.mxu0 %v2745
      %2779 = vmatprep.subr.mxu0 %v2748
      %2780 = vmatpush1.msra.mxu0 %v2747
      %2781 = vmatprep.subr.mxu0 %v2750
      %2782 = vmatpush1.msra.mxu0 %v2749
      %2783 = vmatprep.subr.mxu0 0.0
      %2784 = vmatpush1.msra.mxu0 0.0
      %2785 = vmatprep.subr.mxu0 0.0
      %2786 = vmatpush1.msra.mxu0 0.0
      %2787 = vmatprep.subr.mxu0 0.0
      %2788 = vmatpush1.msra.mxu0 0.0
      %2789 = vmatprep.subr.mxu0 0.0
      %2790 = vmatpush1.msra.mxu0 0.0
      %2791 = vmatprep.subr.mxu0 0.0
      %2792 = vmatpush1.msra.mxu0 0.0
      %2793 = vmatprep.subr.mxu0 0.0
      %2794 = vmatpush1.msra.mxu0 0.0
      %2795 = vmatprep.subr.mxu0 0.0
      %2796 = vmatpush1.msra.mxu0 0.0
      %2797 = vmatprep.subr.mxu0 0.0
      %2798 = vmatpush1.msra.mxu0 0.0
      %2799 = vmatprep.subr.mxu0 0.0
      %2800 = vmatpush1.msra.mxu0 0.0
      %2801 = vmatprep.subr.mxu0 0.0
      %2802 = vmatpush1.msra.mxu0 0.0
      %2803 = vmatprep.subr.mxu0 0.0
      %2804 = vmatpush1.msra.mxu0 0.0
      %2805 = vmatprep.subr.mxu0 0.0
      %2806 = vmatpush1.msra.mxu0 0.0
      %2807 = vmatprep.subr.mxu0 0.0
      %2808 = vmatpush1.msra.mxu0 0.0
      %2809 = vmatprep.subr.mxu0 0.0
      %2810 = vmatpush1.msra.mxu0 0.0
      %2811 = vmatprep.subr.mxu0 0.0
      %2812 = vmatpush1.msra.mxu0 0.0
      %2813 = vmatprep.subr.mxu0 0.0
      %2814 = vmatpush1.msra.mxu0 0.0
      %2815 = vmatprep.mubr.f32.mxu0 0.0
      %2816 = vmatmul.mubr.f32.gmra.mrb[0].mxu0 %v2717
      %v2817 = vpop.f32.mrb[0].mxu0
      %v2818 = vadd.f32 0.0, %v2817
      %v2819 = vpop.f32.mrb[0].mxu0
      %v2820 = vadd.f32 0.0, %v2819
      %2821 = vmatprep.mubr.f32.mxu0 0.0
      %2822 = vmatmul.mubr.f32.gmra.mrb[0].mxu0 %v2718
      %v2823 = vpop.f32.mrb[0].mxu0
      %v2824 = vadd.f32 0.0, %v2823
      %v2825 = vpop.f32.mrb[0].mxu0
      %v2826 = vadd.f32 0.0, %v2825
      %2827 = vdwg.mxu0
      %v2828 = vadd.f32 %v2713, %v2818
      %v2829 = vadd.f32 %v2714, %v2820
      %v2830 = vadd.f32 %v2715, %v2824
      %v2831 = vadd.f32 %v2716, %v2826
      %v2832 = vld [vmem:[%s1910 + $0x2] sm:$0xff]
      %v2833 = vld [vmem:[%s1910 + $0xa] sm:$0xff]
      %v2834 = vld [vmem:[%s746] sm:$0xff]
      %v2835 = vld [vmem:[%s746 + $0x8] sm:$0xff]
      %v2836 = vld [vmem:[%s746 + $0x10] sm:$0xff]
      %v2837 = vld [vmem:[%s746 + $0x18] sm:$0xff]
      %v2838 = vld [vmem:[%s746 + $0x20] sm:$0xff]
      %v2839 = vld [vmem:[%s746 + $0x28] sm:$0xff]
      %v2840 = vld [vmem:[%s746 + $0x30] sm:$0xff]
      %v2841 = vld [vmem:[%s746 + $0x38] sm:$0xff]
      %v2842 = vld [vmem:[%s746 + $0x40] sm:$0xff]
      %v2843 = vld [vmem:[%s746 + $0x48] sm:$0xff]
      %v2844 = vld [vmem:[%s746 + $0x50] sm:$0xff]
      %v2845 = vld [vmem:[%s746 + $0x58] sm:$0xff]
      %v2846 = vld [vmem:[%s746 + $0x60] sm:$0xff]
      %v2847 = vld [vmem:[%s746 + $0x68] sm:$0xff]
      %v2848 = vld [vmem:[%s746 + $0x70] sm:$0xff]
      %v2849 = vld [vmem:[%s746 + $0x78] sm:$0xff]
      %v2850 = vld [vmem:[%s746 + $0x80] sm:$0xff]
      %v2851 = vld [vmem:[%s746 + $0x88] sm:$0xff]
      %v2852 = vld [vmem:[%s746 + $0x90] sm:$0xff]
      %v2853 = vld [vmem:[%s746 + $0x98] sm:$0xff]
      %v2854 = vld [vmem:[%s746 + $0xa0] sm:$0xff]
      %v2855 = vld [vmem:[%s746 + $0xa8] sm:$0xff]
      %v2856 = vld [vmem:[%s746 + $0xb0] sm:$0xff]
      %v2857 = vld [vmem:[%s746 + $0xb8] sm:$0xff]
      %v2858 = vld [vmem:[%s746 + $0xc0] sm:$0xff]
      %v2859 = vld [vmem:[%s746 + $0xc8] sm:$0xff]
      %v2860 = vld [vmem:[%s746 + $0xd0] sm:$0xff]
      %v2861 = vld [vmem:[%s746 + $0xd8] sm:$0xff]
      %v2862 = vld [vmem:[%s746 + $0xe0] sm:$0xff]
      %v2863 = vld [vmem:[%s746 + $0xe8] sm:$0xff]
      %v2864 = vld [vmem:[%s746 + $0xf0] sm:$0xff]
      %v2865 = vld [vmem:[%s746 + $0xf8] sm:$0xff]
      %2866 = vmatprep.subr.mxu0 %v2835
      %2867 = vmatpush1.msra.mxu0 %v2834
      %2868 = vmatprep.subr.mxu0 %v2837
      %2869 = vmatpush1.msra.mxu0 %v2836
      %2870 = vmatprep.subr.mxu0 %v2839
      %2871 = vmatpush1.msra.mxu0 %v2838
      %2872 = vmatprep.subr.mxu0 %v2841
      %2873 = vmatpush1.msra.mxu0 %v2840
      %2874 = vmatprep.subr.mxu0 %v2843
      %2875 = vmatpush1.msra.mxu0 %v2842
      %2876 = vmatprep.subr.mxu0 %v2845
      %2877 = vmatpush1.msra.mxu0 %v2844
      %2878 = vmatprep.subr.mxu0 %v2847
      %2879 = vmatpush1.msra.mxu0 %v2846
      %2880 = vmatprep.subr.mxu0 %v2849
      %2881 = vmatpush1.msra.mxu0 %v2848
      %2882 = vmatprep.subr.mxu0 %v2851
      %2883 = vmatpush1.msra.mxu0 %v2850
      %2884 = vmatprep.subr.mxu0 %v2853
      %2885 = vmatpush1.msra.mxu0 %v2852
      %2886 = vmatprep.subr.mxu0 %v2855
      %2887 = vmatpush1.msra.mxu0 %v2854
      %2888 = vmatprep.subr.mxu0 %v2857
      %2889 = vmatpush1.msra.mxu0 %v2856
      %2890 = vmatprep.subr.mxu0 %v2859
      %2891 = vmatpush1.msra.mxu0 %v2858
      %2892 = vmatprep.subr.mxu0 %v2861
      %2893 = vmatpush1.msra.mxu0 %v2860
      %2894 = vmatprep.subr.mxu0 %v2863
      %2895 = vmatpush1.msra.mxu0 %v2862
      %2896 = vmatprep.subr.mxu0 %v2865
      %2897 = vmatpush1.msra.mxu0 %v2864
      %2898 = vmatprep.subr.mxu0 0.0
      %2899 = vmatpush1.msra.mxu0 0.0
      %2900 = vmatprep.subr.mxu0 0.0
      %2901 = vmatpush1.msra.mxu0 0.0
      %2902 = vmatprep.subr.mxu0 0.0
      %2903 = vmatpush1.msra.mxu0 0.0
      %2904 = vmatprep.subr.mxu0 0.0
      %2905 = vmatpush1.msra.mxu0 0.0
      %2906 = vmatprep.subr.mxu0 0.0
      %2907 = vmatpush1.msra.mxu0 0.0
      %2908 = vmatprep.subr.mxu0 0.0
      %2909 = vmatpush1.msra.mxu0 0.0
      %2910 = vmatprep.subr.mxu0 0.0
      %2911 = vmatpush1.msra.mxu0 0.0
      %2912 = vmatprep.subr.mxu0 0.0
      %2913 = vmatpush1.msra.mxu0 0.0
      %2914 = vmatprep.subr.mxu0 0.0
      %2915 = vmatpush1.msra.mxu0 0.0
      %2916 = vmatprep.subr.mxu0 0.0
      %2917 = vmatpush1.msra.mxu0 0.0
      %2918 = vmatprep.subr.mxu0 0.0
      %2919 = vmatpush1.msra.mxu0 0.0
      %2920 = vmatprep.subr.mxu0 0.0
      %2921 = vmatpush1.msra.mxu0 0.0
      %2922 = vmatprep.subr.mxu0 0.0
      %2923 = vmatpush1.msra.mxu0 0.0
      %2924 = vmatprep.subr.mxu0 0.0
      %2925 = vmatpush1.msra.mxu0 0.0
      %2926 = vmatprep.subr.mxu0 0.0
      %2927 = vmatpush1.msra.mxu0 0.0
      %2928 = vmatprep.subr.mxu0 0.0
      %2929 = vmatpush1.msra.mxu0 0.0
      %2930 = vmatprep.mubr.f32.mxu0 0.0
      %2931 = vmatmul.mubr.f32.gmra.mrb[0].mxu0 %v2832
      %v2932 = vpop.f32.mrb[0].mxu0
      %v2933 = vadd.f32 0.0, %v2932
      %v2934 = vpop.f32.mrb[0].mxu0
      %v2935 = vadd.f32 0.0, %v2934
      %2936 = vmatprep.mubr.f32.mxu0 0.0
      %2937 = vmatmul.mubr.f32.gmra.mrb[0].mxu0 %v2833
      %v2938 = vpop.f32.mrb[0].mxu0
      %v2939 = vadd.f32 0.0, %v2938
      %v2940 = vpop.f32.mrb[0].mxu0
      %v2941 = vadd.f32 0.0, %v2940
      %2942 = vdwg.mxu0
      %v2943 = vadd.f32 %v2828, %v2933
      %v2944 = vadd.f32 %v2829, %v2935
      %v2945 = vadd.f32 %v2830, %v2939
      %v2946 = vadd.f32 %v2831, %v2941
      %s2947 = scalar_lea.vmem %s165, 96
      %v2948 = vld [vmem:[%s2947] sm:$0xff]
      %v2949 = vld [vmem:[%s2947 + $0x8] sm:$0xff]
      %v2950 = vld [vmem:[%s863] sm:$0xff]
      %v2951 = vld [vmem:[%s863 + $0x8] sm:$0xff]
      %v2952 = vld [vmem:[%s863 + $0x10] sm:$0xff]
      %v2953 = vld [vmem:[%s863 + $0x18] sm:$0xff]
      %v2954 = vld [vmem:[%s863 + $0x20] sm:$0xff]
      %v2955 = vld [vmem:[%s863 + $0x28] sm:$0xff]
      %v2956 = vld [vmem:[%s863 + $0x30] sm:$0xff]
      %v2957 = vld [vmem:[%s863 + $0x38] sm:$0xff]
      %v2958 = vld [vmem:[%s863 + $0x40] sm:$0xff]
      %v2959 = vld [vmem:[%s863 + $0x48] sm:$0xff]
      %v2960 = vld [vmem:[%s863 + $0x50] sm:$0xff]
      %v2961 = vld [vmem:[%s863 + $0x58] sm:$0xff]
      %v2962 = vld [vmem:[%s863 + $0x60] sm:$0xff]
      %v2963 = vld [vmem:[%s863 + $0x68] sm:$0xff]
      %v2964 = vld [vmem:[%s863 + $0x70] sm:$0xff]
      %v2965 = vld [vmem:[%s863 + $0x78] sm:$0xff]
      %v2966 = vld [vmem:[%s863 + $0x80] sm:$0xff]
      %v2967 = vld [vmem:[%s863 + $0x88] sm:$0xff]
      %v2968 = vld [vmem:[%s863 + $0x90] sm:$0xff]
      %v2969 = vld [vmem:[%s863 + $0x98] sm:$0xff]
      %v2970 = vld [vmem:[%s863 + $0xa0] sm:$0xff]
      %v2971 = vld [vmem:[%s863 + $0xa8] sm:$0xff]
      %v2972 = vld [vmem:[%s863 + $0xb0] sm:$0xff]
      %v2973 = vld [vmem:[%s863 + $0xb8] sm:$0xff]
      %v2974 = vld [vmem:[%s863 + $0xc0] sm:$0xff]
      %v2975 = vld [vmem:[%s863 + $0xc8] sm:$0xff]
      %v2976 = vld [vmem:[%s863 + $0xd0] sm:$0xff]
      %v2977 = vld [vmem:[%s863 + $0xd8] sm:$0xff]
      %v2978 = vld [vmem:[%s863 + $0xe0] sm:$0xff]
      %v2979 = vld [vmem:[%s863 + $0xe8] sm:$0xff]
      %v2980 = vld [vmem:[%s863 + $0xf0] sm:$0xff]
      %v2981 = vld [vmem:[%s863 + $0xf8] sm:$0xff]
      %2982 = vmatprep.subr.mxu0 %v2951
      %2983 = vmatpush1.msra.mxu0 %v2950
      %2984 = vmatprep.subr.mxu0 %v2953
      %2985 = vmatpush1.msra.mxu0 %v2952
      %2986 = vmatprep.subr.mxu0 %v2955
      %2987 = vmatpush1.msra.mxu0 %v2954
      %2988 = vmatprep.subr.mxu0 %v2957
      %2989 = vmatpush1.msra.mxu0 %v2956
      %2990 = vmatprep.subr.mxu0 %v2959
      %2991 = vmatpush1.msra.mxu0 %v2958
      %2992 = vmatprep.subr.mxu0 %v2961
      %2993 = vmatpush1.msra.mxu0 %v2960
      %2994 = vmatprep.subr.mxu0 %v2963
      %2995 = vmatpush1.msra.mxu0 %v2962
      %2996 = vmatprep.subr.mxu0 %v2965
      %2997 = vmatpush1.msra.mxu0 %v2964
      %2998 = vmatprep.subr.mxu0 %v2967
      %2999 = vmatpush1.msra.mxu0 %v2966
      %3000 = vmatprep.subr.mxu0 %v2969
      %3001 = vmatpush1.msra.mxu0 %v2968
      %3002 = vmatprep.subr.mxu0 %v2971
      %3003 = vmatpush1.msra.mxu0 %v2970
      %3004 = vmatprep.subr.mxu0 %v2973
      %3005 = vmatpush1.msra.mxu0 %v2972
      %3006 = vmatprep.subr.mxu0 %v2975
      %3007 = vmatpush1.msra.mxu0 %v2974
      %3008 = vmatprep.subr.mxu0 %v2977
      %3009 = vmatpush1.msra.mxu0 %v2976
      %3010 = vmatprep.subr.mxu0 %v2979
      %3011 = vmatpush1.msra.mxu0 %v2978
      %3012 = vmatprep.subr.mxu0 %v2981
      %3013 = vmatpush1.msra.mxu0 %v2980
      %3014 = vmatprep.subr.mxu0 0.0
      %3015 = vmatpush1.msra.mxu0 0.0
      %3016 = vmatprep.subr.mxu0 0.0
      %3017 = vmatpush1.msra.mxu0 0.0
      %3018 = vmatprep.subr.mxu0 0.0
      %3019 = vmatpush1.msra.mxu0 0.0
      %3020 = vmatprep.subr.mxu0 0.0
      %3021 = vmatpush1.msra.mxu0 0.0
      %3022 = vmatprep.subr.mxu0 0.0
      %3023 = vmatpush1.msra.mxu0 0.0
      %3024 = vmatprep.subr.mxu0 0.0
      %3025 = vmatpush1.msra.mxu0 0.0
      %3026 = vmatprep.subr.mxu0 0.0
      %3027 = vmatpush1.msra.mxu0 0.0
      %3028 = vmatprep.subr.mxu0 0.0
      %3029 = vmatpush1.msra.mxu0 0.0
      %3030 = vmatprep.subr.mxu0 0.0
      %3031 = vmatpush1.msra.mxu0 0.0
      %3032 = vmatprep.subr.mxu0 0.0
      %3033 = vmatpush1.msra.mxu0 0.0
      %3034 = vmatprep.subr.mxu0 0.0
      %3035 = vmatpush1.msra.mxu0 0.0
      %3036 = vmatprep.subr.mxu0 0.0
      %3037 = vmatpush1.msra.mxu0 0.0
      %3038 = vmatprep.subr.mxu0 0.0
      %3039 = vmatpush1.msra.mxu0 0.0
      %3040 = vmatprep.subr.mxu0 0.0
      %3041 = vmatpush1.msra.mxu0 0.0
      %3042 = vmatprep.subr.mxu0 0.0
      %3043 = vmatpush1.msra.mxu0 0.0
      %3044 = vmatprep.subr.mxu0 0.0
      %3045 = vmatpush1.msra.mxu0 0.0
      %3046 = vmatprep.mubr.f32.mxu0 0.0
      %3047 = vmatmul.mubr.f32.gmra.mrb[0].mxu0 %v2948
      %v3048 = vpop.f32.mrb[0].mxu0
      %v3049 = vadd.f32 0.0, %v3048
      %v3050 = vpop.f32.mrb[0].mxu0
      %v3051 = vadd.f32 0.0, %v3050
      %3052 = vmatprep.mubr.f32.mxu0 0.0
      %3053 = vmatmul.mubr.f32.gmra.mrb[0].mxu0 %v2949
      %v3054 = vpop.f32.mrb[0].mxu0
      %v3055 = vadd.f32 0.0, %v3054
      %v3056 = vpop.f32.mrb[0].mxu0
      %v3057 = vadd.f32 0.0, %v3056
      %3058 = vdwg.mxu0
      %v3059 = vadd.f32 %v2943, %v3049
      %v3060 = vadd.f32 %v2944, %v3051
      %v3061 = vadd.f32 %v2945, %v3055
      %v3062 = vadd.f32 %v2946, %v3057
      %v3063 = vld [vmem:[%s2947 + $0x1] sm:$0xff]
      %v3064 = vld [vmem:[%s2947 + $0x9] sm:$0xff]
      %v3065 = vld [vmem:[%s979] sm:$0xff]
      %v3066 = vld [vmem:[%s979 + $0x8] sm:$0xff]
      %v3067 = vld [vmem:[%s979 + $0x10] sm:$0xff]
      %v3068 = vld [vmem:[%s979 + $0x18] sm:$0xff]
      %v3069 = vld [vmem:[%s979 + $0x20] sm:$0xff]
      %v3070 = vld [vmem:[%s979 + $0x28] sm:$0xff]
      %v3071 = vld [vmem:[%s979 + $0x30] sm:$0xff]
      %v3072 = vld [vmem:[%s979 + $0x38] sm:$0xff]
      %v3073 = vld [vmem:[%s979 + $0x40] sm:$0xff]
      %v3074 = vld [vmem:[%s979 + $0x48] sm:$0xff]
      %v3075 = vld [vmem:[%s979 + $0x50] sm:$0xff]
      %v3076 = vld [vmem:[%s979 + $0x58] sm:$0xff]
      %v3077 = vld [vmem:[%s979 + $0x60] sm:$0xff]
      %v3078 = vld [vmem:[%s979 + $0x68] sm:$0xff]
      %v3079 = vld [vmem:[%s979 + $0x70] sm:$0xff]
      %v3080 = vld [vmem:[%s979 + $0x78] sm:$0xff]
      %v3081 = vld [vmem:[%s979 + $0x80] sm:$0xff]
      %v3082 = vld [vmem:[%s979 + $0x88] sm:$0xff]
      %v3083 = vld [vmem:[%s979 + $0x90] sm:$0xff]
      %v3084 = vld [vmem:[%s979 + $0x98] sm:$0xff]
      %v3085 = vld [vmem:[%s979 + $0xa0] sm:$0xff]
      %v3086 = vld [vmem:[%s979 + $0xa8] sm:$0xff]
      %v3087 = vld [vmem:[%s979 + $0xb0] sm:$0xff]
      %v3088 = vld [vmem:[%s979 + $0xb8] sm:$0xff]
      %v3089 = vld [vmem:[%s979 + $0xc0] sm:$0xff]
      %v3090 = vld [vmem:[%s979 + $0xc8] sm:$0xff]
      %v3091 = vld [vmem:[%s979 + $0xd0] sm:$0xff]
      %v3092 = vld [vmem:[%s979 + $0xd8] sm:$0xff]
      %v3093 = vld [vmem:[%s979 + $0xe0] sm:$0xff]
      %v3094 = vld [vmem:[%s979 + $0xe8] sm:$0xff]
      %v3095 = vld [vmem:[%s979 + $0xf0] sm:$0xff]
      %v3096 = vld [vmem:[%s979 + $0xf8] sm:$0xff]
      %3097 = vmatprep.subr.mxu0 %v3066
      %3098 = vmatpush1.msra.mxu0 %v3065
      %3099 = vmatprep.subr.mxu0 %v3068
      %3100 = vmatpush1.msra.mxu0 %v3067
      %3101 = vmatprep.subr.mxu0 %v3070
      %3102 = vmatpush1.msra.mxu0 %v3069
      %3103 = vmatprep.subr.mxu0 %v3072
      %3104 = vmatpush1.msra.mxu0 %v3071
      %3105 = vmatprep.subr.mxu0 %v3074
      %3106 = vmatpush1.msra.mxu0 %v3073
      %3107 = vmatprep.subr.mxu0 %v3076
      %3108 = vmatpush1.msra.mxu0 %v3075
      %3109 = vmatprep.subr.mxu0 %v3078
      %3110 = vmatpush1.msra.mxu0 %v3077
      %3111 = vmatprep.subr.mxu0 %v3080
      %3112 = vmatpush1.msra.mxu0 %v3079
      %3113 = vmatprep.subr.mxu0 %v3082
      %3114 = vmatpush1.msra.mxu0 %v3081
      %3115 = vmatprep.subr.mxu0 %v3084
      %3116 = vmatpush1.msra.mxu0 %v3083
      %3117 = vmatprep.subr.mxu0 %v3086
      %3118 = vmatpush1.msra.mxu0 %v3085
      %3119 = vmatprep.subr.mxu0 %v3088
      %3120 = vmatpush1.msra.mxu0 %v3087
      %3121 = vmatprep.subr.mxu0 %v3090
      %3122 = vmatpush1.msra.mxu0 %v3089
      %3123 = vmatprep.subr.mxu0 %v3092
      %3124 = vmatpush1.msra.mxu0 %v3091
      %3125 = vmatprep.subr.mxu0 %v3094
      %3126 = vmatpush1.msra.mxu0 %v3093
      %3127 = vmatprep.subr.mxu0 %v3096
      %3128 = vmatpush1.msra.mxu0 %v3095
      %3129 = vmatprep.subr.mxu0 0.0
      %3130 = vmatpush1.msra.mxu0 0.0
      %3131 = vmatprep.subr.mxu0 0.0
      %3132 = vmatpush1.msra.mxu0 0.0
      %3133 = vmatprep.subr.mxu0 0.0
      %3134 = vmatpush1.msra.mxu0 0.0
      %3135 = vmatprep.subr.mxu0 0.0
      %3136 = vmatpush1.msra.mxu0 0.0
      %3137 = vmatprep.subr.mxu0 0.0
      %3138 = vmatpush1.msra.mxu0 0.0
      %3139 = vmatprep.subr.mxu0 0.0
      %3140 = vmatpush1.msra.mxu0 0.0
      %3141 = vmatprep.subr.mxu0 0.0
      %3142 = vmatpush1.msra.mxu0 0.0
      %3143 = vmatprep.subr.mxu0 0.0
      %3144 = vmatpush1.msra.mxu0 0.0
      %3145 = vmatprep.subr.mxu0 0.0
      %3146 = vmatpush1.msra.mxu0 0.0
      %3147 = vmatprep.subr.mxu0 0.0
      %3148 = vmatpush1.msra.mxu0 0.0
      %3149 = vmatprep.subr.mxu0 0.0
      %3150 = vmatpush1.msra.mxu0 0.0
      %3151 = vmatprep.subr.mxu0 0.0
      %3152 = vmatpush1.msra.mxu0 0.0
      %3153 = vmatprep.subr.mxu0 0.0
      %3154 = vmatpush1.msra.mxu0 0.0
      %3155 = vmatprep.subr.mxu0 0.0
      %3156 = vmatpush1.msra.mxu0 0.0
      %3157 = vmatprep.subr.mxu0 0.0
      %3158 = vmatpush1.msra.mxu0 0.0
      %3159 = vmatprep.subr.mxu0 0.0
      %3160 = vmatpush1.msra.mxu0 0.0
      %3161 = vmatprep.mubr.f32.mxu0 0.0
      %3162 = vmatmul.mubr.f32.gmra.mrb[0].mxu0 %v3063
      %v3163 = vpop.f32.mrb[0].mxu0
      %v3164 = vadd.f32 0.0, %v3163
      %v3165 = vpop.f32.mrb[0].mxu0
      %v3166 = vadd.f32 0.0, %v3165
      %3167 = vmatprep.mubr.f32.mxu0 0.0
      %3168 = vmatmul.mubr.f32.gmra.mrb[0].mxu0 %v3064
      %v3169 = vpop.f32.mrb[0].mxu0
      %v3170 = vadd.f32 0.0, %v3169
      %v3171 = vpop.f32.mrb[0].mxu0
      %v3172 = vadd.f32 0.0, %v3171
      %3173 = vdwg.mxu0
      %v3174 = vadd.f32 %v3059, %v3164
      %v3175 = vadd.f32 %v3060, %v3166
      %v3176 = vadd.f32 %v3061, %v3170
      %v3177 = vadd.f32 %v3062, %v3172
      %v3178 = vld [vmem:[%s2947 + $0x2] sm:$0xff]
      %v3179 = vld [vmem:[%s2947 + $0xa] sm:$0xff]
      %v3180 = vld [vmem:[%s1095] sm:$0xff]
      %v3181 = vld [vmem:[%s1095 + $0x8] sm:$0xff]
      %v3182 = vld [vmem:[%s1095 + $0x10] sm:$0xff]
      %v3183 = vld [vmem:[%s1095 + $0x18] sm:$0xff]
      %v3184 = vld [vmem:[%s1095 + $0x20] sm:$0xff]
      %v3185 = vld [vmem:[%s1095 + $0x28] sm:$0xff]
      %v3186 = vld [vmem:[%s1095 + $0x30] sm:$0xff]
      %v3187 = vld [vmem:[%s1095 + $0x38] sm:$0xff]
      %v3188 = vld [vmem:[%s1095 + $0x40] sm:$0xff]
      %v3189 = vld [vmem:[%s1095 + $0x48] sm:$0xff]
      %v3190 = vld [vmem:[%s1095 + $0x50] sm:$0xff]
      %v3191 = vld [vmem:[%s1095 + $0x58] sm:$0xff]
      %v3192 = vld [vmem:[%s1095 + $0x60] sm:$0xff]
      %v3193 = vld [vmem:[%s1095 + $0x68] sm:$0xff]
      %v3194 = vld [vmem:[%s1095 + $0x70] sm:$0xff]
      %v3195 = vld [vmem:[%s1095 + $0x78] sm:$0xff]
      %v3196 = vld [vmem:[%s1095 + $0x80] sm:$0xff]
      %v3197 = vld [vmem:[%s1095 + $0x88] sm:$0xff]
      %v3198 = vld [vmem:[%s1095 + $0x90] sm:$0xff]
      %v3199 = vld [vmem:[%s1095 + $0x98] sm:$0xff]
      %v3200 = vld [vmem:[%s1095 + $0xa0] sm:$0xff]
      %v3201 = vld [vmem:[%s1095 + $0xa8] sm:$0xff]
      %v3202 = vld [vmem:[%s1095 + $0xb0] sm:$0xff]
      %v3203 = vld [vmem:[%s1095 + $0xb8] sm:$0xff]
      %v3204 = vld [vmem:[%s1095 + $0xc0] sm:$0xff]
      %v3205 = vld [vmem:[%s1095 + $0xc8] sm:$0xff]
      %v3206 = vld [vmem:[%s1095 + $0xd0] sm:$0xff]
      %v3207 = vld [vmem:[%s1095 + $0xd8] sm:$0xff]
      %v3208 = vld [vmem:[%s1095 + $0xe0] sm:$0xff]
      %v3209 = vld [vmem:[%s1095 + $0xe8] sm:$0xff]
      %v3210 = vld [vmem:[%s1095 + $0xf0] sm:$0xff]
      %v3211 = vld [vmem:[%s1095 + $0xf8] sm:$0xff]
      %3212 = vmatprep.subr.mxu0 %v3181
      %3213 = vmatpush1.msra.mxu0 %v3180
      %3214 = vmatprep.subr.mxu0 %v3183
      %3215 = vmatpush1.msra.mxu0 %v3182
      %3216 = vmatprep.subr.mxu0 %v3185
      %3217 = vmatpush1.msra.mxu0 %v3184
      %3218 = vmatprep.subr.mxu0 %v3187
      %3219 = vmatpush1.msra.mxu0 %v3186
      %3220 = vmatprep.subr.mxu0 %v3189
      %3221 = vmatpush1.msra.mxu0 %v3188
      %3222 = vmatprep.subr.mxu0 %v3191
      %3223 = vmatpush1.msra.mxu0 %v3190
      %3224 = vmatprep.subr.mxu0 %v3193
      %3225 = vmatpush1.msra.mxu0 %v3192
      %3226 = vmatprep.subr.mxu0 %v3195
      %3227 = vmatpush1.msra.mxu0 %v3194
      %3228 = vmatprep.subr.mxu0 %v3197
      %3229 = vmatpush1.msra.mxu0 %v3196
      %3230 = vmatprep.subr.mxu0 %v3199
      %3231 = vmatpush1.msra.mxu0 %v3198
      %3232 = vmatprep.subr.mxu0 %v3201
      %3233 = vmatpush1.msra.mxu0 %v3200
      %3234 = vmatprep.subr.mxu0 %v3203
      %3235 = vmatpush1.msra.mxu0 %v3202
      %3236 = vmatprep.subr.mxu0 %v3205
      %3237 = vmatpush1.msra.mxu0 %v3204
      %3238 = vmatprep.subr.mxu0 %v3207
      %3239 = vmatpush1.msra.mxu0 %v3206
      %3240 = vmatprep.subr.mxu0 %v3209
      %3241 = vmatpush1.msra.mxu0 %v3208
      %3242 = vmatprep.subr.mxu0 %v3211
      %3243 = vmatpush1.msra.mxu0 %v3210
      %3244 = vmatprep.subr.mxu0 0.0
      %3245 = vmatpush1.msra.mxu0 0.0
      %3246 = vmatprep.subr.mxu0 0.0
      %3247 = vmatpush1.msra.mxu0 0.0
      %3248 = vmatprep.subr.mxu0 0.0
      %3249 = vmatpush1.msra.mxu0 0.0
      %3250 = vmatprep.subr.mxu0 0.0
      %3251 = vmatpush1.msra.mxu0 0.0
      %3252 = vmatprep.subr.mxu0 0.0
      %3253 = vmatpush1.msra.mxu0 0.0
      %3254 = vmatprep.subr.mxu0 0.0
      %3255 = vmatpush1.msra.mxu0 0.0
      %3256 = vmatprep.subr.mxu0 0.0
      %3257 = vmatpush1.msra.mxu0 0.0
      %3258 = vmatprep.subr.mxu0 0.0
      %3259 = vmatpush1.msra.mxu0 0.0
      %3260 = vmatprep.subr.mxu0 0.0
      %3261 = vmatpush1.msra.mxu0 0.0
      %3262 = vmatprep.subr.mxu0 0.0
      %3263 = vmatpush1.msra.mxu0 0.0
      %3264 = vmatprep.subr.mxu0 0.0
      %3265 = vmatpush1.msra.mxu0 0.0
      %3266 = vmatprep.subr.mxu0 0.0
      %3267 = vmatpush1.msra.mxu0 0.0
      %3268 = vmatprep.subr.mxu0 0.0
      %3269 = vmatpush1.msra.mxu0 0.0
      %3270 = vmatprep.subr.mxu0 0.0
      %3271 = vmatpush1.msra.mxu0 0.0
      %3272 = vmatprep.subr.mxu0 0.0
      %3273 = vmatpush1.msra.mxu0 0.0
      %3274 = vmatprep.subr.mxu0 0.0
      %3275 = vmatpush1.msra.mxu0 0.0
      %3276 = vmatprep.mubr.f32.mxu0 0.0
      %3277 = vmatmul.mubr.f32.gmra.mrb[0].mxu0 %v3178
      %v3278 = vpop.f32.mrb[0].mxu0
      %v3279 = vadd.f32 0.0, %v3278
      %v3280 = vpop.f32.mrb[0].mxu0
      %v3281 = vadd.f32 0.0, %v3280
      %3282 = vmatprep.mubr.f32.mxu0 0.0
      %3283 = vmatmul.mubr.f32.gmra.mrb[0].mxu0 %v3179
      %v3284 = vpop.f32.mrb[0].mxu0
      %v3285 = vadd.f32 0.0, %v3284
      %v3286 = vpop.f32.mrb[0].mxu0
      %v3287 = vadd.f32 0.0, %v3286
      %3288 = vdwg.mxu0
      %v3289 = vadd.f32 %v3174, %v3279
      %v3290 = vadd.f32 %v3175, %v3281
      %v3291 = vadd.f32 %v3176, %v3285
      %v3292 = vadd.f32 %v3177, %v3287
      %v3293 = vadd.f32 %v3289, %v1213
      %v3294 = vadd.f32 %v3290, %v1217
      %v3295 = vadd.f32 %v3291, %v1213
      %v3296 = vadd.f32 %v3292, %v1217
      %s3297 = scalar_lea.vmem %s170, 64
      %3298 = vst [vmem:[%s3297] sm:$0xff] %v3293
      %3299 = vst [vmem:[%s3297 + $0x8] sm:$0xff] %v3294
      %3300 = vst [vmem:[%s3297 + $0x10] sm:$0xff] %v3295
      %3301 = vst [vmem:[%s3297 + $0x18] sm:$0xff] %v3296
      %v3302 = vld [vmem:[%s1910] sm:$0xff]
      %v3303 = vld [vmem:[%s1910 + $0x8] sm:$0xff]
      %v3304 = vld [vmem:[%s1] sm:$0xff]
      %v3305 = vld [vmem:[%s1 + $0x8] sm:$0xff]
      %v3306 = vld [vmem:[%s1 + $0x10] sm:$0xff]
      %v3307 = vld [vmem:[%s1 + $0x18] sm:$0xff]
      %v3308 = vld [vmem:[%s1 + $0x20] sm:$0xff]
      %v3309 = vld [vmem:[%s1 + $0x28] sm:$0xff]
      %v3310 = vld [vmem:[%s1 + $0x30] sm:$0xff]
      %v3311 = vld [vmem:[%s1 + $0x38] sm:$0xff]
      %v3312 = vld [vmem:[%s1 + $0x40] sm:$0xff]
      %v3313 = vld [vmem:[%s1 + $0x48] sm:$0xff]
      %v3314 = vld [vmem:[%s1 + $0x50] sm:$0xff]
      %v3315 = vld [vmem:[%s1 + $0x58] sm:$0xff]
      %v3316 = vld [vmem:[%s1 + $0x60] sm:$0xff]
      %v3317 = vld [vmem:[%s1 + $0x68] sm:$0xff]
      %v3318 = vld [vmem:[%s1 + $0x70] sm:$0xff]
      %v3319 = vld [vmem:[%s1 + $0x78] sm:$0xff]
      %v3320 = vld [vmem:[%s1 + $0x80] sm:$0xff]
      %v3321 = vld [vmem:[%s1 + $0x88] sm:$0xff]
      %v3322 = vld [vmem:[%s1 + $0x90] sm:$0xff]
      %v3323 = vld [vmem:[%s1 + $0x98] sm:$0xff]
      %v3324 = vld [vmem:[%s1 + $0xa0] sm:$0xff]
      %v3325 = vld [vmem:[%s1 + $0xa8] sm:$0xff]
      %v3326 = vld [vmem:[%s1 + $0xb0] sm:$0xff]
      %v3327 = vld [vmem:[%s1 + $0xb8] sm:$0xff]
      %v3328 = vld [vmem:[%s1 + $0xc0] sm:$0xff]
      %v3329 = vld [vmem:[%s1 + $0xc8] sm:$0xff]
      %v3330 = vld [vmem:[%s1 + $0xd0] sm:$0xff]
      %v3331 = vld [vmem:[%s1 + $0xd8] sm:$0xff]
      %v3332 = vld [vmem:[%s1 + $0xe0] sm:$0xff]
      %v3333 = vld [vmem:[%s1 + $0xe8] sm:$0xff]
      %v3334 = vld [vmem:[%s1 + $0xf0] sm:$0xff]
      %v3335 = vld [vmem:[%s1 + $0xf8] sm:$0xff]
      %v3336 = vld [vmem:[%s1910 + $0x1] sm:$0xff]
      %v3337 = vld [vmem:[%s1910 + $0x9] sm:$0xff]
      %v3338 = vld [vmem:[%s208] sm:$0xff]
      %v3339 = vld [vmem:[%s208 + $0x8] sm:$0xff]
      %v3340 = vld [vmem:[%s208 + $0x10] sm:$0xff]
      %v3341 = vld [vmem:[%s208 + $0x18] sm:$0xff]
      %v3342 = vld [vmem:[%s208 + $0x20] sm:$0xff]
      %v3343 = vld [vmem:[%s208 + $0x28] sm:$0xff]
      %v3344 = vld [vmem:[%s208 + $0x30] sm:$0xff]
      %v3345 = vld [vmem:[%s208 + $0x38] sm:$0xff]
      %v3346 = vld [vmem:[%s208 + $0x40] sm:$0xff]
      %v3347 = vld [vmem:[%s208 + $0x48] sm:$0xff]
      %v3348 = vld [vmem:[%s208 + $0x50] sm:$0xff]
      %v3349 = vld [vmem:[%s208 + $0x58] sm:$0xff]
      %v3350 = vld [vmem:[%s208 + $0x60] sm:$0xff]
      %v3351 = vld [vmem:[%s208 + $0x68] sm:$0xff]
      %v3352 = vld [vmem:[%s208 + $0x70] sm:$0xff]
      %v3353 = vld [vmem:[%s208 + $0x78] sm:$0xff]
      %v3354 = vld [vmem:[%s208 + $0x80] sm:$0xff]
      %v3355 = vld [vmem:[%s208 + $0x88] sm:$0xff]
      %v3356 = vld [vmem:[%s208 + $0x90] sm:$0xff]
      %v3357 = vld [vmem:[%s208 + $0x98] sm:$0xff]
      %v3358 = vld [vmem:[%s208 + $0xa0] sm:$0xff]
      %v3359 = vld [vmem:[%s208 + $0xa8] sm:$0xff]
      %v3360 = vld [vmem:[%s208 + $0xb0] sm:$0xff]
      %v3361 = vld [vmem:[%s208 + $0xb8] sm:$0xff]
      %v3362 = vld [vmem:[%s208 + $0xc0] sm:$0xff]
      %v3363 = vld [vmem:[%s208 + $0xc8] sm:$0xff]
      %v3364 = vld [vmem:[%s208 + $0xd0] sm:$0xff]
      %v3365 = vld [vmem:[%s208 + $0xd8] sm:$0xff]
      %v3366 = vld [vmem:[%s208 + $0xe0] sm:$0xff]
      %v3367 = vld [vmem:[%s208 + $0xe8] sm:$0xff]
      %v3368 = vld [vmem:[%s208 + $0xf0] sm:$0xff]
      %v3369 = vld [vmem:[%s208 + $0xf8] sm:$0xff]
      %3370 = vmatprep.subr.mxu0 %v3339
      %3371 = vmatpush1.msra.mxu0 %v3338
      %3372 = vmatprep.subr.mxu0 %v3341
      %3373 = vmatpush1.msra.mxu0 %v3340
      %3374 = vmatprep.subr.mxu0 %v3343
      %3375 = vmatpush1.msra.mxu0 %v3342
      %3376 = vmatprep.subr.mxu0 %v3345
      %3377 = vmatpush1.msra.mxu0 %v3344
      %3378 = vmatprep.subr.mxu0 %v3347
      %3379 = vmatpush1.msra.mxu0 %v3346
      %3380 = vmatprep.subr.mxu0 %v3349
      %3381 = vmatpush1.msra.mxu0 %v3348
      %3382 = vmatprep.subr.mxu0 %v3351
      %3383 = vmatpush1.msra.mxu0 %v3350
      %3384 = vmatprep.subr.mxu0 %v3353
      %3385 = vmatpush1.msra.mxu0 %v3352
      %3386 = vmatprep.subr.mxu0 %v3355
      %3387 = vmatpush1.msra.mxu0 %v3354
      %3388 = vmatprep.subr.mxu0 %v3357
      %3389 = vmatpush1.msra.mxu0 %v3356
      %3390 = vmatprep.subr.mxu0 %v3359
      %3391 = vmatpush1.msra.mxu0 %v3358
      %3392 = vmatprep.subr.mxu0 %v3361
      %3393 = vmatpush1.msra.mxu0 %v3360
      %3394 = vmatprep.subr.mxu0 %v3363
      %3395 = vmatpush1.msra.mxu0 %v3362
      %3396 = vmatprep.subr.mxu0 %v3365
      %3397 = vmatpush1.msra.mxu0 %v3364
      %3398 = vmatprep.subr.mxu0 %v3367
      %3399 = vmatpush1.msra.mxu0 %v3366
      %3400 = vmatprep.subr.mxu0 %v3369
      %3401 = vmatpush1.msra.mxu0 %v3368
      %3402 = vmatprep.subr.mxu0 0.0
      %3403 = vmatpush1.msra.mxu0 0.0
      %3404 = vmatprep.subr.mxu0 0.0
      %3405 = vmatpush1.msra.mxu0 0.0
      %3406 = vmatprep.subr.mxu0 0.0
      %3407 = vmatpush1.msra.mxu0 0.0
      %3408 = vmatprep.subr.mxu0 0.0
      %3409 = vmatpush1.msra.mxu0 0.0
      %3410 = vmatprep.subr.mxu0 0.0
      %3411 = vmatpush1.msra.mxu0 0.0
      %3412 = vmatprep.subr.mxu0 0.0
      %3413 = vmatpush1.msra.mxu0 0.0
      %3414 = vmatprep.subr.mxu0 0.0
      %3415 = vmatpush1.msra.mxu0 0.0
      %3416 = vmatprep.subr.mxu0 0.0
      %3417 = vmatpush1.msra.mxu0 0.0
      %3418 = vmatprep.subr.mxu0 0.0
      %3419 = vmatpush1.msra.mxu0 0.0
      %3420 = vmatprep.subr.mxu0 0.0
      %3421 = vmatpush1.msra.mxu0 0.0
      %3422 = vmatprep.subr.mxu0 0.0
      %3423 = vmatpush1.msra.mxu0 0.0
      %3424 = vmatprep.subr.mxu0 0.0
      %3425 = vmatpush1.msra.mxu0 0.0
      %3426 = vmatprep.subr.mxu0 0.0
      %3427 = vmatpush1.msra.mxu0 0.0
      %3428 = vmatprep.subr.mxu0 0.0
      %3429 = vmatpush1.msra.mxu0 0.0
      %3430 = vmatprep.subr.mxu0 0.0
      %3431 = vmatpush1.msra.mxu0 0.0
      %3432 = vmatprep.subr.mxu0 0.0
      %3433 = vmatpush1.msra.mxu0 0.0
      %3434 = vmatprep.mubr.f32.mxu0 0.0
      %3435 = vmatmul.mubr.f32.gmra.mrb[0].mxu0 %v3336
      %v3436 = vpop.f32.mrb[0].mxu0
      %v3437 = vadd.f32 0.0, %v3436
      %v3438 = vpop.f32.mrb[0].mxu0
      %v3439 = vadd.f32 0.0, %v3438
      %3440 = vmatprep.mubr.f32.mxu0 0.0
      %3441 = vmatmul.mubr.f32.gmra.mrb[0].mxu0 %v3337
      %v3442 = vpop.f32.mrb[0].mxu0
      %v3443 = vadd.f32 0.0, %v3442
      %v3444 = vpop.f32.mrb[0].mxu0
      %v3445 = vadd.f32 0.0, %v3444
      %3446 = vdwg.mxu0
      %3447 = vmatprep.subr.mxu0 %v3305
      %3448 = vmatpush1.msra.mxu0 %v3304
      %3449 = vmatprep.subr.mxu0 %v3307
      %3450 = vmatpush1.msra.mxu0 %v3306
      %3451 = vmatprep.subr.mxu0 %v3309
      %3452 = vmatpush1.msra.mxu0 %v3308
      %3453 = vmatprep.subr.mxu0 %v3311
      %3454 = vmatpush1.msra.mxu0 %v3310
      %3455 = vmatprep.subr.mxu0 %v3313
      %3456 = vmatpush1.msra.mxu0 %v3312
      %3457 = vmatprep.subr.mxu0 %v3315
      %3458 = vmatpush1.msra.mxu0 %v3314
      %3459 = vmatprep.subr.mxu0 %v3317
      %3460 = vmatpush1.msra.mxu0 %v3316
      %3461 = vmatprep.subr.mxu0 %v3319
      %3462 = vmatpush1.msra.mxu0 %v3318
      %3463 = vmatprep.subr.mxu0 %v3321
      %3464 = vmatpush1.msra.mxu0 %v3320
      %3465 = vmatprep.subr.mxu0 %v3323
      %3466 = vmatpush1.msra.mxu0 %v3322
      %3467 = vmatprep.subr.mxu0 %v3325
      %3468 = vmatpush1.msra.mxu0 %v3324
      %3469 = vmatprep.subr.mxu0 %v3327
      %3470 = vmatpush1.msra.mxu0 %v3326
      %3471 = vmatprep.subr.mxu0 %v3329
      %3472 = vmatpush1.msra.mxu0 %v3328
      %3473 = vmatprep.subr.mxu0 %v3331
      %3474 = vmatpush1.msra.mxu0 %v3330
      %3475 = vmatprep.subr.mxu0 %v3333
      %3476 = vmatpush1.msra.mxu0 %v3332
      %3477 = vmatprep.subr.mxu0 %v3335
      %3478 = vmatpush1.msra.mxu0 %v3334
      %3479 = vmatprep.subr.mxu0 0.0
      %3480 = vmatpush1.msra.mxu0 0.0
      %3481 = vmatprep.subr.mxu0 0.0
      %3482 = vmatpush1.msra.mxu0 0.0
      %3483 = vmatprep.subr.mxu0 0.0
      %3484 = vmatpush1.msra.mxu0 0.0
      %3485 = vmatprep.subr.mxu0 0.0
      %3486 = vmatpush1.msra.mxu0 0.0
      %3487 = vmatprep.subr.mxu0 0.0
      %3488 = vmatpush1.msra.mxu0 0.0
      %3489 = vmatprep.subr.mxu0 0.0
      %3490 = vmatpush1.msra.mxu0 0.0
      %3491 = vmatprep.subr.mxu0 0.0
      %3492 = vmatpush1.msra.mxu0 0.0
      %3493 = vmatprep.subr.mxu0 0.0
      %3494 = vmatpush1.msra.mxu0 0.0
      %3495 = vmatprep.subr.mxu0 0.0
      %3496 = vmatpush1.msra.mxu0 0.0
      %3497 = vmatprep.subr.mxu0 0.0
      %3498 = vmatpush1.msra.mxu0 0.0
      %3499 = vmatprep.subr.mxu0 0.0
      %3500 = vmatpush1.msra.mxu0 0.0
      %3501 = vmatprep.subr.mxu0 0.0
      %3502 = vmatpush1.msra.mxu0 0.0
      %3503 = vmatprep.subr.mxu0 0.0
      %3504 = vmatpush1.msra.mxu0 0.0
      %3505 = vmatprep.subr.mxu0 0.0
      %3506 = vmatpush1.msra.mxu0 0.0
      %3507 = vmatprep.subr.mxu0 0.0
      %3508 = vmatpush1.msra.mxu0 0.0
      %3509 = vmatprep.subr.mxu0 0.0
      %3510 = vmatpush1.msra.mxu0 0.0
      %3511 = vmatprep.mubr.f32.mxu0 0.0
      %3512 = vmatmul.mubr.f32.gmra.mrb[0].mxu0 %v3302
      %v3513 = vpop.f32.mrb[0].mxu0
      %v3514 = vadd.f32 %v3437, %v3513
      %v3515 = vpop.f32.mrb[0].mxu0
      %v3516 = vadd.f32 %v3439, %v3515
      %3517 = vmatprep.mubr.f32.mxu0 0.0
      %3518 = vmatmul.mubr.f32.gmra.mrb[0].mxu0 %v3303
      %v3519 = vpop.f32.mrb[0].mxu0
      %v3520 = vadd.f32 %v3443, %v3519
      %v3521 = vpop.f32.mrb[0].mxu0
      %v3522 = vadd.f32 %v3445, %v3521
      %3523 = vdwg.mxu0
      %v3524 = vld [vmem:[%s1910 + $0x2] sm:$0xff]
      %v3525 = vld [vmem:[%s1910 + $0xa] sm:$0xff]
      %v3526 = vld [vmem:[%s397] sm:$0xff]
      %v3527 = vld [vmem:[%s397 + $0x8] sm:$0xff]
      %v3528 = vld [vmem:[%s397 + $0x10] sm:$0xff]
      %v3529 = vld [vmem:[%s397 + $0x18] sm:$0xff]
      %v3530 = vld [vmem:[%s397 + $0x20] sm:$0xff]
      %v3531 = vld [vmem:[%s397 + $0x28] sm:$0xff]
      %v3532 = vld [vmem:[%s397 + $0x30] sm:$0xff]
      %v3533 = vld [vmem:[%s397 + $0x38] sm:$0xff]
      %v3534 = vld [vmem:[%s397 + $0x40] sm:$0xff]
      %v3535 = vld [vmem:[%s397 + $0x48] sm:$0xff]
      %v3536 = vld [vmem:[%s397 + $0x50] sm:$0xff]
      %v3537 = vld [vmem:[%s397 + $0x58] sm:$0xff]
      %v3538 = vld [vmem:[%s397 + $0x60] sm:$0xff]
      %v3539 = vld [vmem:[%s397 + $0x68] sm:$0xff]
      %v3540 = vld [vmem:[%s397 + $0x70] sm:$0xff]
      %v3541 = vld [vmem:[%s397 + $0x78] sm:$0xff]
      %v3542 = vld [vmem:[%s397 + $0x80] sm:$0xff]
      %v3543 = vld [vmem:[%s397 + $0x88] sm:$0xff]
      %v3544 = vld [vmem:[%s397 + $0x90] sm:$0xff]
      %v3545 = vld [vmem:[%s397 + $0x98] sm:$0xff]
      %v3546 = vld [vmem:[%s397 + $0xa0] sm:$0xff]
      %v3547 = vld [vmem:[%s397 + $0xa8] sm:$0xff]
      %v3548 = vld [vmem:[%s397 + $0xb0] sm:$0xff]
      %v3549 = vld [vmem:[%s397 + $0xb8] sm:$0xff]
      %v3550 = vld [vmem:[%s397 + $0xc0] sm:$0xff]
      %v3551 = vld [vmem:[%s397 + $0xc8] sm:$0xff]
      %v3552 = vld [vmem:[%s397 + $0xd0] sm:$0xff]
      %v3553 = vld [vmem:[%s397 + $0xd8] sm:$0xff]
      %v3554 = vld [vmem:[%s397 + $0xe0] sm:$0xff]
      %v3555 = vld [vmem:[%s397 + $0xe8] sm:$0xff]
      %v3556 = vld [vmem:[%s397 + $0xf0] sm:$0xff]
      %v3557 = vld [vmem:[%s397 + $0xf8] sm:$0xff]
      %3558 = vmatprep.subr.mxu0 %v3527
      %3559 = vmatpush1.msra.mxu0 %v3526
      %3560 = vmatprep.subr.mxu0 %v3529
      %3561 = vmatpush1.msra.mxu0 %v3528
      %3562 = vmatprep.subr.mxu0 %v3531
      %3563 = vmatpush1.msra.mxu0 %v3530
      %3564 = vmatprep.subr.mxu0 %v3533
      %3565 = vmatpush1.msra.mxu0 %v3532
      %3566 = vmatprep.subr.mxu0 %v3535
      %3567 = vmatpush1.msra.mxu0 %v3534
      %3568 = vmatprep.subr.mxu0 %v3537
      %3569 = vmatpush1.msra.mxu0 %v3536
      %3570 = vmatprep.subr.mxu0 %v3539
      %3571 = vmatpush1.msra.mxu0 %v3538
      %3572 = vmatprep.subr.mxu0 %v3541
      %3573 = vmatpush1.msra.mxu0 %v3540
      %3574 = vmatprep.subr.mxu0 %v3543
      %3575 = vmatpush1.msra.mxu0 %v3542
      %3576 = vmatprep.subr.mxu0 %v3545
      %3577 = vmatpush1.msra.mxu0 %v3544
      %3578 = vmatprep.subr.mxu0 %v3547
      %3579 = vmatpush1.msra.mxu0 %v3546
      %3580 = vmatprep.subr.mxu0 %v3549
      %3581 = vmatpush1.msra.mxu0 %v3548
      %3582 = vmatprep.subr.mxu0 %v3551
      %3583 = vmatpush1.msra.mxu0 %v3550
      %3584 = vmatprep.subr.mxu0 %v3553
      %3585 = vmatpush1.msra.mxu0 %v3552
      %3586 = vmatprep.subr.mxu0 %v3555
      %3587 = vmatpush1.msra.mxu0 %v3554
      %3588 = vmatprep.subr.mxu0 %v3557
      %3589 = vmatpush1.msra.mxu0 %v3556
      %3590 = vmatprep.subr.mxu0 0.0
      %3591 = vmatpush1.msra.mxu0 0.0
      %3592 = vmatprep.subr.mxu0 0.0
      %3593 = vmatpush1.msra.mxu0 0.0
      %3594 = vmatprep.subr.mxu0 0.0
      %3595 = vmatpush1.msra.mxu0 0.0
      %3596 = vmatprep.subr.mxu0 0.0
      %3597 = vmatpush1.msra.mxu0 0.0
      %3598 = vmatprep.subr.mxu0 0.0
      %3599 = vmatpush1.msra.mxu0 0.0
      %3600 = vmatprep.subr.mxu0 0.0
      %3601 = vmatpush1.msra.mxu0 0.0
      %3602 = vmatprep.subr.mxu0 0.0
      %3603 = vmatpush1.msra.mxu0 0.0
      %3604 = vmatprep.subr.mxu0 0.0
      %3605 = vmatpush1.msra.mxu0 0.0
      %3606 = vmatprep.subr.mxu0 0.0
      %3607 = vmatpush1.msra.mxu0 0.0
      %3608 = vmatprep.subr.mxu0 0.0
      %3609 = vmatpush1.msra.mxu0 0.0
      %3610 = vmatprep.subr.mxu0 0.0
      %3611 = vmatpush1.msra.mxu0 0.0
      %3612 = vmatprep.subr.mxu0 0.0
      %3613 = vmatpush1.msra.mxu0 0.0
      %3614 = vmatprep.subr.mxu0 0.0
      %3615 = vmatpush1.msra.mxu0 0.0
      %3616 = vmatprep.subr.mxu0 0.0
      %3617 = vmatpush1.msra.mxu0 0.0
      %3618 = vmatprep.subr.mxu0 0.0
      %3619 = vmatpush1.msra.mxu0 0.0
      %3620 = vmatprep.subr.mxu0 0.0
      %3621 = vmatpush1.msra.mxu0 0.0
      %3622 = vmatprep.mubr.f32.mxu0 0.0
      %3623 = vmatmul.mubr.f32.gmra.mrb[0].mxu0 %v3524
      %v3624 = vpop.f32.mrb[0].mxu0
      %v3625 = vadd.f32 0.0, %v3624
      %v3626 = vpop.f32.mrb[0].mxu0
      %v3627 = vadd.f32 0.0, %v3626
      %3628 = vmatprep.mubr.f32.mxu0 0.0
      %3629 = vmatmul.mubr.f32.gmra.mrb[0].mxu0 %v3525
      %v3630 = vpop.f32.mrb[0].mxu0
      %v3631 = vadd.f32 0.0, %v3630
      %v3632 = vpop.f32.mrb[0].mxu0
      %v3633 = vadd.f32 0.0, %v3632
      %3634 = vdwg.mxu0
      %v3635 = vadd.f32 %v3514, %v3625
      %v3636 = vadd.f32 %v3516, %v3627
      %v3637 = vadd.f32 %v3520, %v3631
      %v3638 = vadd.f32 %v3522, %v3633
      %v3639 = vld [vmem:[%s2947] sm:$0xff]
      %v3640 = vld [vmem:[%s2947 + $0x8] sm:$0xff]
      %v3641 = vld [vmem:[%s514] sm:$0xff]
      %v3642 = vld [vmem:[%s514 + $0x8] sm:$0xff]
      %v3643 = vld [vmem:[%s514 + $0x10] sm:$0xff]
      %v3644 = vld [vmem:[%s514 + $0x18] sm:$0xff]
      %v3645 = vld [vmem:[%s514 + $0x20] sm:$0xff]
      %v3646 = vld [vmem:[%s514 + $0x28] sm:$0xff]
      %v3647 = vld [vmem:[%s514 + $0x30] sm:$0xff]
      %v3648 = vld [vmem:[%s514 + $0x38] sm:$0xff]
      %v3649 = vld [vmem:[%s514 + $0x40] sm:$0xff]
      %v3650 = vld [vmem:[%s514 + $0x48] sm:$0xff]
      %v3651 = vld [vmem:[%s514 + $0x50] sm:$0xff]
      %v3652 = vld [vmem:[%s514 + $0x58] sm:$0xff]
      %v3653 = vld [vmem:[%s514 + $0x60] sm:$0xff]
      %v3654 = vld [vmem:[%s514 + $0x68] sm:$0xff]
      %v3655 = vld [vmem:[%s514 + $0x70] sm:$0xff]
      %v3656 = vld [vmem:[%s514 + $0x78] sm:$0xff]
      %v3657 = vld [vmem:[%s514 + $0x80] sm:$0xff]
      %v3658 = vld [vmem:[%s514 + $0x88] sm:$0xff]
      %v3659 = vld [vmem:[%s514 + $0x90] sm:$0xff]
      %v3660 = vld [vmem:[%s514 + $0x98] sm:$0xff]
      %v3661 = vld [vmem:[%s514 + $0xa0] sm:$0xff]
      %v3662 = vld [vmem:[%s514 + $0xa8] sm:$0xff]
      %v3663 = vld [vmem:[%s514 + $0xb0] sm:$0xff]
      %v3664 = vld [vmem:[%s514 + $0xb8] sm:$0xff]
      %v3665 = vld [vmem:[%s514 + $0xc0] sm:$0xff]
      %v3666 = vld [vmem:[%s514 + $0xc8] sm:$0xff]
      %v3667 = vld [vmem:[%s514 + $0xd0] sm:$0xff]
      %v3668 = vld [vmem:[%s514 + $0xd8] sm:$0xff]
      %v3669 = vld [vmem:[%s514 + $0xe0] sm:$0xff]
      %v3670 = vld [vmem:[%s514 + $0xe8] sm:$0xff]
      %v3671 = vld [vmem:[%s514 + $0xf0] sm:$0xff]
      %v3672 = vld [vmem:[%s514 + $0xf8] sm:$0xff]
      %3673 = vmatprep.subr.mxu0 %v3642
      %3674 = vmatpush1.msra.mxu0 %v3641
      %3675 = vmatprep.subr.mxu0 %v3644
      %3676 = vmatpush1.msra.mxu0 %v3643
      %3677 = vmatprep.subr.mxu0 %v3646
      %3678 = vmatpush1.msra.mxu0 %v3645
      %3679 = vmatprep.subr.mxu0 %v3648
      %3680 = vmatpush1.msra.mxu0 %v3647
      %3681 = vmatprep.subr.mxu0 %v3650
      %3682 = vmatpush1.msra.mxu0 %v3649
      %3683 = vmatprep.subr.mxu0 %v3652
      %3684 = vmatpush1.msra.mxu0 %v3651
      %3685 = vmatprep.subr.mxu0 %v3654
      %3686 = vmatpush1.msra.mxu0 %v3653
      %3687 = vmatprep.subr.mxu0 %v3656
      %3688 = vmatpush1.msra.mxu0 %v3655
      %3689 = vmatprep.subr.mxu0 %v3658
      %3690 = vmatpush1.msra.mxu0 %v3657
      %3691 = vmatprep.subr.mxu0 %v3660
      %3692 = vmatpush1.msra.mxu0 %v3659
      %3693 = vmatprep.subr.mxu0 %v3662
      %3694 = vmatpush1.msra.mxu0 %v3661
      %3695 = vmatprep.subr.mxu0 %v3664
      %3696 = vmatpush1.msra.mxu0 %v3663
      %3697 = vmatprep.subr.mxu0 %v3666
      %3698 = vmatpush1.msra.mxu0 %v3665
      %3699 = vmatprep.subr.mxu0 %v3668
      %3700 = vmatpush1.msra.mxu0 %v3667
      %3701 = vmatprep.subr.mxu0 %v3670
      %3702 = vmatpush1.msra.mxu0 %v3669
      %3703 = vmatprep.subr.mxu0 %v3672
      %3704 = vmatpush1.msra.mxu0 %v3671
      %3705 = vmatprep.subr.mxu0 0.0
      %3706 = vmatpush1.msra.mxu0 0.0
      %3707 = vmatprep.subr.mxu0 0.0
      %3708 = vmatpush1.msra.mxu0 0.0
      %3709 = vmatprep.subr.mxu0 0.0
      %3710 = vmatpush1.msra.mxu0 0.0
      %3711 = vmatprep.subr.mxu0 0.0
      %3712 = vmatpush1.msra.mxu0 0.0
      %3713 = vmatprep.subr.mxu0 0.0
      %3714 = vmatpush1.msra.mxu0 0.0
      %3715 = vmatprep.subr.mxu0 0.0
      %3716 = vmatpush1.msra.mxu0 0.0
      %3717 = vmatprep.subr.mxu0 0.0
      %3718 = vmatpush1.msra.mxu0 0.0
      %3719 = vmatprep.subr.mxu0 0.0
      %3720 = vmatpush1.msra.mxu0 0.0
      %3721 = vmatprep.subr.mxu0 0.0
      %3722 = vmatpush1.msra.mxu0 0.0
      %3723 = vmatprep.subr.mxu0 0.0
      %3724 = vmatpush1.msra.mxu0 0.0
      %3725 = vmatprep.subr.mxu0 0.0
      %3726 = vmatpush1.msra.mxu0 0.0
      %3727 = vmatprep.subr.mxu0 0.0
      %3728 = vmatpush1.msra.mxu0 0.0
      %3729 = vmatprep.subr.mxu0 0.0
      %3730 = vmatpush1.msra.mxu0 0.0
      %3731 = vmatprep.subr.mxu0 0.0
      %3732 = vmatpush1.msra.mxu0 0.0
      %3733 = vmatprep.subr.mxu0 0.0
      %3734 = vmatpush1.msra.mxu0 0.0
      %3735 = vmatprep.subr.mxu0 0.0
      %3736 = vmatpush1.msra.mxu0 0.0
      %3737 = vmatprep.mubr.f32.mxu0 0.0
      %3738 = vmatmul.mubr.f32.gmra.mrb[0].mxu0 %v3639
      %v3739 = vpop.f32.mrb[0].mxu0
      %v3740 = vadd.f32 0.0, %v3739
      %v3741 = vpop.f32.mrb[0].mxu0
      %v3742 = vadd.f32 0.0, %v3741
      %3743 = vmatprep.mubr.f32.mxu0 0.0
      %3744 = vmatmul.mubr.f32.gmra.mrb[0].mxu0 %v3640
      %v3745 = vpop.f32.mrb[0].mxu0
      %v3746 = vadd.f32 0.0, %v3745
      %v3747 = vpop.f32.mrb[0].mxu0
      %v3748 = vadd.f32 0.0, %v3747
      %3749 = vdwg.mxu0
      %v3750 = vadd.f32 %v3635, %v3740
      %v3751 = vadd.f32 %v3636, %v3742
      %v3752 = vadd.f32 %v3637, %v3746
      %v3753 = vadd.f32 %v3638, %v3748
      %v3754 = vld [vmem:[%s2947 + $0x1] sm:$0xff]
      %v3755 = vld [vmem:[%s2947 + $0x9] sm:$0xff]
      %v3756 = vld [vmem:[%s630] sm:$0xff]
      %v3757 = vld [vmem:[%s630 + $0x8] sm:$0xff]
      %v3758 = vld [vmem:[%s630 + $0x10] sm:$0xff]
      %v3759 = vld [vmem:[%s630 + $0x18] sm:$0xff]
      %v3760 = vld [vmem:[%s630 + $0x20] sm:$0xff]
      %v3761 = vld [vmem:[%s630 + $0x28] sm:$0xff]
      %v3762 = vld [vmem:[%s630 + $0x30] sm:$0xff]
      %v3763 = vld [vmem:[%s630 + $0x38] sm:$0xff]
      %v3764 = vld [vmem:[%s630 + $0x40] sm:$0xff]
      %v3765 = vld [vmem:[%s630 + $0x48] sm:$0xff]
      %v3766 = vld [vmem:[%s630 + $0x50] sm:$0xff]
      %v3767 = vld [vmem:[%s630 + $0x58] sm:$0xff]
      %v3768 = vld [vmem:[%s630 + $0x60] sm:$0xff]
      %v3769 = vld [vmem:[%s630 + $0x68] sm:$0xff]
      %v3770 = vld [vmem:[%s630 + $0x70] sm:$0xff]
      %v3771 = vld [vmem:[%s630 + $0x78] sm:$0xff]
      %v3772 = vld [vmem:[%s630 + $0x80] sm:$0xff]
      %v3773 = vld [vmem:[%s630 + $0x88] sm:$0xff]
      %v3774 = vld [vmem:[%s630 + $0x90] sm:$0xff]
      %v3775 = vld [vmem:[%s630 + $0x98] sm:$0xff]
      %v3776 = vld [vmem:[%s630 + $0xa0] sm:$0xff]
      %v3777 = vld [vmem:[%s630 + $0xa8] sm:$0xff]
      %v3778 = vld [vmem:[%s630 + $0xb0] sm:$0xff]
      %v3779 = vld [vmem:[%s630 + $0xb8] sm:$0xff]
      %v3780 = vld [vmem:[%s630 + $0xc0] sm:$0xff]
      %v3781 = vld [vmem:[%s630 + $0xc8] sm:$0xff]
      %v3782 = vld [vmem:[%s630 + $0xd0] sm:$0xff]
      %v3783 = vld [vmem:[%s630 + $0xd8] sm:$0xff]
      %v3784 = vld [vmem:[%s630 + $0xe0] sm:$0xff]
      %v3785 = vld [vmem:[%s630 + $0xe8] sm:$0xff]
      %v3786 = vld [vmem:[%s630 + $0xf0] sm:$0xff]
      %v3787 = vld [vmem:[%s630 + $0xf8] sm:$0xff]
      %3788 = vmatprep.subr.mxu0 %v3757
      %3789 = vmatpush1.msra.mxu0 %v3756
      %3790 = vmatprep.subr.mxu0 %v3759
      %3791 = vmatpush1.msra.mxu0 %v3758
      %3792 = vmatprep.subr.mxu0 %v3761
      %3793 = vmatpush1.msra.mxu0 %v3760
      %3794 = vmatprep.subr.mxu0 %v3763
      %3795 = vmatpush1.msra.mxu0 %v3762
      %3796 = vmatprep.subr.mxu0 %v3765
      %3797 = vmatpush1.msra.mxu0 %v3764
      %3798 = vmatprep.subr.mxu0 %v3767
      %3799 = vmatpush1.msra.mxu0 %v3766
      %3800 = vmatprep.subr.mxu0 %v3769
      %3801 = vmatpush1.msra.mxu0 %v3768
      %3802 = vmatprep.subr.mxu0 %v3771
      %3803 = vmatpush1.msra.mxu0 %v3770
      %3804 = vmatprep.subr.mxu0 %v3773
      %3805 = vmatpush1.msra.mxu0 %v3772
      %3806 = vmatprep.subr.mxu0 %v3775
      %3807 = vmatpush1.msra.mxu0 %v3774
      %3808 = vmatprep.subr.mxu0 %v3777
      %3809 = vmatpush1.msra.mxu0 %v3776
      %3810 = vmatprep.subr.mxu0 %v3779
      %3811 = vmatpush1.msra.mxu0 %v3778
      %3812 = vmatprep.subr.mxu0 %v3781
      %3813 = vmatpush1.msra.mxu0 %v3780
      %3814 = vmatprep.subr.mxu0 %v3783
      %3815 = vmatpush1.msra.mxu0 %v3782
      %3816 = vmatprep.subr.mxu0 %v3785
      %3817 = vmatpush1.msra.mxu0 %v3784
      %3818 = vmatprep.subr.mxu0 %v3787
      %3819 = vmatpush1.msra.mxu0 %v3786
      %3820 = vmatprep.subr.mxu0 0.0
      %3821 = vmatpush1.msra.mxu0 0.0
      %3822 = vmatprep.subr.mxu0 0.0
      %3823 = vmatpush1.msra.mxu0 0.0
      %3824 = vmatprep.subr.mxu0 0.0
      %3825 = vmatpush1.msra.mxu0 0.0
      %3826 = vmatprep.subr.mxu0 0.0
      %3827 = vmatpush1.msra.mxu0 0.0
      %3828 = vmatprep.subr.mxu0 0.0
      %3829 = vmatpush1.msra.mxu0 0.0
      %3830 = vmatprep.subr.mxu0 0.0
      %3831 = vmatpush1.msra.mxu0 0.0
      %3832 = vmatprep.subr.mxu0 0.0
      %3833 = vmatpush1.msra.mxu0 0.0
      %3834 = vmatprep.subr.mxu0 0.0
      %3835 = vmatpush1.msra.mxu0 0.0
      %3836 = vmatprep.subr.mxu0 0.0
      %3837 = vmatpush1.msra.mxu0 0.0
      %3838 = vmatprep.subr.mxu0 0.0
      %3839 = vmatpush1.msra.mxu0 0.0
      %3840 = vmatprep.subr.mxu0 0.0
      %3841 = vmatpush1.msra.mxu0 0.0
      %3842 = vmatprep.subr.mxu0 0.0
      %3843 = vmatpush1.msra.mxu0 0.0
      %3844 = vmatprep.subr.mxu0 0.0
      %3845 = vmatpush1.msra.mxu0 0.0
      %3846 = vmatprep.subr.mxu0 0.0
      %3847 = vmatpush1.msra.mxu0 0.0
      %3848 = vmatprep.subr.mxu0 0.0
      %3849 = vmatpush1.msra.mxu0 0.0
      %3850 = vmatprep.subr.mxu0 0.0
      %3851 = vmatpush1.msra.mxu0 0.0
      %3852 = vmatprep.mubr.f32.mxu0 0.0
      %3853 = vmatmul.mubr.f32.gmra.mrb[0].mxu0 %v3754
      %v3854 = vpop.f32.mrb[0].mxu0
      %v3855 = vadd.f32 0.0, %v3854
      %v3856 = vpop.f32.mrb[0].mxu0
      %v3857 = vadd.f32 0.0, %v3856
      %3858 = vmatprep.mubr.f32.mxu0 0.0
      %3859 = vmatmul.mubr.f32.gmra.mrb[0].mxu0 %v3755
      %v3860 = vpop.f32.mrb[0].mxu0
      %v3861 = vadd.f32 0.0, %v3860
      %v3862 = vpop.f32.mrb[0].mxu0
      %v3863 = vadd.f32 0.0, %v3862
      %3864 = vdwg.mxu0
      %v3865 = vadd.f32 %v3750, %v3855
      %v3866 = vadd.f32 %v3751, %v3857
      %v3867 = vadd.f32 %v3752, %v3861
      %v3868 = vadd.f32 %v3753, %v3863
      %v3869 = vld [vmem:[%s2947 + $0x2] sm:$0xff]
      %v3870 = vld [vmem:[%s2947 + $0xa] sm:$0xff]
      %v3871 = vld [vmem:[%s746] sm:$0xff]
      %v3872 = vld [vmem:[%s746 + $0x8] sm:$0xff]
      %v3873 = vld [vmem:[%s746 + $0x10] sm:$0xff]
      %v3874 = vld [vmem:[%s746 + $0x18] sm:$0xff]
      %v3875 = vld [vmem:[%s746 + $0x20] sm:$0xff]
      %v3876 = vld [vmem:[%s746 + $0x28] sm:$0xff]
      %v3877 = vld [vmem:[%s746 + $0x30] sm:$0xff]
      %v3878 = vld [vmem:[%s746 + $0x38] sm:$0xff]
      %v3879 = vld [vmem:[%s746 + $0x40] sm:$0xff]
      %v3880 = vld [vmem:[%s746 + $0x48] sm:$0xff]
      %v3881 = vld [vmem:[%s746 + $0x50] sm:$0xff]
      %v3882 = vld [vmem:[%s746 + $0x58] sm:$0xff]
      %v3883 = vld [vmem:[%s746 + $0x60] sm:$0xff]
      %v3884 = vld [vmem:[%s746 + $0x68] sm:$0xff]
      %v3885 = vld [vmem:[%s746 + $0x70] sm:$0xff]
      %v3886 = vld [vmem:[%s746 + $0x78] sm:$0xff]
      %v3887 = vld [vmem:[%s746 + $0x80] sm:$0xff]
      %v3888 = vld [vmem:[%s746 + $0x88] sm:$0xff]
      %v3889 = vld [vmem:[%s746 + $0x90] sm:$0xff]
      %v3890 = vld [vmem:[%s746 + $0x98] sm:$0xff]
      %v3891 = vld [vmem:[%s746 + $0xa0] sm:$0xff]
      %v3892 = vld [vmem:[%s746 + $0xa8] sm:$0xff]
      %v3893 = vld [vmem:[%s746 + $0xb0] sm:$0xff]
      %v3894 = vld [vmem:[%s746 + $0xb8] sm:$0xff]
      %v3895 = vld [vmem:[%s746 + $0xc0] sm:$0xff]
      %v3896 = vld [vmem:[%s746 + $0xc8] sm:$0xff]
      %v3897 = vld [vmem:[%s746 + $0xd0] sm:$0xff]
      %v3898 = vld [vmem:[%s746 + $0xd8] sm:$0xff]
      %v3899 = vld [vmem:[%s746 + $0xe0] sm:$0xff]
      %v3900 = vld [vmem:[%s746 + $0xe8] sm:$0xff]
      %v3901 = vld [vmem:[%s746 + $0xf0] sm:$0xff]
      %v3902 = vld [vmem:[%s746 + $0xf8] sm:$0xff]
      %3903 = vmatprep.subr.mxu0 %v3872
      %3904 = vmatpush1.msra.mxu0 %v3871
      %3905 = vmatprep.subr.mxu0 %v3874
      %3906 = vmatpush1.msra.mxu0 %v3873
      %3907 = vmatprep.subr.mxu0 %v3876
      %3908 = vmatpush1.msra.mxu0 %v3875
      %3909 = vmatprep.subr.mxu0 %v3878
      %3910 = vmatpush1.msra.mxu0 %v3877
      %3911 = vmatprep.subr.mxu0 %v3880
      %3912 = vmatpush1.msra.mxu0 %v3879
      %3913 = vmatprep.subr.mxu0 %v3882
      %3914 = vmatpush1.msra.mxu0 %v3881
      %3915 = vmatprep.subr.mxu0 %v3884
      %3916 = vmatpush1.msra.mxu0 %v3883
      %3917 = vmatprep.subr.mxu0 %v3886
      %3918 = vmatpush1.msra.mxu0 %v3885
      %3919 = vmatprep.subr.mxu0 %v3888
      %3920 = vmatpush1.msra.mxu0 %v3887
      %3921 = vmatprep.subr.mxu0 %v3890
      %3922 = vmatpush1.msra.mxu0 %v3889
      %3923 = vmatprep.subr.mxu0 %v3892
      %3924 = vmatpush1.msra.mxu0 %v3891
      %3925 = vmatprep.subr.mxu0 %v3894
      %3926 = vmatpush1.msra.mxu0 %v3893
      %3927 = vmatprep.subr.mxu0 %v3896
      %3928 = vmatpush1.msra.mxu0 %v3895
      %3929 = vmatprep.subr.mxu0 %v3898
      %3930 = vmatpush1.msra.mxu0 %v3897
      %3931 = vmatprep.subr.mxu0 %v3900
      %3932 = vmatpush1.msra.mxu0 %v3899
      %3933 = vmatprep.subr.mxu0 %v3902
      %3934 = vmatpush1.msra.mxu0 %v3901
      %3935 = vmatprep.subr.mxu0 0.0
      %3936 = vmatpush1.msra.mxu0 0.0
      %3937 = vmatprep.subr.mxu0 0.0
      %3938 = vmatpush1.msra.mxu0 0.0
      %3939 = vmatprep.subr.mxu0 0.0
      %3940 = vmatpush1.msra.mxu0 0.0
      %3941 = vmatprep.subr.mxu0 0.0
      %3942 = vmatpush1.msra.mxu0 0.0
      %3943 = vmatprep.subr.mxu0 0.0
      %3944 = vmatpush1.msra.mxu0 0.0
      %3945 = vmatprep.subr.mxu0 0.0
      %3946 = vmatpush1.msra.mxu0 0.0
      %3947 = vmatprep.subr.mxu0 0.0
      %3948 = vmatpush1.msra.mxu0 0.0
      %3949 = vmatprep.subr.mxu0 0.0
      %3950 = vmatpush1.msra.mxu0 0.0
      %3951 = vmatprep.subr.mxu0 0.0
      %3952 = vmatpush1.msra.mxu0 0.0
      %3953 = vmatprep.subr.mxu0 0.0
      %3954 = vmatpush1.msra.mxu0 0.0
      %3955 = vmatprep.subr.mxu0 0.0
      %3956 = vmatpush1.msra.mxu0 0.0
      %3957 = vmatprep.subr.mxu0 0.0
      %3958 = vmatpush1.msra.mxu0 0.0
      %3959 = vmatprep.subr.mxu0 0.0
      %3960 = vmatpush1.msra.mxu0 0.0
      %3961 = vmatprep.subr.mxu0 0.0
      %3962 = vmatpush1.msra.mxu0 0.0
      %3963 = vmatprep.subr.mxu0 0.0
      %3964 = vmatpush1.msra.mxu0 0.0
      %3965 = vmatprep.subr.mxu0 0.0
      %3966 = vmatpush1.msra.mxu0 0.0
      %3967 = vmatprep.mubr.f32.mxu0 0.0
      %3968 = vmatmul.mubr.f32.gmra.mrb[0].mxu0 %v3869
      %v3969 = vpop.f32.mrb[0].mxu0
      %v3970 = vadd.f32 0.0, %v3969
      %v3971 = vpop.f32.mrb[0].mxu0
      %v3972 = vadd.f32 0.0, %v3971
      %3973 = vmatprep.mubr.f32.mxu0 0.0
      %3974 = vmatmul.mubr.f32.gmra.mrb[0].mxu0 %v3870
      %v3975 = vpop.f32.mrb[0].mxu0
      %v3976 = vadd.f32 0.0, %v3975
      %v3977 = vpop.f32.mrb[0].mxu0
      %v3978 = vadd.f32 0.0, %v3977
      %3979 = vdwg.mxu0
      %v3980 = vadd.f32 %v3865, %v3970
      %v3981 = vadd.f32 %v3866, %v3972
      %v3982 = vadd.f32 %v3867, %v3976
      %v3983 = vadd.f32 %v3868, %v3978
      %s3984 = scalar_lea.vmem %s165, 120
      %v3985 = vld [vmem:[%s3984] sm:$0xff]
      %v3986 = vld [vmem:[%s3984 + $0x8] sm:$0xff]
      %v3987 = vld [vmem:[%s863] sm:$0xff]
      %v3988 = vld [vmem:[%s863 + $0x8] sm:$0xff]
      %v3989 = vld [vmem:[%s863 + $0x10] sm:$0xff]
      %v3990 = vld [vmem:[%s863 + $0x18] sm:$0xff]
      %v3991 = vld [vmem:[%s863 + $0x20] sm:$0xff]
      %v3992 = vld [vmem:[%s863 + $0x28] sm:$0xff]
      %v3993 = vld [vmem:[%s863 + $0x30] sm:$0xff]
      %v3994 = vld [vmem:[%s863 + $0x38] sm:$0xff]
      %v3995 = vld [vmem:[%s863 + $0x40] sm:$0xff]
      %v3996 = vld [vmem:[%s863 + $0x48] sm:$0xff]
      %v3997 = vld [vmem:[%s863 + $0x50] sm:$0xff]
      %v3998 = vld [vmem:[%s863 + $0x58] sm:$0xff]
      %v3999 = vld [vmem:[%s863 + $0x60] sm:$0xff]
      %v4000 = vld [vmem:[%s863 + $0x68] sm:$0xff]
      %v4001 = vld [vmem:[%s863 + $0x70] sm:$0xff]
      %v4002 = vld [vmem:[%s863 + $0x78] sm:$0xff]
      %v4003 = vld [vmem:[%s863 + $0x80] sm:$0xff]
      %v4004 = vld [vmem:[%s863 + $0x88] sm:$0xff]
      %v4005 = vld [vmem:[%s863 + $0x90] sm:$0xff]
      %v4006 = vld [vmem:[%s863 + $0x98] sm:$0xff]
      %v4007 = vld [vmem:[%s863 + $0xa0] sm:$0xff]
      %v4008 = vld [vmem:[%s863 + $0xa8] sm:$0xff]
      %v4009 = vld [vmem:[%s863 + $0xb0] sm:$0xff]
      %v4010 = vld [vmem:[%s863 + $0xb8] sm:$0xff]
      %v4011 = vld [vmem:[%s863 + $0xc0] sm:$0xff]
      %v4012 = vld [vmem:[%s863 + $0xc8] sm:$0xff]
      %v4013 = vld [vmem:[%s863 + $0xd0] sm:$0xff]
      %v4014 = vld [vmem:[%s863 + $0xd8] sm:$0xff]
      %v4015 = vld [vmem:[%s863 + $0xe0] sm:$0xff]
      %v4016 = vld [vmem:[%s863 + $0xe8] sm:$0xff]
      %v4017 = vld [vmem:[%s863 + $0xf0] sm:$0xff]
      %v4018 = vld [vmem:[%s863 + $0xf8] sm:$0xff]
      %4019 = vmatprep.subr.mxu0 %v3988
      %4020 = vmatpush1.msra.mxu0 %v3987
      %4021 = vmatprep.subr.mxu0 %v3990
      %4022 = vmatpush1.msra.mxu0 %v3989
      %4023 = vmatprep.subr.mxu0 %v3992
      %4024 = vmatpush1.msra.mxu0 %v3991
      %4025 = vmatprep.subr.mxu0 %v3994
      %4026 = vmatpush1.msra.mxu0 %v3993
      %4027 = vmatprep.subr.mxu0 %v3996
      %4028 = vmatpush1.msra.mxu0 %v3995
      %4029 = vmatprep.subr.mxu0 %v3998
      %4030 = vmatpush1.msra.mxu0 %v3997
      %4031 = vmatprep.subr.mxu0 %v4000
      %4032 = vmatpush1.msra.mxu0 %v3999
      %4033 = vmatprep.subr.mxu0 %v4002
      %4034 = vmatpush1.msra.mxu0 %v4001
      %4035 = vmatprep.subr.mxu0 %v4004
      %4036 = vmatpush1.msra.mxu0 %v4003
      %4037 = vmatprep.subr.mxu0 %v4006
      %4038 = vmatpush1.msra.mxu0 %v4005
      %4039 = vmatprep.subr.mxu0 %v4008
      %4040 = vmatpush1.msra.mxu0 %v4007
      %4041 = vmatprep.subr.mxu0 %v4010
      %4042 = vmatpush1.msra.mxu0 %v4009
      %4043 = vmatprep.subr.mxu0 %v4012
      %4044 = vmatpush1.msra.mxu0 %v4011
      %4045 = vmatprep.subr.mxu0 %v4014
      %4046 = vmatpush1.msra.mxu0 %v4013
      %4047 = vmatprep.subr.mxu0 %v4016
      %4048 = vmatpush1.msra.mxu0 %v4015
      %4049 = vmatprep.subr.mxu0 %v4018
      %4050 = vmatpush1.msra.mxu0 %v4017
      %4051 = vmatprep.subr.mxu0 0.0
      %4052 = vmatpush1.msra.mxu0 0.0
      %4053 = vmatprep.subr.mxu0 0.0
      %4054 = vmatpush1.msra.mxu0 0.0
      %4055 = vmatprep.subr.mxu0 0.0
      %4056 = vmatpush1.msra.mxu0 0.0
      %4057 = vmatprep.subr.mxu0 0.0
      %4058 = vmatpush1.msra.mxu0 0.0
      %4059 = vmatprep.subr.mxu0 0.0
      %4060 = vmatpush1.msra.mxu0 0.0
      %4061 = vmatprep.subr.mxu0 0.0
      %4062 = vmatpush1.msra.mxu0 0.0
      %4063 = vmatprep.subr.mxu0 0.0
      %4064 = vmatpush1.msra.mxu0 0.0
      %4065 = vmatprep.subr.mxu0 0.0
      %4066 = vmatpush1.msra.mxu0 0.0
      %4067 = vmatprep.subr.mxu0 0.0
      %4068 = vmatpush1.msra.mxu0 0.0
      %4069 = vmatprep.subr.mxu0 0.0
      %4070 = vmatpush1.msra.mxu0 0.0
      %4071 = vmatprep.subr.mxu0 0.0
      %4072 = vmatpush1.msra.mxu0 0.0
      %4073 = vmatprep.subr.mxu0 0.0
      %4074 = vmatpush1.msra.mxu0 0.0
      %4075 = vmatprep.subr.mxu0 0.0
      %4076 = vmatpush1.msra.mxu0 0.0
      %4077 = vmatprep.subr.mxu0 0.0
      %4078 = vmatpush1.msra.mxu0 0.0
      %4079 = vmatprep.subr.mxu0 0.0
      %4080 = vmatpush1.msra.mxu0 0.0
      %4081 = vmatprep.subr.mxu0 0.0
      %4082 = vmatpush1.msra.mxu0 0.0
      %4083 = vmatprep.mubr.f32.mxu0 0.0
      %4084 = vmatmul.mubr.f32.gmra.mrb[0].mxu0 %v3985
      %v4085 = vpop.f32.mrb[0].mxu0
      %v4086 = vadd.f32 0.0, %v4085
      %v4087 = vpop.f32.mrb[0].mxu0
      %v4088 = vadd.f32 0.0, %v4087
      %4089 = vmatprep.mubr.f32.mxu0 0.0
      %4090 = vmatmul.mubr.f32.gmra.mrb[0].mxu0 %v3986
      %v4091 = vpop.f32.mrb[0].mxu0
      %v4092 = vadd.f32 0.0, %v4091
      %v4093 = vpop.f32.mrb[0].mxu0
      %v4094 = vadd.f32 0.0, %v4093
      %4095 = vdwg.mxu0
      %v4096 = vadd.f32 %v3980, %v4086
      %v4097 = vadd.f32 %v3981, %v4088
      %v4098 = vadd.f32 %v3982, %v4092
      %v4099 = vadd.f32 %v3983, %v4094
      %v4100 = vld [vmem:[%s3984 + $0x1] sm:$0xff]
      %v4101 = vld [vmem:[%s3984 + $0x9] sm:$0xff]
      %v4102 = vld [vmem:[%s979] sm:$0xff]
      %v4103 = vld [vmem:[%s979 + $0x8] sm:$0xff]
      %v4104 = vld [vmem:[%s979 + $0x10] sm:$0xff]
      %v4105 = vld [vmem:[%s979 + $0x18] sm:$0xff]
      %v4106 = vld [vmem:[%s979 + $0x20] sm:$0xff]
      %v4107 = vld [vmem:[%s979 + $0x28] sm:$0xff]
      %v4108 = vld [vmem:[%s979 + $0x30] sm:$0xff]
      %v4109 = vld [vmem:[%s979 + $0x38] sm:$0xff]
      %v4110 = vld [vmem:[%s979 + $0x40] sm:$0xff]
      %v4111 = vld [vmem:[%s979 + $0x48] sm:$0xff]
      %v4112 = vld [vmem:[%s979 + $0x50] sm:$0xff]
      %v4113 = vld [vmem:[%s979 + $0x58] sm:$0xff]
      %v4114 = vld [vmem:[%s979 + $0x60] sm:$0xff]
      %v4115 = vld [vmem:[%s979 + $0x68] sm:$0xff]
      %v4116 = vld [vmem:[%s979 + $0x70] sm:$0xff]
      %v4117 = vld [vmem:[%s979 + $0x78] sm:$0xff]
      %v4118 = vld [vmem:[%s979 + $0x80] sm:$0xff]
      %v4119 = vld [vmem:[%s979 + $0x88] sm:$0xff]
      %v4120 = vld [vmem:[%s979 + $0x90] sm:$0xff]
      %v4121 = vld [vmem:[%s979 + $0x98] sm:$0xff]
      %v4122 = vld [vmem:[%s979 + $0xa0] sm:$0xff]
      %v4123 = vld [vmem:[%s979 + $0xa8] sm:$0xff]
      %v4124 = vld [vmem:[%s979 + $0xb0] sm:$0xff]
      %v4125 = vld [vmem:[%s979 + $0xb8] sm:$0xff]
      %v4126 = vld [vmem:[%s979 + $0xc0] sm:$0xff]
      %v4127 = vld [vmem:[%s979 + $0xc8] sm:$0xff]
      %v4128 = vld [vmem:[%s979 + $0xd0] sm:$0xff]
      %v4129 = vld [vmem:[%s979 + $0xd8] sm:$0xff]
      %v4130 = vld [vmem:[%s979 + $0xe0] sm:$0xff]
      %v4131 = vld [vmem:[%s979 + $0xe8] sm:$0xff]
      %v4132 = vld [vmem:[%s979 + $0xf0] sm:$0xff]
      %v4133 = vld [vmem:[%s979 + $0xf8] sm:$0xff]
      %4134 = vmatprep.subr.mxu0 %v4103
      %4135 = vmatpush1.msra.mxu0 %v4102
      %4136 = vmatprep.subr.mxu0 %v4105
      %4137 = vmatpush1.msra.mxu0 %v4104
      %4138 = vmatprep.subr.mxu0 %v4107
      %4139 = vmatpush1.msra.mxu0 %v4106
      %4140 = vmatprep.subr.mxu0 %v4109
      %4141 = vmatpush1.msra.mxu0 %v4108
      %4142 = vmatprep.subr.mxu0 %v4111
      %4143 = vmatpush1.msra.mxu0 %v4110
      %4144 = vmatprep.subr.mxu0 %v4113
      %4145 = vmatpush1.msra.mxu0 %v4112
      %4146 = vmatprep.subr.mxu0 %v4115
      %4147 = vmatpush1.msra.mxu0 %v4114
      %4148 = vmatprep.subr.mxu0 %v4117
      %4149 = vmatpush1.msra.mxu0 %v4116
      %4150 = vmatprep.subr.mxu0 %v4119
      %4151 = vmatpush1.msra.mxu0 %v4118
      %4152 = vmatprep.subr.mxu0 %v4121
      %4153 = vmatpush1.msra.mxu0 %v4120
      %4154 = vmatprep.subr.mxu0 %v4123
      %4155 = vmatpush1.msra.mxu0 %v4122
      %4156 = vmatprep.subr.mxu0 %v4125
      %4157 = vmatpush1.msra.mxu0 %v4124
      %4158 = vmatprep.subr.mxu0 %v4127
      %4159 = vmatpush1.msra.mxu0 %v4126
      %4160 = vmatprep.subr.mxu0 %v4129
      %4161 = vmatpush1.msra.mxu0 %v4128
      %4162 = vmatprep.subr.mxu0 %v4131
      %4163 = vmatpush1.msra.mxu0 %v4130
      %4164 = vmatprep.subr.mxu0 %v4133
      %4165 = vmatpush1.msra.mxu0 %v4132
      %4166 = vmatprep.subr.mxu0 0.0
      %4167 = vmatpush1.msra.mxu0 0.0
      %4168 = vmatprep.subr.mxu0 0.0
      %4169 = vmatpush1.msra.mxu0 0.0
      %4170 = vmatprep.subr.mxu0 0.0
      %4171 = vmatpush1.msra.mxu0 0.0
      %4172 = vmatprep.subr.mxu0 0.0
      %4173 = vmatpush1.msra.mxu0 0.0
      %4174 = vmatprep.subr.mxu0 0.0
      %4175 = vmatpush1.msra.mxu0 0.0
      %4176 = vmatprep.subr.mxu0 0.0
      %4177 = vmatpush1.msra.mxu0 0.0
      %4178 = vmatprep.subr.mxu0 0.0
      %4179 = vmatpush1.msra.mxu0 0.0
      %4180 = vmatprep.subr.mxu0 0.0
      %4181 = vmatpush1.msra.mxu0 0.0
      %4182 = vmatprep.subr.mxu0 0.0
      %4183 = vmatpush1.msra.mxu0 0.0
      %4184 = vmatprep.subr.mxu0 0.0
      %4185 = vmatpush1.msra.mxu0 0.0
      %4186 = vmatprep.subr.mxu0 0.0
      %4187 = vmatpush1.msra.mxu0 0.0
      %4188 = vmatprep.subr.mxu0 0.0
      %4189 = vmatpush1.msra.mxu0 0.0
      %4190 = vmatprep.subr.mxu0 0.0
      %4191 = vmatpush1.msra.mxu0 0.0
      %4192 = vmatprep.subr.mxu0 0.0
      %4193 = vmatpush1.msra.mxu0 0.0
      %4194 = vmatprep.subr.mxu0 0.0
      %4195 = vmatpush1.msra.mxu0 0.0
      %4196 = vmatprep.subr.mxu0 0.0
      %4197 = vmatpush1.msra.mxu0 0.0
      %4198 = vmatprep.mubr.f32.mxu0 0.0
      %4199 = vmatmul.mubr.f32.gmra.mrb[0].mxu0 %v4100
      %v4200 = vpop.f32.mrb[0].mxu0
      %v4201 = vadd.f32 0.0, %v4200
      %v4202 = vpop.f32.mrb[0].mxu0
      %v4203 = vadd.f32 0.0, %v4202
      %4204 = vmatprep.mubr.f32.mxu0 0.0
      %4205 = vmatmul.mubr.f32.gmra.mrb[0].mxu0 %v4101
      %v4206 = vpop.f32.mrb[0].mxu0
      %v4207 = vadd.f32 0.0, %v4206
      %v4208 = vpop.f32.mrb[0].mxu0
      %v4209 = vadd.f32 0.0, %v4208
      %4210 = vdwg.mxu0
      %v4211 = vadd.f32 %v4096, %v4201
      %v4212 = vadd.f32 %v4097, %v4203
      %v4213 = vadd.f32 %v4098, %v4207
      %v4214 = vadd.f32 %v4099, %v4209
      %v4215 = vld [vmem:[%s3984 + $0x2] sm:$0xff]
      %v4216 = vld [vmem:[%s3984 + $0xa] sm:$0xff]
      %v4217 = vld [vmem:[%s1095] sm:$0xff]
      %v4218 = vld [vmem:[%s1095 + $0x8] sm:$0xff]
      %v4219 = vld [vmem:[%s1095 + $0x10] sm:$0xff]
      %v4220 = vld [vmem:[%s1095 + $0x18] sm:$0xff]
      %v4221 = vld [vmem:[%s1095 + $0x20] sm:$0xff]
      %v4222 = vld [vmem:[%s1095 + $0x28] sm:$0xff]
      %v4223 = vld [vmem:[%s1095 + $0x30] sm:$0xff]
      %v4224 = vld [vmem:[%s1095 + $0x38] sm:$0xff]
      %v4225 = vld [vmem:[%s1095 + $0x40] sm:$0xff]
      %v4226 = vld [vmem:[%s1095 + $0x48] sm:$0xff]
      %v4227 = vld [vmem:[%s1095 + $0x50] sm:$0xff]
      %v4228 = vld [vmem:[%s1095 + $0x58] sm:$0xff]
      %v4229 = vld [vmem:[%s1095 + $0x60] sm:$0xff]
      %v4230 = vld [vmem:[%s1095 + $0x68] sm:$0xff]
      %v4231 = vld [vmem:[%s1095 + $0x70] sm:$0xff]
      %v4232 = vld [vmem:[%s1095 + $0x78] sm:$0xff]
      %v4233 = vld [vmem:[%s1095 + $0x80] sm:$0xff]
      %v4234 = vld [vmem:[%s1095 + $0x88] sm:$0xff]
      %v4235 = vld [vmem:[%s1095 + $0x90] sm:$0xff]
      %v4236 = vld [vmem:[%s1095 + $0x98] sm:$0xff]
      %v4237 = vld [vmem:[%s1095 + $0xa0] sm:$0xff]
      %v4238 = vld [vmem:[%s1095 + $0xa8] sm:$0xff]
      %v4239 = vld [vmem:[%s1095 + $0xb0] sm:$0xff]
      %v4240 = vld [vmem:[%s1095 + $0xb8] sm:$0xff]
      %v4241 = vld [vmem:[%s1095 + $0xc0] sm:$0xff]
      %v4242 = vld [vmem:[%s1095 + $0xc8] sm:$0xff]
      %v4243 = vld [vmem:[%s1095 + $0xd0] sm:$0xff]
      %v4244 = vld [vmem:[%s1095 + $0xd8] sm:$0xff]
      %v4245 = vld [vmem:[%s1095 + $0xe0] sm:$0xff]
      %v4246 = vld [vmem:[%s1095 + $0xe8] sm:$0xff]
      %v4247 = vld [vmem:[%s1095 + $0xf0] sm:$0xff]
      %v4248 = vld [vmem:[%s1095 + $0xf8] sm:$0xff]
      %4249 = vmatprep.subr.mxu0 %v4218
      %4250 = vmatpush1.msra.mxu0 %v4217
      %4251 = vmatprep.subr.mxu0 %v4220
      %4252 = vmatpush1.msra.mxu0 %v4219
      %4253 = vmatprep.subr.mxu0 %v4222
      %4254 = vmatpush1.msra.mxu0 %v4221
      %4255 = vmatprep.subr.mxu0 %v4224
      %4256 = vmatpush1.msra.mxu0 %v4223
      %4257 = vmatprep.subr.mxu0 %v4226
      %4258 = vmatpush1.msra.mxu0 %v4225
      %4259 = vmatprep.subr.mxu0 %v4228
      %4260 = vmatpush1.msra.mxu0 %v4227
      %4261 = vmatprep.subr.mxu0 %v4230
      %4262 = vmatpush1.msra.mxu0 %v4229
      %4263 = vmatprep.subr.mxu0 %v4232
      %4264 = vmatpush1.msra.mxu0 %v4231
      %4265 = vmatprep.subr.mxu0 %v4234
      %4266 = vmatpush1.msra.mxu0 %v4233
      %4267 = vmatprep.subr.mxu0 %v4236
      %4268 = vmatpush1.msra.mxu0 %v4235
      %4269 = vmatprep.subr.mxu0 %v4238
      %4270 = vmatpush1.msra.mxu0 %v4237
      %4271 = vmatprep.subr.mxu0 %v4240
      %4272 = vmatpush1.msra.mxu0 %v4239
      %4273 = vmatprep.subr.mxu0 %v4242
      %4274 = vmatpush1.msra.mxu0 %v4241
      %4275 = vmatprep.subr.mxu0 %v4244
      %4276 = vmatpush1.msra.mxu0 %v4243
      %4277 = vmatprep.subr.mxu0 %v4246
      %4278 = vmatpush1.msra.mxu0 %v4245
      %4279 = vmatprep.subr.mxu0 %v4248
      %4280 = vmatpush1.msra.mxu0 %v4247
      %4281 = vmatprep.subr.mxu0 0.0
      %4282 = vmatpush1.msra.mxu0 0.0
      %4283 = vmatprep.subr.mxu0 0.0
      %4284 = vmatpush1.msra.mxu0 0.0
      %4285 = vmatprep.subr.mxu0 0.0
      %4286 = vmatpush1.msra.mxu0 0.0
      %4287 = vmatprep.subr.mxu0 0.0
      %4288 = vmatpush1.msra.mxu0 0.0
      %4289 = vmatprep.subr.mxu0 0.0
      %4290 = vmatpush1.msra.mxu0 0.0
      %4291 = vmatprep.subr.mxu0 0.0
      %4292 = vmatpush1.msra.mxu0 0.0
      %4293 = vmatprep.subr.mxu0 0.0
      %4294 = vmatpush1.msra.mxu0 0.0
      %4295 = vmatprep.subr.mxu0 0.0
      %4296 = vmatpush1.msra.mxu0 0.0
      %4297 = vmatprep.subr.mxu0 0.0
      %4298 = vmatpush1.msra.mxu0 0.0
      %4299 = vmatprep.subr.mxu0 0.0
      %4300 = vmatpush1.msra.mxu0 0.0
      %4301 = vmatprep.subr.mxu0 0.0
      %4302 = vmatpush1.msra.mxu0 0.0
      %4303 = vmatprep.subr.mxu0 0.0
      %4304 = vmatpush1.msra.mxu0 0.0
      %4305 = vmatprep.subr.mxu0 0.0
      %4306 = vmatpush1.msra.mxu0 0.0
      %4307 = vmatprep.subr.mxu0 0.0
      %4308 = vmatpush1.msra.mxu0 0.0
      %4309 = vmatprep.subr.mxu0 0.0
      %4310 = vmatpush1.msra.mxu0 0.0
      %4311 = vmatprep.subr.mxu0 0.0
      %4312 = vmatpush1.msra.mxu0 0.0
      %4313 = vmatprep.mubr.f32.mxu0 0.0
      %4314 = vmatmul.mubr.f32.gmra.mrb[0].mxu0 %v4215
      %v4315 = vpop.f32.mrb[0].mxu0
      %v4316 = vadd.f32 0.0, %v4315
      %v4317 = vpop.f32.mrb[0].mxu0
      %v4318 = vadd.f32 0.0, %v4317
      %4319 = vmatprep.mubr.f32.mxu0 0.0
      %4320 = vmatmul.mubr.f32.gmra.mrb[0].mxu0 %v4216
      %v4321 = vpop.f32.mrb[0].mxu0
      %v4322 = vadd.f32 0.0, %v4321
      %v4323 = vpop.f32.mrb[0].mxu0
      %v4324 = vadd.f32 0.0, %v4323
      %4325 = vdwg.mxu0
      %v4326 = vadd.f32 %v4211, %v4316
      %v4327 = vadd.f32 %v4212, %v4318
      %v4328 = vadd.f32 %v4213, %v4322
      %v4329 = vadd.f32 %v4214, %v4324
      %v4330 = vadd.f32 %v4326, %v1213
      %v4331 = vadd.f32 %v4327, %v1217
      %v4332 = vadd.f32 %v4328, %v1213
      %v4333 = vadd.f32 %v4329, %v1217
      %s4334 = scalar_lea.vmem %s170, 96
      %4335 = vst [vmem:[%s4334] sm:$0xff] %v4330
      %4336 = vst [vmem:[%s4334 + $0x8] sm:$0xff] %v4331
      %4337 = vst [vmem:[%s4334 + $0x10] sm:$0xff] %v4332
      %4338 = vst [vmem:[%s4334 + $0x18] sm:$0xff] %v4333
      %p4339 = scmp.lt.s32.totalorder %s14, 1
      %s4340 = scalar_select %p4339, %s14, 1
      %s4341 = smul.addr %s4340, 16
      %s4342 = smul.addr %s4341, 8
      %s4343 = scalar_lea.vmem %s3, %s4342
      // Predicated region
      $region33: #{_lambda_.1} parent=31 // pred_check
        %p4344 = pneg %p100
      $region34: #{_lambda_.1} parent=31 // pred_check_branch
        %4346 = sbr.rel (%p4344) target = $region36
      $region35: #{_lambda_.1} parent=31 // pred_region
        _
      $region36: #{_lambda_.1} parent=31 // pred_fallthru
        _
    $region32: #{_lambda_.1} parent=5 // pred_fallthru
      _
    %p4347 = scmp.le.s32.totalorder 2, %s9
    // Predicated region
    $region37: #{_lambda_.1} parent=5 // pred_check
      %p4348 = pneg %p4347
    $region38: #{_lambda_.1} parent=5 // pred_check_branch
      %4350 = sbr.rel (%p4348) target = $region40
    $region39: #{_lambda_.1} parent=5 // pred_region
      %s4351 = ssub.s32 %s9, 2
      // Predicated region
      $region41: #{_lambda_.1} parent=39 // pred_check
        %p4352 = pneg %p106
      $region42: #{_lambda_.1} parent=39 // pred_check_branch
        %4354 = sbr.rel (%p4352) target = $region44
      $region43: #{_lambda_.1} parent=39 // pred_region
        %p4355 = scmp.lt.s32.totalorder %s15, 1
        %s4356 = scalar_select %p4355, %s15, 1
        %s4357 = smul.addr %s4356, 16
        %s4358 = smul.addr %s4357, 8
        %s4359 = scalar_lea.vmem %s3, %s4358
      $region44: #{_lambda_.1} parent=39 // pred_fallthru
        _
    $region40: #{_lambda_.1} parent=5 // pred_fallthru
      _
  $region6: #{_lambda_.1} parent=0 // loop_footer
    %s13 = sadd.s32 1, %s9
  $region7: #{_lambda_.1} parent=0 // loop_footer_branch
    %8 = sbr.rel target = $region3
  $region8: #{_lambda_.1} parent=0 // loop_exit
    _

</llo_original>
